<compile_context>
chip_gen: v7x
topology: tpu7x:2x2x1
jax: 0.10.0
libtpu: 0.0.40
codegen_flags: <defaults>
</compile_context>

<pallas_src>
import jax
import jax.numpy as jnp
from jax.experimental import pallas as pl
from jax.experimental.pallas import tpu as pltpu

# ----- static model configuration (matches the PyTorch module instance) -----
N_INPUTS = 16
N_HIDDEN = 32
N_OUTPUTS = 8
N_LAYERS = 3                    # sequential has N_LAYERS + 1 (Linear, Tanh) blocks
EPSILON = 1e-4

HPAD = N_HIDDEN                 # common padded width for every packed matrix (32)
N_SEQ = N_LAYERS + 1            # number of sequential linear layers           (4)
N_MATS = N_SEQ + 1              # + the fused (mean|std) head                  (5)

TILE_B = 512                    # batch tile = unit of work per grid step
BATCH = 2048                    # example batch for the demo run (grid = 4)


def resnet_kernel(x_ref, w_ref, b_ref, out_ref):
    """One batch tile, fully in VMEM.

    x_ref  : (TILE_B, N_INPUTS)     f32, batch-tiled input
    w_ref  : (N_MATS, HPAD, HPAD)   f32, packed weight slab (grid-resident)
    b_ref  : (N_MATS, 1, HPAD)      f32, packed bias slab   (grid-resident)
    out_ref: (TILE_B, 2*N_OUTPUTS)  f32, columns [0:8]=mu, [8:16]=sigma
    """

    def linear(h, idx, k_in):
        # Static slices of the resident slab: zero runtime cost.
        w = w_ref[idx, :k_in, :]                    # (k_in, HPAD)
        b = b_ref[idx]                              # (1, HPAD)
        return jnp.dot(h, w, preferred_element_type=jnp.float32) + b

    x = x_ref[...]

    # sequential[0] / sequential[1]
    h_pre = jnp.tanh(linear(x, 0, N_INPUTS))
    h_curr = jnp.tanh(linear(h_pre, 1, HPAD))

    # sequential[2 .. N_SEQ-1] with residual input (h_pre + h_curr)
    h = h_curr
    for t in range(2, N_SEQ):
        h = jnp.tanh(linear(h_pre + h_curr, t, HPAD))
        h_pre, h_curr = h_curr, h

    # Fused heads: one matmul; columns [0:8]=mu, [8:16]=pre-softplus sigma,
    # columns >=16 are exact zeros from the zero-padded slab and are sliced off.
    head = linear(h, N_SEQ, HPAD)                   # (TILE_B, HPAD)
    col = jax.lax.broadcasted_iota(jnp.int32, head.shape, 1)
    packed = jnp.where(col < N_OUTPUTS, head, jax.nn.softplus(head) + EPSILON)
    out_ref[...] = packed[:, : 2 * N_OUTPUTS].astype(out_ref.dtype)


def _cost_estimate(padded_batch):
    per_row_flops = 2 * (N_INPUTS * HPAD + N_LAYERS * HPAD * HPAD + HPAD * HPAD)
    per_row_transc = N_SEQ * HPAD + 2 * HPAD        # tanh x4 + exp/log of softplus
    param_bytes = 4 * (N_MATS * HPAD * HPAD + N_MATS * HPAD)
    io_bytes = 4 * padded_batch * (N_INPUTS + 2 * N_OUTPUTS)
    return pl.CostEstimate(
        flops=padded_batch * per_row_flops,
        transcendentals=padded_batch * per_row_transc,
        bytes_accessed=param_bytes + io_bytes,
    )


def resnet_forward(x, w_slab, b_slab, *, tile_b=TILE_B):
    """Pallas forward: returns (mu, sigma), each (batch, N_OUTPUTS)."""
    batch = x.shape[0]
    n_tiles = -(-batch // tile_b)
    padded = n_tiles * tile_b
    if padded != batch:
        x = jnp.pad(x, ((0, padded - batch), (0, 0)))

    packed = pl.pallas_call(
        resnet_kernel,
        out_shape=jax.ShapeDtypeStruct((padded, 2 * N_OUTPUTS), jnp.float32),
        grid=(n_tiles,),
        in_specs=[
            pl.BlockSpec((tile_b, N_INPUTS), lambda i: (i, 0)),       # batch-tiled x
            pl.BlockSpec((N_MATS, HPAD, HPAD), lambda i: (0, 0, 0)),  # resident weights
            pl.BlockSpec((N_MATS, 1, HPAD), lambda i: (0, 0, 0)),     # resident biases
        ],
        out_specs=pl.BlockSpec((tile_b, 2 * N_OUTPUTS), lambda i: (i, 0)),
        compiler_params=pltpu.CompilerParams(
            dimension_semantics=("parallel",),      # 2x on v7x dual TensorCore
        ),
        cost_estimate=_cost_estimate(padded),
    )(x, w_slab, b_slab)

    mu = packed[:batch, :N_OUTPUTS]
    sigma = packed[:batch, N_OUTPUTS:]
    return mu, sigma


def make_params(key):
    """Xavier-uniform weights (module's custom init) + PyTorch-default uniform
    biases. Weights are stored transposed vs. PyTorch: (in_features, out_features)."""
    dims = (N_INPUTS,) + (N_HIDDEN,) * N_LAYERS + (N_OUTPUTS,)
    seq_w, seq_b = [], []
    for t in range(len(dims) - 1):
        key, kw, kb = jax.random.split(key, 3)
        fan_in, fan_out = dims[t], dims[t + 1]
        wb = (6.0 / (fan_in + fan_out)) ** 0.5
        bb = 1.0 / (fan_in ** 0.5)
        seq_w.append(jax.random.uniform(kw, (fan_in, fan_out), jnp.float32, -wb, wb))
        seq_b.append(jax.random.uniform(kb, (fan_out,), jnp.float32, -bb, bb))
    head_wb = (6.0 / (2 * N_OUTPUTS)) ** 0.5
    head_bb = 1.0 / (N_OUTPUTS ** 0.5)
    key, kwm, kbm, kws, kbs = jax.random.split(key, 5)
    wm = jax.random.uniform(kwm, (N_OUTPUTS, N_OUTPUTS), jnp.float32, -head_wb, head_wb)
    bm = jax.random.uniform(kbm, (N_OUTPUTS,), jnp.float32, -head_bb, head_bb)
    ws = jax.random.uniform(kws, (N_OUTPUTS, N_OUTPUTS), jnp.float32, -head_wb, head_wb)
    bs = jax.random.uniform(kbs, (N_OUTPUTS,), jnp.float32, -head_bb, head_bb)
    return seq_w, seq_b, wm, bm, ws, bs


def pack_params(seq_w, seq_b, wm, bm, ws, bs):
    """Coalesce all linear layers into 2 zero-padded slabs (1-2 DMAs total).

    Slot t < N_SEQ : sequential layer t.
    Slot N_SEQ     : fused heads, columns [0:8]=mean, [8:16]=std (pre-softplus).
    Zero padding is exact: padded activation columns stay tanh(0)=0 and padded
    weight rows / bias entries contribute nothing.
    """
    w_slab = jnp.zeros((N_MATS, HPAD, HPAD), jnp.float32)
    b_slab = jnp.zeros((N_MATS, 1, HPAD), jnp.float32)
    for t, (w, b) in enumerate(zip(seq_w, seq_b)):
        w_slab = w_slab.at[t, : w.shape[0], : w.shape[1]].set(w)
        b_slab = b_slab.at[t, 0, : b.shape[0]].set(b)
    w_head = jnp.concatenate([wm, ws], axis=1)           # (8, 16)
    b_head = jnp.concatenate([bm, bs], axis=0)           # (16,)
    w_slab = w_slab.at[N_SEQ, :N_OUTPUTS, : 2 * N_OUTPUTS].set(w_head)
    b_slab = b_slab.at[N_SEQ, 0, : 2 * N_OUTPUTS].set(b_head)
    return w_slab, b_slab


def resnet_reference(x, seq_w, seq_b, wm, bm, ws, bs):
    """Pure-JAX reference mirroring the PyTorch forward."""
    h_pre = jnp.tanh(x @ seq_w[0] + seq_b[0])
    h_curr = jnp.tanh(h_pre @ seq_w[1] + seq_b[1])
    h = h_curr
    for t in range(2, N_SEQ):
        h = jnp.tanh((h_pre + h_curr) @ seq_w[t] + seq_b[t])
        h_pre, h_curr = h_curr, h
    mu = h @ wm + bm
    sigma = jax.nn.softplus(h @ ws + bs) + EPSILON
    return mu, sigma


if __name__ == "__main__":
    root = jax.random.PRNGKey(0)
    kx, kp = jax.random.split(root)
    x = jax.random.normal(kx, (BATCH, N_INPUTS), jnp.float32)
    raw_params = make_params(kp)
    w_slab, b_slab = pack_params(*raw_params)

    mu, sigma = resnet_forward(x, w_slab, b_slab)
    jax.block_until_ready((mu, sigma))

    mu_ref, sigma_ref = resnet_reference(x, *raw_params)
    assert mu.shape == (BATCH, N_OUTPUTS) and sigma.shape == (BATCH, N_OUTPUTS)
    assert jnp.allclose(mu, mu_ref, atol=2e-5, rtol=2e-5)
    assert jnp.allclose(sigma, sigma_ref, atol=2e-5, rtol=2e-5)
    assert bool(jnp.all(sigma > 0))

    print("KERNEL_OK")
</pallas_src>

<mosaic_0001>
module attributes {stable_mosaic.version = 11 : i64} {
  func.func @resnet_kernel(%arg0: i32, %arg1: memref<512x16xf32, #tpu.memory_space<vmem>>, %arg2: memref<5x32x32xf32, #tpu.memory_space<vmem>>, %arg3: memref<5x1x32xf32, #tpu.memory_space<vmem>>, %arg4: memref<512x16xf32, #tpu.memory_space<vmem>>) attributes {dimension_semantics = [#tpu.dimension_semantics<parallel>], iteration_bounds = array<i64: 4>, scalar_prefetch = 0 : i64, scratch_operands = 0 : i64, tpu.core_type = #tpu.core_type<tc>, window_params = [{transform_indices = @transform_0, window_bounds = array<i64: 512, 16>}, {pipeline_mode = #tpu.pipeline_mode<synchronous>, transform_indices = @transform_1, window_bounds = array<i64: 5, 32, 32>}, {pipeline_mode = #tpu.pipeline_mode<synchronous>, transform_indices = @transform_2, window_bounds = array<i64: 5, 1, 32>}, {transform_indices = @transform_3, window_bounds = array<i64: 512, 16>}]} {
    %c0 = arith.constant 0 : index
    %c0_0 = arith.constant 0 : index
    %0 = vector.load %arg1[%c0, %c0_0] : memref<512x16xf32, #tpu.memory_space<vmem>>, vector<512x16xf32>
    %c0_1 = arith.constant 0 : index
    %c0_2 = arith.constant 0 : index
    %c0_3 = arith.constant 0 : index
    %1 = vector.load %arg2[%c0_1, %c0_2, %c0_3] : memref<5x32x32xf32, #tpu.memory_space<vmem>>, vector<1x16x32xf32>
    %2 = vector.shape_cast %1 : vector<1x16x32xf32> to vector<16x32xf32>
    %c0_4 = arith.constant 0 : index
    %c0_5 = arith.constant 0 : index
    %c0_6 = arith.constant 0 : index
    %3 = vector.load %arg3[%c0_4, %c0_5, %c0_6] : memref<5x1x32xf32, #tpu.memory_space<vmem>>, vector<1x1x32xf32>
    %4 = vector.shape_cast %3 : vector<1x1x32xf32> to vector<1x32xf32>
    %cst = arith.constant dense<0.000000e+00> : vector<512x32xf32>
    %5 = tpu.matmul %0, %2, %cst {dimension_numbers = #tpu.dot_dimension_numbers<[1], [0], [0], [1], [0, 0, 1, 1], [], []>} : vector<512x16xf32>, vector<16x32xf32>, vector<512x32xf32> -> vector<512x32xf32>
    %6 = vector.broadcast %4 : vector<1x32xf32> to vector<512x32xf32>
    %7 = arith.addf %5, %6 : vector<512x32xf32>
    %8 = math.tanh %7 : vector<512x32xf32>
    %c1 = arith.constant 1 : index
    %c0_7 = arith.constant 0 : index
    %c0_8 = arith.constant 0 : index
    %9 = vector.load %arg2[%c1, %c0_7, %c0_8] : memref<5x32x32xf32, #tpu.memory_space<vmem>>, vector<1x32x32xf32>
    %10 = vector.shape_cast %9 : vector<1x32x32xf32> to vector<32x32xf32>
    %c1_9 = arith.constant 1 : index
    %c0_10 = arith.constant 0 : index
    %c0_11 = arith.constant 0 : index
    %11 = vector.load %arg3[%c1_9, %c0_10, %c0_11] : memref<5x1x32xf32, #tpu.memory_space<vmem>>, vector<1x1x32xf32>
    %12 = vector.shape_cast %11 : vector<1x1x32xf32> to vector<1x32xf32>
    %cst_12 = arith.constant dense<0.000000e+00> : vector<512x32xf32>
    %13 = tpu.matmul %8, %10, %cst_12 {dimension_numbers = #tpu.dot_dimension_numbers<[1], [0], [0], [1], [0, 0, 1, 1], [], []>} : vector<512x32xf32>, vector<32x32xf32>, vector<512x32xf32> -> vector<512x32xf32>
    %14 = vector.broadcast %12 : vector<1x32xf32> to vector<512x32xf32>
    %15 = arith.addf %13, %14 : vector<512x32xf32>
    %16 = math.tanh %15 : vector<512x32xf32>
    %17 = arith.addf %8, %16 : vector<512x32xf32>
    %c2 = arith.constant 2 : index
    %c0_13 = arith.constant 0 : index
    %c0_14 = arith.constant 0 : index
    %18 = vector.load %arg2[%c2, %c0_13, %c0_14] : memref<5x32x32xf32, #tpu.memory_space<vmem>>, vector<1x32x32xf32>
    %19 = vector.shape_cast %18 : vector<1x32x32xf32> to vector<32x32xf32>
    %c2_15 = arith.constant 2 : index
    %c0_16 = arith.constant 0 : index
    %c0_17 = arith.constant 0 : index
    %20 = vector.load %arg3[%c2_15, %c0_16, %c0_17] : memref<5x1x32xf32, #tpu.memory_space<vmem>>, vector<1x1x32xf32>
    %21 = vector.shape_cast %20 : vector<1x1x32xf32> to vector<1x32xf32>
    %cst_18 = arith.constant dense<0.000000e+00> : vector<512x32xf32>
    %22 = tpu.matmul %17, %19, %cst_18 {dimension_numbers = #tpu.dot_dimension_numbers<[1], [0], [0], [1], [0, 0, 1, 1], [], []>} : vector<512x32xf32>, vector<32x32xf32>, vector<512x32xf32> -> vector<512x32xf32>
    %23 = vector.broadcast %21 : vector<1x32xf32> to vector<512x32xf32>
    %24 = arith.addf %22, %23 : vector<512x32xf32>
    %25 = math.tanh %24 : vector<512x32xf32>
    %26 = arith.addf %16, %25 : vector<512x32xf32>
    %c3 = arith.constant 3 : index
    %c0_19 = arith.constant 0 : index
    %c0_20 = arith.constant 0 : index
    %27 = vector.load %arg2[%c3, %c0_19, %c0_20] : memref<5x32x32xf32, #tpu.memory_space<vmem>>, vector<1x32x32xf32>
    %28 = vector.shape_cast %27 : vector<1x32x32xf32> to vector<32x32xf32>
    %c3_21 = arith.constant 3 : index
    %c0_22 = arith.constant 0 : index
    %c0_23 = arith.constant 0 : index
    %29 = vector.load %arg3[%c3_21, %c0_22, %c0_23] : memref<5x1x32xf32, #tpu.memory_space<vmem>>, vector<1x1x32xf32>
    %30 = vector.shape_cast %29 : vector<1x1x32xf32> to vector<1x32xf32>
    %cst_24 = arith.constant dense<0.000000e+00> : vector<512x32xf32>
    %31 = tpu.matmul %26, %28, %cst_24 {dimension_numbers = #tpu.dot_dimension_numbers<[1], [0], [0], [1], [0, 0, 1, 1], [], []>} : vector<512x32xf32>, vector<32x32xf32>, vector<512x32xf32> -> vector<512x32xf32>
    %32 = vector.broadcast %30 : vector<1x32xf32> to vector<512x32xf32>
    %33 = arith.addf %31, %32 : vector<512x32xf32>
    %34 = math.tanh %33 : vector<512x32xf32>
    %c4 = arith.constant 4 : index
    %c0_25 = arith.constant 0 : index
    %c0_26 = arith.constant 0 : index
    %35 = vector.load %arg2[%c4, %c0_25, %c0_26] : memref<5x32x32xf32, #tpu.memory_space<vmem>>, vector<1x32x32xf32>
    %36 = vector.shape_cast %35 : vector<1x32x32xf32> to vector<32x32xf32>
    %c4_27 = arith.constant 4 : index
    %c0_28 = arith.constant 0 : index
    %c0_29 = arith.constant 0 : index
    %37 = vector.load %arg3[%c4_27, %c0_28, %c0_29] : memref<5x1x32xf32, #tpu.memory_space<vmem>>, vector<1x1x32xf32>
    %38 = vector.shape_cast %37 : vector<1x1x32xf32> to vector<1x32xf32>
    %cst_30 = arith.constant dense<0.000000e+00> : vector<512x32xf32>
    %39 = tpu.matmul %34, %36, %cst_30 {dimension_numbers = #tpu.dot_dimension_numbers<[1], [0], [0], [1], [0, 0, 1, 1], [], []>} : vector<512x32xf32>, vector<32x32xf32>, vector<512x32xf32> -> vector<512x32xf32>
    %40 = vector.broadcast %38 : vector<1x32xf32> to vector<512x32xf32>
    %41 = arith.addf %39, %40 : vector<512x32xf32>
    %42 = tpu.iota {dimensions = array<i32: 1>} : vector<512x32xi32>
    %c8_i32 = arith.constant 8 : i32
    %43 = vector.broadcast %c8_i32 : i32 to vector<512x32xi32>
    %44 = arith.cmpi slt, %42, %43 : vector<512x32xi32>
    %cst_31 = arith.constant 0.000000e+00 : f32
    %45 = vector.broadcast %cst_31 : f32 to vector<512x32xf32>
    %46 = arith.maximumf %41, %45 : vector<512x32xf32>
    %47 = vector.broadcast %cst_31 : f32 to vector<512x32xf32>
    %48 = arith.subf %41, %47 : vector<512x32xf32>
    %49 = arith.cmpf one, %48, %48 : vector<512x32xf32>
    %50 = vector.broadcast %cst_31 : f32 to vector<512x32xf32>
    %51 = arith.addf %41, %50 : vector<512x32xf32>
    %52 = math.absf %48 : vector<512x32xf32>
    %cst_32 = arith.constant 0.000000e+00 : f32
    %53 = vector.broadcast %cst_32 : f32 to vector<512x32xf32>
    %54 = arith.subf %53, %52 : vector<512x32xf32>
    %55 = math.exp %54 : vector<512x32xf32>
    %56 = math.log1p %55 : vector<512x32xf32>
    %57 = arith.addf %46, %56 : vector<512x32xf32>
    %58 = arith.select %49, %51, %57 : vector<512x32xi1>, vector<512x32xf32>
    %cst_33 = arith.constant 9.99999974E-5 : f32
    %59 = vector.broadcast %cst_33 : f32 to vector<512x32xf32>
    %60 = arith.addf %58, %59 : vector<512x32xf32>
    %61 = arith.select %44, %41, %60 : vector<512x32xi1>, vector<512x32xf32>
    %62 = vector.extract_strided_slice %61 {offsets = [0, 0], sizes = [512, 16], strides = [1, 1]} : vector<512x32xf32> to vector<512x16xf32>
    %c0_34 = arith.constant 0 : index
    %c0_35 = arith.constant 0 : index
    %63 = vector.load %arg4[%c0_34, %c0_35] : memref<512x16xf32, #tpu.memory_space<vmem>>, vector<512x16xf32>
    tpu.vector_store %arg4[%c0_34, %c0_35], %62 {strides = array<i32>} : memref<512x16xf32, #tpu.memory_space<vmem>>, vector<512x16xf32>,
    return
  }
  func.func @transform_0(%arg0: i32) -> (i32, i32) {
    %c0_i32 = arith.constant 0 : i32
    %c0_i32_0 = arith.constant 0 : i32
    return %arg0, %c0_i32 : i32, i32
  }
  func.func @transform_1(%arg0: i32) -> (i32, i32, i32) {
    %c0_i32 = arith.constant 0 : i32
    %c0_i32_0 = arith.constant 0 : i32
    %c0_i32_1 = arith.constant 0 : i32
    %c0_i32_2 = arith.constant 0 : i32
    return %c0_i32, %c0_i32_0, %c0_i32_1 : i32, i32, i32
  }
  func.func @transform_2(%arg0: i32) -> (i32, i32, i32) {
    %c0_i32 = arith.constant 0 : i32
    %c0_i32_0 = arith.constant 0 : i32
    %c0_i32_1 = arith.constant 0 : i32
    %c0_i32_2 = arith.constant 0 : i32
    return %c0_i32, %c0_i32_0, %c0_i32_1 : i32, i32, i32
  }
  func.func @transform_3(%arg0: i32) -> (i32, i32) {
    %c0_i32 = arith.constant 0 : i32
    %c0_i32_0 = arith.constant 0 : i32
    return %arg0, %c0_i32 : i32, i32
  }
}

</mosaic_0001>

<llo_original>
// kernel: tpu_custom_call.1
$region0: #{tpu_custom_call.1}
  #allocation0 [shape = 'u32[]', space=smem, size = 0x4, offset = 0x4, fixed_abs, tag = 'smem constant byte address 0x4 - core index']
  #allocation1 [shape = 'u32[144,128]{1,0:T(1,128)}', space=vmem, size = 0x12000, scoped, tag = 'internal scratch']
  %s0 = inlined_call_operand.vmem [shape: f32[2048,16], index: 0, kind: input, shape index: {}]
  %s1 = inlined_call_operand.vmem [shape: f32[5,32,32], index: 1, kind: input, shape index: {}]
  %s2 = inlined_call_operand.vmem [shape: f32[5,1,32], index: 2, kind: input, shape index: {}]
  %s3 = inlined_call_operand.vmem [shape: f32[2048,16], index: 3, kind: output, shape index: {}]
  %s4 = sld [smem:[#allocation0]]
  $region45: #{tpu_custom_call.1} parent=0
    _
  %s6 = ssub.s32 1, %s4
  %s7 = scalar_select 0, %s6, %s4
  loop: start=0, step=1, limit=6
  $region2: #{tpu_custom_call.1} parent=0 // loop_pre_header
    _
  $region3: #{tpu_custom_call.1} parent=0 // loop_header
    %s9 = sphi 0, %s13
    %p10 = scmp.ge.s32.totalorder %s9, 6
    %s19 = sphi 0, %s21
    %s22 = sphi 0, %s19
    %s23 = sphi 0, %s22
    %s39 = sphi 0, %s23
    %s43 = sphi 0, %s43
    %s45 = sphi 0, %s43
    %s46 = sphi 0, %s45
    %s60 = sphi 0, %s46
    %s64 = sphi 0, %s64
    %s66 = sphi 0, %s64
    %s67 = sphi 0, %s66
    %s81 = sphi 0, %s67
    %s87 = sphi 0, %s89
    %s90 = sphi 0, %s87
    %s91 = sphi 0, %s90
    %s107 = sphi 0, %s91
  $region4: #{tpu_custom_call.1} parent=0 // loop_header_branch
    %12 = sbr.rel (%p10) target = $region8
  $region5: #{tpu_custom_call.1} parent=0 // loop_body
    %s14 = ssub.s32 %s9, 1
    %s15 = ssub.s32 %s9, 2
    %s16 = sadd.s32 %s9, 1
    %s17 = ssub.s32 %s9, %s16
    %p18 = scmp.eq.s32.totalorder %s17, 0
    %s20 = sadd.s32 %s19, 1
    %s21 = scalar_select %p18, %s19, %s20
    %p24 = pneg %p18
    %p25 = scmp.eq.s32.totalorder %s9, 3
    %p26 = por %p24, %p25
    %p27 = scmp.ne.s32.totalorder %s19, %s22
    %p28 = scmp.eq.s32.totalorder %s9, 0
    %p29 = por %p27, %p28
    %p30 = scmp.ne.s32.totalorder %s19, %s22
    %p31 = scmp.eq.s32.totalorder %s14, 3
    %p32 = por %p30, %p31
    %p33 = scmp.ne.s32.totalorder %s22, %s23
    %p34 = scmp.eq.s32.totalorder %s14, 0
    %p35 = por %p33, %p34
    %p36 = scmp.ne.s32.totalorder %s22, %s23
    %p37 = scmp.eq.s32.totalorder %s15, 3
    %p38 = por %p36, %p37
    %p40 = scmp.ne.s32.totalorder %s23, %s39
    %p41 = scmp.eq.s32.totalorder %s15, 0
    %p42 = por %p40, %p41
    %s44 = sadd.s32 %s43, 1
    %p47 = scmp.eq.s32.totalorder %s9, 3
    %p48 = scmp.ne.s32.totalorder %s43, %s45
    %p49 = scmp.eq.s32.totalorder %s9, 0
    %p50 = por %p48, %p49
    %p51 = scmp.ne.s32.totalorder %s43, %s45
    %p52 = scmp.eq.s32.totalorder %s14, 3
    %p53 = por %p51, %p52
    %p54 = scmp.ne.s32.totalorder %s45, %s46
    %p55 = scmp.eq.s32.totalorder %s14, 0
    %p56 = por %p54, %p55
    %p57 = scmp.ne.s32.totalorder %s45, %s46
    %p58 = scmp.eq.s32.totalorder %s15, 3
    %p59 = por %p57, %p58
    %p61 = scmp.ne.s32.totalorder %s46, %s60
    %p62 = scmp.eq.s32.totalorder %s15, 0
    %p63 = por %p61, %p62
    %s65 = sadd.s32 %s64, 1
    %p68 = scmp.eq.s32.totalorder %s9, 3
    %p69 = scmp.ne.s32.totalorder %s64, %s66
    %p70 = scmp.eq.s32.totalorder %s9, 0
    %p71 = por %p69, %p70
    %p72 = scmp.ne.s32.totalorder %s64, %s66
    %p73 = scmp.eq.s32.totalorder %s14, 3
    %p74 = por %p72, %p73
    %p75 = scmp.ne.s32.totalorder %s66, %s67
    %p76 = scmp.eq.s32.totalorder %s14, 0
    %p77 = por %p75, %p76
    %p78 = scmp.ne.s32.totalorder %s66, %s67
    %p79 = scmp.eq.s32.totalorder %s15, 3
    %p80 = por %p78, %p79
    %p82 = scmp.ne.s32.totalorder %s67, %s81
    %p83 = scmp.eq.s32.totalorder %s15, 0
    %p84 = por %p82, %p83
    %s85 = ssub.s32 %s9, %s16
    %p86 = scmp.eq.s32.totalorder %s85, 0
    %s88 = sadd.s32 %s87, 1
    %s89 = scalar_select %p86, %s87, %s88
    %p92 = pneg %p86
    %p93 = scmp.eq.s32.totalorder %s9, 3
    %p94 = por %p92, %p93
    %p95 = scmp.ne.s32.totalorder %s87, %s90
    %p96 = scmp.eq.s32.totalorder %s9, 0
    %p97 = por %p95, %p96
    %p98 = scmp.ne.s32.totalorder %s87, %s90
    %p99 = scmp.eq.s32.totalorder %s14, 3
    %p100 = por %p98, %p99
    %p101 = scmp.ne.s32.totalorder %s90, %s91
    %p102 = scmp.eq.s32.totalorder %s14, 0
    %p103 = por %p101, %p102
    %p104 = scmp.ne.s32.totalorder %s90, %s91
    %p105 = scmp.eq.s32.totalorder %s15, 3
    %p106 = por %p104, %p105
    %p108 = scmp.ne.s32.totalorder %s91, %s107
    %p109 = scmp.eq.s32.totalorder %s15, 0
    %p110 = por %p108, %p109
    %p111 = scmp.le.s32.totalorder 1, %s9
    %p112 = scmp.lt.s32.totalorder %s9, 5
    %p113 = pnand %p111, %p112
    %p114 = pneg %p113
    // Predicated region
    $region9: #{tpu_custom_call.1} parent=5 // pred_check
      _
    $region10: #{tpu_custom_call.1} parent=5 // pred_check_branch
      %116 = sbr.rel (%p113) target = $region12
    $region11: #{tpu_custom_call.1} parent=5 // pred_region
      %s117 = ssub.s32 %s9, 1
      // Predicated region
      $region13: #{tpu_custom_call.1} parent=11 // pred_check
        %p118 = pneg %p56
      $region14: #{tpu_custom_call.1} parent=11 // pred_check_branch
        %120 = sbr.rel (%p118) target = $region16
      $region15: #{tpu_custom_call.1} parent=11 // pred_region
        _
      $region16: #{tpu_custom_call.1} parent=11 // pred_fallthru
        _
      // Predicated region
      $region17: #{tpu_custom_call.1} parent=11 // pred_check
        %p121 = pneg %p77
      $region18: #{tpu_custom_call.1} parent=11 // pred_check_branch
        %123 = sbr.rel (%p121) target = $region20
      $region19: #{tpu_custom_call.1} parent=11 // pred_region
        _
      $region20: #{tpu_custom_call.1} parent=11 // pred_fallthru
        _
    $region12: #{tpu_custom_call.1} parent=5 // pred_fallthru
      _
    %p124 = scmp.lt.s32.totalorder %s9, 4
    // Predicated region
    $region21: #{tpu_custom_call.1} parent=5 // pred_check
      %p125 = pneg %p124
    $region22: #{tpu_custom_call.1} parent=5 // pred_check_branch
      %127 = sbr.rel (%p125) target = $region24
    $region23: #{tpu_custom_call.1} parent=5 // pred_region
      // Predicated region
      $region25: #{tpu_custom_call.1} parent=23 // pred_check
        %p128 = pneg %p29
      $region26: #{tpu_custom_call.1} parent=23 // pred_check_branch
        %130 = sbr.rel (%p128) target = $region28
      $region27: #{tpu_custom_call.1} parent=23 // pred_region
        %s131 = smul.u32 64, %s9
        %p132 = scmp.lt.s32.totalorder %s131, 255
        %s133 = scalar_select %p132, %s131, 255
        %s134 = smul.addr %s133, 8
        %s135 = scalar_lea.vmem %s0, %s134
        %s136 = smul.u32 64, %s9
      $region28: #{tpu_custom_call.1} parent=23 // pred_fallthru
        _
    $region24: #{tpu_custom_call.1} parent=5 // pred_fallthru
      _
    %p137 = scmp.le.s32.totalorder 1, %s9
    %p138 = scmp.lt.s32.totalorder %s9, 5
    %p139 = pnand %p137, %p138
    %p140 = pneg %p139
    // Predicated region
    $region29: #{tpu_custom_call.1} parent=5 // pred_check
      _
    $region30: #{tpu_custom_call.1} parent=5 // pred_check_branch
      %142 = sbr.rel (%p139) target = $region32
    $region31: #{tpu_custom_call.1} parent=5 // pred_region
      %s143 = ssub.s32 %s9, 1
      %s144 = smul.u32 64, %s14
      %p145 = scmp.lt.s32.totalorder %s144, 255
      %s146 = scalar_select %p145, %s144, 255
      %s147 = smul.addr %s146, 8
      %s148 = scalar_lea.vmem %s0, %s147
      %p149 = pneg %p35
      %p150 = pneg %p32
      %p151 = pneg %p56
      %p152 = pneg %p53
      %p153 = pneg %p77
      %p154 = pneg %p74
      %p155 = pneg %p103
      %p156 = pneg %p100
      %s157 = smul.u32 64, %s14
      %p158 = scmp.lt.s32.totalorder %s157, 255
      %s159 = scalar_select %p158, %s157, 255
      %s160 = smul.addr %s159, 8
      %s161 = scalar_lea.vmem %s3, %s160
      %s162 = smul.u32 64, %s14
      %p163 = scmp.lt.s32.totalorder %s162, 255
      %s164 = scalar_select %p163, %s162, 255
      %s165 = smul.addr %s164, 8
      %s166 = scalar_lea.vmem %s0, %s165
      %s167 = smul.u32 64, %s14
      %s168 = smul.u32 64, %s14
      %p169 = scmp.lt.s32.totalorder %s168, 255
      %s170 = scalar_select %p169, %s168, 255
      %s171 = smul.addr %s170, 8
      %s172 = scalar_lea.vmem %s3, %s171
      %s173 = smul.u32 64, %s14
      %v174 = vld [vmem:[%s166] sm:$0xff]
      %v175 = vld [vmem:[%s166 + $0x8] sm:$0xff]
      %v176 = vld [vmem:[%s166 + $0x10] sm:$0xff]
      %v177 = vld [vmem:[%s166 + $0x18] sm:$0xff]
      %v178 = vld [vmem:[%s166 + $0x20] sm:$0xff]
      %v179 = vld [vmem:[%s166 + $0x28] sm:$0xff]
      %v180 = vld [vmem:[%s166 + $0x30] sm:$0xff]
      %v181 = vld [vmem:[%s166 + $0x38] sm:$0xff]
      %v182 = vld [vmem:[%s166 + $0x40] sm:$0xff]
      %v183 = vld [vmem:[%s166 + $0x48] sm:$0xff]
      %v184 = vld [vmem:[%s166 + $0x50] sm:$0xff]
      %v185 = vld [vmem:[%s166 + $0x58] sm:$0xff]
      %v186 = vld [vmem:[%s166 + $0x60] sm:$0xff]
      %v187 = vld [vmem:[%s166 + $0x68] sm:$0xff]
      %v188 = vld [vmem:[%s166 + $0x70] sm:$0xff]
      %v189 = vld [vmem:[%s166 + $0x78] sm:$0xff]
      %v190 = vld [vmem:[%s166 + $0x80] sm:$0xff]
      %v191 = vld [vmem:[%s166 + $0x88] sm:$0xff]
      %v192 = vld [vmem:[%s166 + $0x90] sm:$0xff]
      %v193 = vld [vmem:[%s166 + $0x98] sm:$0xff]
      %v194 = vld [vmem:[%s166 + $0xa0] sm:$0xff]
      %v195 = vld [vmem:[%s166 + $0xa8] sm:$0xff]
      %v196 = vld [vmem:[%s166 + $0xb0] sm:$0xff]
      %v197 = vld [vmem:[%s166 + $0xb8] sm:$0xff]
      %v198 = vld [vmem:[%s166 + $0xc0] sm:$0xff]
      %v199 = vld [vmem:[%s166 + $0xc8] sm:$0xff]
      %v200 = vld [vmem:[%s166 + $0xd0] sm:$0xff]
      %v201 = vld [vmem:[%s166 + $0xd8] sm:$0xff]
      %v202 = vld [vmem:[%s166 + $0xe0] sm:$0xff]
      %v203 = vld [vmem:[%s166 + $0xe8] sm:$0xff]
      %v204 = vld [vmem:[%s166 + $0xf0] sm:$0xff]
      %v205 = vld [vmem:[%s166 + $0xf8] sm:$0xff]
      %v206 = vld [vmem:[%s166 + $0x100] sm:$0xff]
      %v207 = vld [vmem:[%s166 + $0x108] sm:$0xff]
      %v208 = vld [vmem:[%s166 + $0x110] sm:$0xff]
      %v209 = vld [vmem:[%s166 + $0x118] sm:$0xff]
      %v210 = vld [vmem:[%s166 + $0x120] sm:$0xff]
      %v211 = vld [vmem:[%s166 + $0x128] sm:$0xff]
      %v212 = vld [vmem:[%s166 + $0x130] sm:$0xff]
      %v213 = vld [vmem:[%s166 + $0x138] sm:$0xff]
      %v214 = vld [vmem:[%s166 + $0x140] sm:$0xff]
      %v215 = vld [vmem:[%s166 + $0x148] sm:$0xff]
      %v216 = vld [vmem:[%s166 + $0x150] sm:$0xff]
      %v217 = vld [vmem:[%s166 + $0x158] sm:$0xff]
      %v218 = vld [vmem:[%s166 + $0x160] sm:$0xff]
      %v219 = vld [vmem:[%s166 + $0x168] sm:$0xff]
      %v220 = vld [vmem:[%s166 + $0x170] sm:$0xff]
      %v221 = vld [vmem:[%s166 + $0x178] sm:$0xff]
      %v222 = vld [vmem:[%s166 + $0x180] sm:$0xff]
      %v223 = vld [vmem:[%s166 + $0x188] sm:$0xff]
      %v224 = vld [vmem:[%s166 + $0x190] sm:$0xff]
      %v225 = vld [vmem:[%s166 + $0x198] sm:$0xff]
      %v226 = vld [vmem:[%s166 + $0x1a0] sm:$0xff]
      %v227 = vld [vmem:[%s166 + $0x1a8] sm:$0xff]
      %v228 = vld [vmem:[%s166 + $0x1b0] sm:$0xff]
      %v229 = vld [vmem:[%s166 + $0x1b8] sm:$0xff]
      %v230 = vld [vmem:[%s166 + $0x1c0] sm:$0xff]
      %v231 = vld [vmem:[%s166 + $0x1c8] sm:$0xff]
      %v232 = vld [vmem:[%s166 + $0x1d0] sm:$0xff]
      %v233 = vld [vmem:[%s166 + $0x1d8] sm:$0xff]
      %v234 = vld [vmem:[%s166 + $0x1e0] sm:$0xff]
      %v235 = vld [vmem:[%s166 + $0x1e8] sm:$0xff]
      %v236 = vld [vmem:[%s166 + $0x1f0] sm:$0xff]
      %v237 = vld [vmem:[%s166 + $0x1f8] sm:$0xff]
      %v238 = vld [vmem:[%s1] sm:$0xff]
      %v239 = vld [vmem:[%s1 + $0x8] sm:$0xff]
      %v240 = vld [vmem:[%s2] sm:$0x1]
      %v242 = vlaneseq
      %v243 = vshrl.u32 %v242, 7
      %v244 = vsub.s32 0, %v243
      %v245 = vrot.slane %v240, %v244
      %vm247 = vcmask 130048
      %v249 = vsel %vm247, %v174, 0
      %v252 = vsel %vm247, %v175, 0
      %v255 = vsel %vm247, %v176, 0
      %v258 = vsel %vm247, %v177, 0
      %v261 = vsel %vm247, %v178, 0
      %v264 = vsel %vm247, %v179, 0
      %v267 = vsel %vm247, %v180, 0
      %v270 = vsel %vm247, %v181, 0
      %v273 = vsel %vm247, %v182, 0
      %v276 = vsel %vm247, %v183, 0
      %v279 = vsel %vm247, %v184, 0
      %v282 = vsel %vm247, %v185, 0
      %v285 = vsel %vm247, %v186, 0
      %v288 = vsel %vm247, %v187, 0
      %v291 = vsel %vm247, %v188, 0
      %v294 = vsel %vm247, %v189, 0
      %v297 = vsel %vm247, %v190, 0
      %v300 = vsel %vm247, %v191, 0
      %v303 = vsel %vm247, %v192, 0
      %v306 = vsel %vm247, %v193, 0
      %v309 = vsel %vm247, %v194, 0
      %v312 = vsel %vm247, %v195, 0
      %v315 = vsel %vm247, %v196, 0
      %v318 = vsel %vm247, %v197, 0
      %v321 = vsel %vm247, %v198, 0
      %v324 = vsel %vm247, %v199, 0
      %v327 = vsel %vm247, %v200, 0
      %v330 = vsel %vm247, %v201, 0
      %v333 = vsel %vm247, %v202, 0
      %v336 = vsel %vm247, %v203, 0
      %v339 = vsel %vm247, %v204, 0
      %v342 = vsel %vm247, %v205, 0
      %v345 = vsel %vm247, %v206, 0
      %v348 = vsel %vm247, %v207, 0
      %v351 = vsel %vm247, %v208, 0
      %v354 = vsel %vm247, %v209, 0
      %v357 = vsel %vm247, %v210, 0
      %v360 = vsel %vm247, %v211, 0
      %v363 = vsel %vm247, %v212, 0
      %v366 = vsel %vm247, %v213, 0
      %v369 = vsel %vm247, %v214, 0
      %v372 = vsel %vm247, %v215, 0
      %v375 = vsel %vm247, %v216, 0
      %v378 = vsel %vm247, %v217, 0
      %v381 = vsel %vm247, %v218, 0
      %v384 = vsel %vm247, %v219, 0
      %v387 = vsel %vm247, %v220, 0
      %v390 = vsel %vm247, %v221, 0
      %v393 = vsel %vm247, %v222, 0
      %v396 = vsel %vm247, %v223, 0
      %v399 = vsel %vm247, %v224, 0
      %v402 = vsel %vm247, %v225, 0
      %v405 = vsel %vm247, %v226, 0
      %v408 = vsel %vm247, %v227, 0
      %v411 = vsel %vm247, %v228, 0
      %v414 = vsel %vm247, %v229, 0
      %v417 = vsel %vm247, %v230, 0
      %v420 = vsel %vm247, %v231, 0
      %v423 = vsel %vm247, %v232, 0
      %v426 = vsel %vm247, %v233, 0
      %v429 = vsel %vm247, %v234, 0
      %v432 = vsel %vm247, %v235, 0
      %v435 = vsel %vm247, %v236, 0
      %v438 = vsel %vm247, %v237, 0
      %440 = vmatprep.subr.mxu0 0.0
      %441 = vmatpush1.msra.mxu0 %v238
      %442 = vmatprep.subr.mxu0 0.0
      %443 = vmatpush1.msra.mxu0 %v239
      %444 = vmatprep.subr.mxu0 0.0
      %445 = vmatpush1.msra.mxu0 0.0
      %446 = vmatprep.subr.mxu0 0.0
      %447 = vmatpush1.msra.mxu0 0.0
      %448 = vmatprep.subr.mxu0 0.0
      %449 = vmatpush1.msra.mxu0 0.0
      %450 = vmatprep.subr.mxu0 0.0
      %451 = vmatpush1.msra.mxu0 0.0
      %452 = vmatprep.subr.mxu0 0.0
      %453 = vmatpush1.msra.mxu0 0.0
      %454 = vmatprep.subr.mxu0 0.0
      %455 = vmatpush1.msra.mxu0 0.0
      %456 = vmatprep.subr.mxu0 0.0
      %457 = vmatpush1.msra.mxu0 0.0
      %458 = vmatprep.subr.mxu0 0.0
      %459 = vmatpush1.msra.mxu0 0.0
      %460 = vmatprep.subr.mxu0 0.0
      %461 = vmatpush1.msra.mxu0 0.0
      %462 = vmatprep.subr.mxu0 0.0
      %463 = vmatpush1.msra.mxu0 0.0
      %464 = vmatprep.subr.mxu0 0.0
      %465 = vmatpush1.msra.mxu0 0.0
      %466 = vmatprep.subr.mxu0 0.0
      %467 = vmatpush1.msra.mxu0 0.0
      %468 = vmatprep.subr.mxu0 0.0
      %469 = vmatpush1.msra.mxu0 0.0
      %470 = vmatprep.subr.mxu0 0.0
      %471 = vmatpush1.msra.mxu0 0.0
      %472 = vmatprep.subr.mxu0 0.0
      %473 = vmatpush1.msra.mxu0 0.0
      %474 = vmatprep.subr.mxu0 0.0
      %475 = vmatpush1.msra.mxu0 0.0
      %476 = vmatprep.subr.mxu0 0.0
      %477 = vmatpush1.msra.mxu0 0.0
      %478 = vmatprep.subr.mxu0 0.0
      %479 = vmatpush1.msra.mxu0 0.0
      %480 = vmatprep.subr.mxu0 0.0
      %481 = vmatpush1.msra.mxu0 0.0
      %482 = vmatprep.subr.mxu0 0.0
      %483 = vmatpush1.msra.mxu0 0.0
      %484 = vmatprep.subr.mxu0 0.0
      %485 = vmatpush1.msra.mxu0 0.0
      %486 = vmatprep.subr.mxu0 0.0
      %487 = vmatpush1.msra.mxu0 0.0
      %488 = vmatprep.subr.mxu0 0.0
      %489 = vmatpush1.msra.mxu0 0.0
      %490 = vmatprep.subr.mxu0 0.0
      %491 = vmatpush1.msra.mxu0 0.0
      %492 = vmatprep.subr.mxu0 0.0
      %493 = vmatpush1.msra.mxu0 0.0
      %494 = vmatprep.subr.mxu0 0.0
      %495 = vmatpush1.msra.mxu0 0.0
      %496 = vmatprep.subr.mxu0 0.0
      %497 = vmatpush1.msra.mxu0 0.0
      %498 = vmatprep.subr.mxu0 0.0
      %499 = vmatpush1.msra.mxu0 0.0
      %500 = vmatprep.subr.mxu0 0.0
      %501 = vmatpush1.msra.mxu0 0.0
      %502 = vmatprep.subr.mxu0 0.0
      %503 = vmatpush1.msra.mxu0 0.0
      %504 = vmatprep.mubr.f32.mxu0 0.0
      %505 = vmatmul.mubr.f32.gmra.mrb[0].mxu0 %v249
      %v506 = vpop.f32.mrb[0].mxu0
      %v507 = vadd.f32 %v245, %v506
      %v508 = vpop.f32.mrb[0].mxu0
      %509 = vmatprep.mubr.f32.mxu0 0.0
      %510 = vmatmul.mubr.f32.gmra.mrb[0].mxu0 %v252
      %v511 = vpop.f32.mrb[0].mxu0
      %v512 = vadd.f32 %v245, %v511
      %v513 = vpop.f32.mrb[0].mxu0
      %514 = vmatprep.mubr.f32.mxu0 0.0
      %515 = vmatmul.mubr.f32.gmra.mrb[0].mxu0 %v255
      %v516 = vpop.f32.mrb[0].mxu0
      %v517 = vadd.f32 %v245, %v516
      %v518 = vpop.f32.mrb[0].mxu0
      %519 = vmatprep.mubr.f32.mxu0 0.0
      %520 = vmatmul.mubr.f32.gmra.mrb[0].mxu0 %v258
      %v521 = vpop.f32.mrb[0].mxu0
      %v522 = vadd.f32 %v245, %v521
      %v523 = vpop.f32.mrb[0].mxu0
      %524 = vmatprep.mubr.f32.mxu0 0.0
      %525 = vmatmul.mubr.f32.gmra.mrb[0].mxu0 %v261
      %v526 = vpop.f32.mrb[0].mxu0
      %v527 = vadd.f32 %v245, %v526
      %v528 = vpop.f32.mrb[0].mxu0
      %529 = vmatprep.mubr.f32.mxu0 0.0
      %530 = vmatmul.mubr.f32.gmra.mrb[0].mxu0 %v264
      %v531 = vpop.f32.mrb[0].mxu0
      %v532 = vadd.f32 %v245, %v531
      %v533 = vpop.f32.mrb[0].mxu0
      %534 = vmatprep.mubr.f32.mxu0 0.0
      %535 = vmatmul.mubr.f32.gmra.mrb[0].mxu0 %v267
      %v536 = vpop.f32.mrb[0].mxu0
      %v537 = vadd.f32 %v245, %v536
      %v538 = vpop.f32.mrb[0].mxu0
      %539 = vmatprep.mubr.f32.mxu0 0.0
      %540 = vmatmul.mubr.f32.gmra.mrb[0].mxu0 %v270
      %v541 = vpop.f32.mrb[0].mxu0
      %v542 = vadd.f32 %v245, %v541
      %v543 = vpop.f32.mrb[0].mxu0
      %544 = vmatprep.mubr.f32.mxu0 0.0
      %545 = vmatmul.mubr.f32.gmra.mrb[0].mxu0 %v273
      %v546 = vpop.f32.mrb[0].mxu0
      %v547 = vadd.f32 %v245, %v546
      %v548 = vpop.f32.mrb[0].mxu0
      %549 = vmatprep.mubr.f32.mxu0 0.0
      %550 = vmatmul.mubr.f32.gmra.mrb[0].mxu0 %v276
      %v551 = vpop.f32.mrb[0].mxu0
      %v552 = vadd.f32 %v245, %v551
      %v553 = vpop.f32.mrb[0].mxu0
      %554 = vmatprep.mubr.f32.mxu0 0.0
      %555 = vmatmul.mubr.f32.gmra.mrb[0].mxu0 %v279
      %v556 = vpop.f32.mrb[0].mxu0
      %v557 = vadd.f32 %v245, %v556
      %v558 = vpop.f32.mrb[0].mxu0
      %559 = vmatprep.mubr.f32.mxu0 0.0
      %560 = vmatmul.mubr.f32.gmra.mrb[0].mxu0 %v282
      %v561 = vpop.f32.mrb[0].mxu0
      %v562 = vadd.f32 %v245, %v561
      %v563 = vpop.f32.mrb[0].mxu0
      %564 = vmatprep.mubr.f32.mxu0 0.0
      %565 = vmatmul.mubr.f32.gmra.mrb[0].mxu0 %v285
      %v566 = vpop.f32.mrb[0].mxu0
      %v567 = vadd.f32 %v245, %v566
      %v568 = vpop.f32.mrb[0].mxu0
      %569 = vmatprep.mubr.f32.mxu0 0.0
      %570 = vmatmul.mubr.f32.gmra.mrb[0].mxu0 %v288
      %v571 = vpop.f32.mrb[0].mxu0
      %v572 = vadd.f32 %v245, %v571
      %v573 = vpop.f32.mrb[0].mxu0
      %574 = vmatprep.mubr.f32.mxu0 0.0
      %575 = vmatmul.mubr.f32.gmra.mrb[0].mxu0 %v291
      %v576 = vpop.f32.mrb[0].mxu0
      %v577 = vadd.f32 %v245, %v576
      %v578 = vpop.f32.mrb[0].mxu0
      %579 = vmatprep.mubr.f32.mxu0 0.0
      %580 = vmatmul.mubr.f32.gmra.mrb[0].mxu0 %v294
      %v581 = vpop.f32.mrb[0].mxu0
      %v582 = vadd.f32 %v245, %v581
      %v583 = vpop.f32.mrb[0].mxu0
      %584 = vmatprep.mubr.f32.mxu0 0.0
      %585 = vmatmul.mubr.f32.gmra.mrb[0].mxu0 %v297
      %v586 = vpop.f32.mrb[0].mxu0
      %v587 = vadd.f32 %v245, %v586
      %v588 = vpop.f32.mrb[0].mxu0
      %589 = vmatprep.mubr.f32.mxu0 0.0
      %590 = vmatmul.mubr.f32.gmra.mrb[0].mxu0 %v300
      %v591 = vpop.f32.mrb[0].mxu0
      %v592 = vadd.f32 %v245, %v591
      %v593 = vpop.f32.mrb[0].mxu0
      %594 = vmatprep.mubr.f32.mxu0 0.0
      %595 = vmatmul.mubr.f32.gmra.mrb[0].mxu0 %v303
      %v596 = vpop.f32.mrb[0].mxu0
      %v597 = vadd.f32 %v245, %v596
      %v598 = vpop.f32.mrb[0].mxu0
      %599 = vmatprep.mubr.f32.mxu0 0.0
      %600 = vmatmul.mubr.f32.gmra.mrb[0].mxu0 %v306
      %v601 = vpop.f32.mrb[0].mxu0
      %v602 = vadd.f32 %v245, %v601
      %v603 = vpop.f32.mrb[0].mxu0
      %604 = vmatprep.mubr.f32.mxu0 0.0
      %605 = vmatmul.mubr.f32.gmra.mrb[0].mxu0 %v309
      %v606 = vpop.f32.mrb[0].mxu0
      %v607 = vadd.f32 %v245, %v606
      %v608 = vpop.f32.mrb[0].mxu0
      %609 = vmatprep.mubr.f32.mxu0 0.0
      %610 = vmatmul.mubr.f32.gmra.mrb[0].mxu0 %v312
      %v611 = vpop.f32.mrb[0].mxu0
      %v612 = vadd.f32 %v245, %v611
      %v613 = vpop.f32.mrb[0].mxu0
      %614 = vmatprep.mubr.f32.mxu0 0.0
      %615 = vmatmul.mubr.f32.gmra.mrb[0].mxu0 %v315
      %v616 = vpop.f32.mrb[0].mxu0
      %v617 = vadd.f32 %v245, %v616
      %v618 = vpop.f32.mrb[0].mxu0
      %619 = vmatprep.mubr.f32.mxu0 0.0
      %620 = vmatmul.mubr.f32.gmra.mrb[0].mxu0 %v318
      %v621 = vpop.f32.mrb[0].mxu0
      %v622 = vadd.f32 %v245, %v621
      %v623 = vpop.f32.mrb[0].mxu0
      %624 = vmatprep.mubr.f32.mxu0 0.0
      %625 = vmatmul.mubr.f32.gmra.mrb[0].mxu0 %v321
      %v626 = vpop.f32.mrb[0].mxu0
      %v627 = vadd.f32 %v245, %v626
      %v628 = vpop.f32.mrb[0].mxu0
      %629 = vmatprep.mubr.f32.mxu0 0.0
      %630 = vmatmul.mubr.f32.gmra.mrb[0].mxu0 %v324
      %v631 = vpop.f32.mrb[0].mxu0
      %v632 = vadd.f32 %v245, %v631
      %v633 = vpop.f32.mrb[0].mxu0
      %634 = vmatprep.mubr.f32.mxu0 0.0
      %635 = vmatmul.mubr.f32.gmra.mrb[0].mxu0 %v327
      %v636 = vpop.f32.mrb[0].mxu0
      %v637 = vadd.f32 %v245, %v636
      %v638 = vpop.f32.mrb[0].mxu0
      %639 = vmatprep.mubr.f32.mxu0 0.0
      %640 = vmatmul.mubr.f32.gmra.mrb[0].mxu0 %v330
      %v641 = vpop.f32.mrb[0].mxu0
      %v642 = vadd.f32 %v245, %v641
      %v643 = vpop.f32.mrb[0].mxu0
      %644 = vmatprep.mubr.f32.mxu0 0.0
      %645 = vmatmul.mubr.f32.gmra.mrb[0].mxu0 %v333
      %v646 = vpop.f32.mrb[0].mxu0
      %v647 = vadd.f32 %v245, %v646
      %v648 = vpop.f32.mrb[0].mxu0
      %649 = vmatprep.mubr.f32.mxu0 0.0
      %650 = vmatmul.mubr.f32.gmra.mrb[0].mxu0 %v336
      %v651 = vpop.f32.mrb[0].mxu0
      %v652 = vadd.f32 %v245, %v651
      %v653 = vpop.f32.mrb[0].mxu0
      %654 = vmatprep.mubr.f32.mxu0 0.0
      %655 = vmatmul.mubr.f32.gmra.mrb[0].mxu0 %v339
      %v656 = vpop.f32.mrb[0].mxu0
      %v657 = vadd.f32 %v245, %v656
      %v658 = vpop.f32.mrb[0].mxu0
      %659 = vmatprep.mubr.f32.mxu0 0.0
      %660 = vmatmul.mubr.f32.gmra.mrb[0].mxu0 %v342
      %v661 = vpop.f32.mrb[0].mxu0
      %v662 = vadd.f32 %v245, %v661
      %v663 = vpop.f32.mrb[0].mxu0
      %664 = vmatprep.mubr.f32.mxu0 0.0
      %665 = vmatmul.mubr.f32.gmra.mrb[0].mxu0 %v345
      %v666 = vpop.f32.mrb[0].mxu0
      %v667 = vadd.f32 %v245, %v666
      %v668 = vpop.f32.mrb[0].mxu0
      %669 = vmatprep.mubr.f32.mxu0 0.0
      %670 = vmatmul.mubr.f32.gmra.mrb[0].mxu0 %v348
      %v671 = vpop.f32.mrb[0].mxu0
      %v672 = vadd.f32 %v245, %v671
      %v673 = vpop.f32.mrb[0].mxu0
      %674 = vmatprep.mubr.f32.mxu0 0.0
      %675 = vmatmul.mubr.f32.gmra.mrb[0].mxu0 %v351
      %v676 = vpop.f32.mrb[0].mxu0
      %v677 = vadd.f32 %v245, %v676
      %v678 = vpop.f32.mrb[0].mxu0
      %679 = vmatprep.mubr.f32.mxu0 0.0
      %680 = vmatmul.mubr.f32.gmra.mrb[0].mxu0 %v354
      %v681 = vpop.f32.mrb[0].mxu0
      %v682 = vadd.f32 %v245, %v681
      %v683 = vpop.f32.mrb[0].mxu0
      %684 = vmatprep.mubr.f32.mxu0 0.0
      %685 = vmatmul.mubr.f32.gmra.mrb[0].mxu0 %v357
      %v686 = vpop.f32.mrb[0].mxu0
      %v687 = vadd.f32 %v245, %v686
      %v688 = vpop.f32.mrb[0].mxu0
      %689 = vmatprep.mubr.f32.mxu0 0.0
      %690 = vmatmul.mubr.f32.gmra.mrb[0].mxu0 %v360
      %v691 = vpop.f32.mrb[0].mxu0
      %v692 = vadd.f32 %v245, %v691
      %v693 = vpop.f32.mrb[0].mxu0
      %694 = vmatprep.mubr.f32.mxu0 0.0
      %695 = vmatmul.mubr.f32.gmra.mrb[0].mxu0 %v363
      %v696 = vpop.f32.mrb[0].mxu0
      %v697 = vadd.f32 %v245, %v696
      %v698 = vpop.f32.mrb[0].mxu0
      %699 = vmatprep.mubr.f32.mxu0 0.0
      %700 = vmatmul.mubr.f32.gmra.mrb[0].mxu0 %v366
      %v701 = vpop.f32.mrb[0].mxu0
      %v702 = vadd.f32 %v245, %v701
      %v703 = vpop.f32.mrb[0].mxu0
      %704 = vmatprep.mubr.f32.mxu0 0.0
      %705 = vmatmul.mubr.f32.gmra.mrb[0].mxu0 %v369
      %v706 = vpop.f32.mrb[0].mxu0
      %v707 = vadd.f32 %v245, %v706
      %v708 = vpop.f32.mrb[0].mxu0
      %709 = vmatprep.mubr.f32.mxu0 0.0
      %710 = vmatmul.mubr.f32.gmra.mrb[0].mxu0 %v372
      %v711 = vpop.f32.mrb[0].mxu0
      %v712 = vadd.f32 %v245, %v711
      %v713 = vpop.f32.mrb[0].mxu0
      %714 = vmatprep.mubr.f32.mxu0 0.0
      %715 = vmatmul.mubr.f32.gmra.mrb[0].mxu0 %v375
      %v716 = vpop.f32.mrb[0].mxu0
      %v717 = vadd.f32 %v245, %v716
      %v718 = vpop.f32.mrb[0].mxu0
      %719 = vmatprep.mubr.f32.mxu0 0.0
      %720 = vmatmul.mubr.f32.gmra.mrb[0].mxu0 %v378
      %v721 = vpop.f32.mrb[0].mxu0
      %v722 = vadd.f32 %v245, %v721
      %v723 = vpop.f32.mrb[0].mxu0
      %724 = vmatprep.mubr.f32.mxu0 0.0
      %725 = vmatmul.mubr.f32.gmra.mrb[0].mxu0 %v381
      %v726 = vpop.f32.mrb[0].mxu0
      %v727 = vadd.f32 %v245, %v726
      %v728 = vpop.f32.mrb[0].mxu0
      %729 = vmatprep.mubr.f32.mxu0 0.0
      %730 = vmatmul.mubr.f32.gmra.mrb[0].mxu0 %v384
      %v731 = vpop.f32.mrb[0].mxu0
      %v732 = vadd.f32 %v245, %v731
      %v733 = vpop.f32.mrb[0].mxu0
      %734 = vmatprep.mubr.f32.mxu0 0.0
      %735 = vmatmul.mubr.f32.gmra.mrb[0].mxu0 %v387
      %v736 = vpop.f32.mrb[0].mxu0
      %v737 = vadd.f32 %v245, %v736
      %v738 = vpop.f32.mrb[0].mxu0
      %739 = vmatprep.mubr.f32.mxu0 0.0
      %740 = vmatmul.mubr.f32.gmra.mrb[0].mxu0 %v390
      %v741 = vpop.f32.mrb[0].mxu0
      %v742 = vadd.f32 %v245, %v741
      %v743 = vpop.f32.mrb[0].mxu0
      %744 = vmatprep.mubr.f32.mxu0 0.0
      %745 = vmatmul.mubr.f32.gmra.mrb[0].mxu0 %v393
      %v746 = vpop.f32.mrb[0].mxu0
      %v747 = vadd.f32 %v245, %v746
      %v748 = vpop.f32.mrb[0].mxu0
      %749 = vmatprep.mubr.f32.mxu0 0.0
      %750 = vmatmul.mubr.f32.gmra.mrb[0].mxu0 %v396
      %v751 = vpop.f32.mrb[0].mxu0
      %v752 = vadd.f32 %v245, %v751
      %v753 = vpop.f32.mrb[0].mxu0
      %754 = vmatprep.mubr.f32.mxu0 0.0
      %755 = vmatmul.mubr.f32.gmra.mrb[0].mxu0 %v399
      %v756 = vpop.f32.mrb[0].mxu0
      %v757 = vadd.f32 %v245, %v756
      %v758 = vpop.f32.mrb[0].mxu0
      %759 = vmatprep.mubr.f32.mxu0 0.0
      %760 = vmatmul.mubr.f32.gmra.mrb[0].mxu0 %v402
      %v761 = vpop.f32.mrb[0].mxu0
      %v762 = vadd.f32 %v245, %v761
      %v763 = vpop.f32.mrb[0].mxu0
      %764 = vmatprep.mubr.f32.mxu0 0.0
      %765 = vmatmul.mubr.f32.gmra.mrb[0].mxu0 %v405
      %v766 = vpop.f32.mrb[0].mxu0
      %v767 = vadd.f32 %v245, %v766
      %v768 = vpop.f32.mrb[0].mxu0
      %769 = vmatprep.mubr.f32.mxu0 0.0
      %770 = vmatmul.mubr.f32.gmra.mrb[0].mxu0 %v408
      %v771 = vpop.f32.mrb[0].mxu0
      %v772 = vadd.f32 %v245, %v771
      %v773 = vpop.f32.mrb[0].mxu0
      %774 = vmatprep.mubr.f32.mxu0 0.0
      %775 = vmatmul.mubr.f32.gmra.mrb[0].mxu0 %v411
      %v776 = vpop.f32.mrb[0].mxu0
      %v777 = vadd.f32 %v245, %v776
      %v778 = vpop.f32.mrb[0].mxu0
      %779 = vmatprep.mubr.f32.mxu0 0.0
      %780 = vmatmul.mubr.f32.gmra.mrb[0].mxu0 %v414
      %v781 = vpop.f32.mrb[0].mxu0
      %v782 = vadd.f32 %v245, %v781
      %v783 = vpop.f32.mrb[0].mxu0
      %784 = vmatprep.mubr.f32.mxu0 0.0
      %785 = vmatmul.mubr.f32.gmra.mrb[0].mxu0 %v417
      %v786 = vpop.f32.mrb[0].mxu0
      %v787 = vadd.f32 %v245, %v786
      %v788 = vpop.f32.mrb[0].mxu0
      %789 = vmatprep.mubr.f32.mxu0 0.0
      %790 = vmatmul.mubr.f32.gmra.mrb[0].mxu0 %v420
      %v791 = vpop.f32.mrb[0].mxu0
      %v792 = vadd.f32 %v245, %v791
      %v793 = vpop.f32.mrb[0].mxu0
      %794 = vmatprep.mubr.f32.mxu0 0.0
      %795 = vmatmul.mubr.f32.gmra.mrb[0].mxu0 %v423
      %v796 = vpop.f32.mrb[0].mxu0
      %v797 = vadd.f32 %v245, %v796
      %v798 = vpop.f32.mrb[0].mxu0
      %799 = vmatprep.mubr.f32.mxu0 0.0
      %800 = vmatmul.mubr.f32.gmra.mrb[0].mxu0 %v426
      %v801 = vpop.f32.mrb[0].mxu0
      %v802 = vadd.f32 %v245, %v801
      %v803 = vpop.f32.mrb[0].mxu0
      %804 = vmatprep.mubr.f32.mxu0 0.0
      %805 = vmatmul.mubr.f32.gmra.mrb[0].mxu0 %v429
      %v806 = vpop.f32.mrb[0].mxu0
      %v807 = vadd.f32 %v245, %v806
      %v808 = vpop.f32.mrb[0].mxu0
      %809 = vmatprep.mubr.f32.mxu0 0.0
      %810 = vmatmul.mubr.f32.gmra.mrb[0].mxu0 %v432
      %v811 = vpop.f32.mrb[0].mxu0
      %v812 = vadd.f32 %v245, %v811
      %v813 = vpop.f32.mrb[0].mxu0
      %814 = vmatprep.mubr.f32.mxu0 0.0
      %815 = vmatmul.mubr.f32.gmra.mrb[0].mxu0 %v435
      %v816 = vpop.f32.mrb[0].mxu0
      %v817 = vadd.f32 %v245, %v816
      %v818 = vpop.f32.mrb[0].mxu0
      %819 = vmatprep.mubr.f32.mxu0 0.0
      %820 = vmatmul.mubr.f32.gmra.mrb[0].mxu0 %v438
      %v821 = vpop.f32.mrb[0].mxu0
      %v822 = vadd.f32 %v245, %v821
      %v823 = vpop.f32.mrb[0].mxu0
      %824 = vdwg.mxu0
      %v825 = vtanh.pop %v507
      %v826 = vtanh.pop %v512
      %v827 = vtanh.pop %v517
      %v828 = vtanh.pop %v522
      %v829 = vtanh.pop %v527
      %v830 = vtanh.pop %v532
      %v831 = vtanh.pop %v537
      %v832 = vtanh.pop %v542
      %v833 = vtanh.pop %v547
      %v834 = vtanh.pop %v552
      %v835 = vtanh.pop %v557
      %v836 = vtanh.pop %v562
      %v837 = vtanh.pop %v567
      %v838 = vtanh.pop %v572
      %v839 = vtanh.pop %v577
      %v840 = vtanh.pop %v582
      %v841 = vtanh.pop %v587
      %v842 = vtanh.pop %v592
      %v843 = vtanh.pop %v597
      %v844 = vtanh.pop %v602
      %v845 = vtanh.pop %v607
      %v846 = vtanh.pop %v612
      %v847 = vtanh.pop %v617
      %v848 = vtanh.pop %v622
      %v849 = vtanh.pop %v627
      %v850 = vtanh.pop %v632
      %v851 = vtanh.pop %v637
      %v852 = vtanh.pop %v642
      %v853 = vtanh.pop %v647
      %v854 = vtanh.pop %v652
      %v855 = vtanh.pop %v657
      %v856 = vtanh.pop %v662
      %v857 = vtanh.pop %v667
      %v858 = vtanh.pop %v672
      %v859 = vtanh.pop %v677
      %v860 = vtanh.pop %v682
      %v861 = vtanh.pop %v687
      %v862 = vtanh.pop %v692
      %v863 = vtanh.pop %v697
      %v864 = vtanh.pop %v702
      %v865 = vtanh.pop %v707
      %v866 = vtanh.pop %v712
      %v867 = vtanh.pop %v717
      %v868 = vtanh.pop %v722
      %v869 = vtanh.pop %v727
      %v870 = vtanh.pop %v732
      %v871 = vtanh.pop %v737
      %v872 = vtanh.pop %v742
      %v873 = vtanh.pop %v747
      %v874 = vtanh.pop %v752
      %v875 = vtanh.pop %v757
      %v876 = vtanh.pop %v762
      %v877 = vtanh.pop %v767
      %v878 = vtanh.pop %v772
      %v879 = vtanh.pop %v777
      %v880 = vtanh.pop %v782
      %v881 = vtanh.pop %v787
      %v882 = vtanh.pop %v792
      %v883 = vtanh.pop %v797
      %v884 = vtanh.pop %v802
      %v885 = vtanh.pop %v807
      %v886 = vtanh.pop %v812
      %v887 = vtanh.pop %v817
      %v888 = vtanh.pop %v822
      %s889 = scalar_lea.vmem %s1, 32
      %v890 = vld [vmem:[%s889] sm:$0xff]
      %v891 = vld [vmem:[%s889 + $0x8] sm:$0xff]
      %v892 = vld [vmem:[%s889 + $0x10] sm:$0xff]
      %v893 = vld [vmem:[%s889 + $0x18] sm:$0xff]
      %s894 = scalar_lea.vmem %s2, 1
      %v895 = vld [vmem:[%s894] sm:$0x1]
      %v897 = vlaneseq
      %v898 = vshrl.u32 %v897, 7
      %v899 = vsub.s32 0, %v898
      %v900 = vrot.slane %v895, %v899
      %vm902 = vcmask 261120
      %v904 = vsel %vm902, %v825, 0
      %v907 = vsel %vm902, %v826, 0
      %v910 = vsel %vm902, %v827, 0
      %v913 = vsel %vm902, %v828, 0
      %v916 = vsel %vm902, %v829, 0
      %v919 = vsel %vm902, %v830, 0
      %v922 = vsel %vm902, %v831, 0
      %v925 = vsel %vm902, %v832, 0
      %v928 = vsel %vm902, %v833, 0
      %v931 = vsel %vm902, %v834, 0
      %v934 = vsel %vm902, %v835, 0
      %v937 = vsel %vm902, %v836, 0
      %v940 = vsel %vm902, %v837, 0
      %v943 = vsel %vm902, %v838, 0
      %v946 = vsel %vm902, %v839, 0
      %v949 = vsel %vm902, %v840, 0
      %v952 = vsel %vm902, %v841, 0
      %v955 = vsel %vm902, %v842, 0
      %v958 = vsel %vm902, %v843, 0
      %v961 = vsel %vm902, %v844, 0
      %v964 = vsel %vm902, %v845, 0
      %v967 = vsel %vm902, %v846, 0
      %v970 = vsel %vm902, %v847, 0
      %v973 = vsel %vm902, %v848, 0
      %v976 = vsel %vm902, %v849, 0
      %v979 = vsel %vm902, %v850, 0
      %v982 = vsel %vm902, %v851, 0
      %v985 = vsel %vm902, %v852, 0
      %v988 = vsel %vm902, %v853, 0
      %v991 = vsel %vm902, %v854, 0
      %v994 = vsel %vm902, %v855, 0
      %v997 = vsel %vm902, %v856, 0
      %v1000 = vsel %vm902, %v857, 0
      %v1003 = vsel %vm902, %v858, 0
      %v1006 = vsel %vm902, %v859, 0
      %v1009 = vsel %vm902, %v860, 0
      %v1012 = vsel %vm902, %v861, 0
      %v1015 = vsel %vm902, %v862, 0
      %v1018 = vsel %vm902, %v863, 0
      %v1021 = vsel %vm902, %v864, 0
      %v1024 = vsel %vm902, %v865, 0
      %v1027 = vsel %vm902, %v866, 0
      %v1030 = vsel %vm902, %v867, 0
      %v1033 = vsel %vm902, %v868, 0
      %v1036 = vsel %vm902, %v869, 0
      %v1039 = vsel %vm902, %v870, 0
      %v1042 = vsel %vm902, %v871, 0
      %v1045 = vsel %vm902, %v872, 0
      %v1048 = vsel %vm902, %v873, 0
      %v1051 = vsel %vm902, %v874, 0
      %v1054 = vsel %vm902, %v875, 0
      %v1057 = vsel %vm902, %v876, 0
      %v1060 = vsel %vm902, %v877, 0
      %v1063 = vsel %vm902, %v878, 0
      %v1066 = vsel %vm902, %v879, 0
      %v1069 = vsel %vm902, %v880, 0
      %v1072 = vsel %vm902, %v881, 0
      %v1075 = vsel %vm902, %v882, 0
      %v1078 = vsel %vm902, %v883, 0
      %v1081 = vsel %vm902, %v884, 0
      %v1084 = vsel %vm902, %v885, 0
      %v1087 = vsel %vm902, %v886, 0
      %v1090 = vsel %vm902, %v887, 0
      %v1093 = vsel %vm902, %v888, 0
      %1095 = vmatprep.subr.mxu0 0.0
      %1096 = vmatpush1.msra.mxu0 %v890
      %1097 = vmatprep.subr.mxu0 0.0
      %1098 = vmatpush1.msra.mxu0 %v891
      %1099 = vmatprep.subr.mxu0 0.0
      %1100 = vmatpush1.msra.mxu0 %v892
      %1101 = vmatprep.subr.mxu0 0.0
      %1102 = vmatpush1.msra.mxu0 %v893
      %1103 = vmatprep.subr.mxu0 0.0
      %1104 = vmatpush1.msra.mxu0 0.0
      %1105 = vmatprep.subr.mxu0 0.0
      %1106 = vmatpush1.msra.mxu0 0.0
      %1107 = vmatprep.subr.mxu0 0.0
      %1108 = vmatpush1.msra.mxu0 0.0
      %1109 = vmatprep.subr.mxu0 0.0
      %1110 = vmatpush1.msra.mxu0 0.0
      %1111 = vmatprep.subr.mxu0 0.0
      %1112 = vmatpush1.msra.mxu0 0.0
      %1113 = vmatprep.subr.mxu0 0.0
      %1114 = vmatpush1.msra.mxu0 0.0
      %1115 = vmatprep.subr.mxu0 0.0
      %1116 = vmatpush1.msra.mxu0 0.0
      %1117 = vmatprep.subr.mxu0 0.0
      %1118 = vmatpush1.msra.mxu0 0.0
      %1119 = vmatprep.subr.mxu0 0.0
      %1120 = vmatpush1.msra.mxu0 0.0
      %1121 = vmatprep.subr.mxu0 0.0
      %1122 = vmatpush1.msra.mxu0 0.0
      %1123 = vmatprep.subr.mxu0 0.0
      %1124 = vmatpush1.msra.mxu0 0.0
      %1125 = vmatprep.subr.mxu0 0.0
      %1126 = vmatpush1.msra.mxu0 0.0
      %1127 = vmatprep.subr.mxu0 0.0
      %1128 = vmatpush1.msra.mxu0 0.0
      %1129 = vmatprep.subr.mxu0 0.0
      %1130 = vmatpush1.msra.mxu0 0.0
      %1131 = vmatprep.subr.mxu0 0.0
      %1132 = vmatpush1.msra.mxu0 0.0
      %1133 = vmatprep.subr.mxu0 0.0
      %1134 = vmatpush1.msra.mxu0 0.0
      %1135 = vmatprep.subr.mxu0 0.0
      %1136 = vmatpush1.msra.mxu0 0.0
      %1137 = vmatprep.subr.mxu0 0.0
      %1138 = vmatpush1.msra.mxu0 0.0
      %1139 = vmatprep.subr.mxu0 0.0
      %1140 = vmatpush1.msra.mxu0 0.0
      %1141 = vmatprep.subr.mxu0 0.0
      %1142 = vmatpush1.msra.mxu0 0.0
      %1143 = vmatprep.subr.mxu0 0.0
      %1144 = vmatpush1.msra.mxu0 0.0
      %1145 = vmatprep.subr.mxu0 0.0
      %1146 = vmatpush1.msra.mxu0 0.0
      %1147 = vmatprep.subr.mxu0 0.0
      %1148 = vmatpush1.msra.mxu0 0.0
      %1149 = vmatprep.subr.mxu0 0.0
      %1150 = vmatpush1.msra.mxu0 0.0
      %1151 = vmatprep.subr.mxu0 0.0
      %1152 = vmatpush1.msra.mxu0 0.0
      %1153 = vmatprep.subr.mxu0 0.0
      %1154 = vmatpush1.msra.mxu0 0.0
      %1155 = vmatprep.subr.mxu0 0.0
      %1156 = vmatpush1.msra.mxu0 0.0
      %1157 = vmatprep.subr.mxu0 0.0
      %1158 = vmatpush1.msra.mxu0 0.0
      %1159 = vmatprep.mubr.f32.mxu0 0.0
      %1160 = vmatmul.mubr.f32.gmra.mrb[0].mxu0 %v904
      %v1161 = vpop.f32.mrb[0].mxu0
      %v1162 = vadd.f32 %v900, %v1161
      %v1163 = vpop.f32.mrb[0].mxu0
      %1164 = vmatprep.mubr.f32.mxu0 0.0
      %1165 = vmatmul.mubr.f32.gmra.mrb[0].mxu0 %v907
      %v1166 = vpop.f32.mrb[0].mxu0
      %v1167 = vadd.f32 %v900, %v1166
      %v1168 = vpop.f32.mrb[0].mxu0
      %1169 = vmatprep.mubr.f32.mxu0 0.0
      %1170 = vmatmul.mubr.f32.gmra.mrb[0].mxu0 %v910
      %v1171 = vpop.f32.mrb[0].mxu0
      %v1172 = vadd.f32 %v900, %v1171
      %v1173 = vpop.f32.mrb[0].mxu0
      %1174 = vmatprep.mubr.f32.mxu0 0.0
      %1175 = vmatmul.mubr.f32.gmra.mrb[0].mxu0 %v913
      %v1176 = vpop.f32.mrb[0].mxu0
      %v1177 = vadd.f32 %v900, %v1176
      %v1178 = vpop.f32.mrb[0].mxu0
      %1179 = vmatprep.mubr.f32.mxu0 0.0
      %1180 = vmatmul.mubr.f32.gmra.mrb[0].mxu0 %v916
      %v1181 = vpop.f32.mrb[0].mxu0
      %v1182 = vadd.f32 %v900, %v1181
      %v1183 = vpop.f32.mrb[0].mxu0
      %1184 = vmatprep.mubr.f32.mxu0 0.0
      %1185 = vmatmul.mubr.f32.gmra.mrb[0].mxu0 %v919
      %v1186 = vpop.f32.mrb[0].mxu0
      %v1187 = vadd.f32 %v900, %v1186
      %v1188 = vpop.f32.mrb[0].mxu0
      %1189 = vmatprep.mubr.f32.mxu0 0.0
      %1190 = vmatmul.mubr.f32.gmra.mrb[0].mxu0 %v922
      %v1191 = vpop.f32.mrb[0].mxu0
      %v1192 = vadd.f32 %v900, %v1191
      %v1193 = vpop.f32.mrb[0].mxu0
      %1194 = vmatprep.mubr.f32.mxu0 0.0
      %1195 = vmatmul.mubr.f32.gmra.mrb[0].mxu0 %v925
      %v1196 = vpop.f32.mrb[0].mxu0
      %v1197 = vadd.f32 %v900, %v1196
      %v1198 = vpop.f32.mrb[0].mxu0
      %1199 = vmatprep.mubr.f32.mxu0 0.0
      %1200 = vmatmul.mubr.f32.gmra.mrb[0].mxu0 %v928
      %v1201 = vpop.f32.mrb[0].mxu0
      %v1202 = vadd.f32 %v900, %v1201
      %v1203 = vpop.f32.mrb[0].mxu0
      %1204 = vmatprep.mubr.f32.mxu0 0.0
      %1205 = vmatmul.mubr.f32.gmra.mrb[0].mxu0 %v931
      %v1206 = vpop.f32.mrb[0].mxu0
      %v1207 = vadd.f32 %v900, %v1206
      %v1208 = vpop.f32.mrb[0].mxu0
      %1209 = vmatprep.mubr.f32.mxu0 0.0
      %1210 = vmatmul.mubr.f32.gmra.mrb[0].mxu0 %v934
      %v1211 = vpop.f32.mrb[0].mxu0
      %v1212 = vadd.f32 %v900, %v1211
      %v1213 = vpop.f32.mrb[0].mxu0
      %1214 = vmatprep.mubr.f32.mxu0 0.0
      %1215 = vmatmul.mubr.f32.gmra.mrb[0].mxu0 %v937
      %v1216 = vpop.f32.mrb[0].mxu0
      %v1217 = vadd.f32 %v900, %v1216
      %v1218 = vpop.f32.mrb[0].mxu0
      %1219 = vmatprep.mubr.f32.mxu0 0.0
      %1220 = vmatmul.mubr.f32.gmra.mrb[0].mxu0 %v940
      %v1221 = vpop.f32.mrb[0].mxu0
      %v1222 = vadd.f32 %v900, %v1221
      %v1223 = vpop.f32.mrb[0].mxu0
      %1224 = vmatprep.mubr.f32.mxu0 0.0
      %1225 = vmatmul.mubr.f32.gmra.mrb[0].mxu0 %v943
      %v1226 = vpop.f32.mrb[0].mxu0
      %v1227 = vadd.f32 %v900, %v1226
      %v1228 = vpop.f32.mrb[0].mxu0
      %1229 = vmatprep.mubr.f32.mxu0 0.0
      %1230 = vmatmul.mubr.f32.gmra.mrb[0].mxu0 %v946
      %v1231 = vpop.f32.mrb[0].mxu0
      %v1232 = vadd.f32 %v900, %v1231
      %v1233 = vpop.f32.mrb[0].mxu0
      %1234 = vmatprep.mubr.f32.mxu0 0.0
      %1235 = vmatmul.mubr.f32.gmra.mrb[0].mxu0 %v949
      %v1236 = vpop.f32.mrb[0].mxu0
      %v1237 = vadd.f32 %v900, %v1236
      %v1238 = vpop.f32.mrb[0].mxu0
      %1239 = vmatprep.mubr.f32.mxu0 0.0
      %1240 = vmatmul.mubr.f32.gmra.mrb[0].mxu0 %v952
      %v1241 = vpop.f32.mrb[0].mxu0
      %v1242 = vadd.f32 %v900, %v1241
      %v1243 = vpop.f32.mrb[0].mxu0
      %1244 = vmatprep.mubr.f32.mxu0 0.0
      %1245 = vmatmul.mubr.f32.gmra.mrb[0].mxu0 %v955
      %v1246 = vpop.f32.mrb[0].mxu0
      %v1247 = vadd.f32 %v900, %v1246
      %v1248 = vpop.f32.mrb[0].mxu0
      %1249 = vmatprep.mubr.f32.mxu0 0.0
      %1250 = vmatmul.mubr.f32.gmra.mrb[0].mxu0 %v958
      %v1251 = vpop.f32.mrb[0].mxu0
      %v1252 = vadd.f32 %v900, %v1251
      %v1253 = vpop.f32.mrb[0].mxu0
      %1254 = vmatprep.mubr.f32.mxu0 0.0
      %1255 = vmatmul.mubr.f32.gmra.mrb[0].mxu0 %v961
      %v1256 = vpop.f32.mrb[0].mxu0
      %v1257 = vadd.f32 %v900, %v1256
      %v1258 = vpop.f32.mrb[0].mxu0
      %1259 = vmatprep.mubr.f32.mxu0 0.0
      %1260 = vmatmul.mubr.f32.gmra.mrb[0].mxu0 %v964
      %v1261 = vpop.f32.mrb[0].mxu0
      %v1262 = vadd.f32 %v900, %v1261
      %v1263 = vpop.f32.mrb[0].mxu0
      %1264 = vmatprep.mubr.f32.mxu0 0.0
      %1265 = vmatmul.mubr.f32.gmra.mrb[0].mxu0 %v967
      %v1266 = vpop.f32.mrb[0].mxu0
      %v1267 = vadd.f32 %v900, %v1266
      %v1268 = vpop.f32.mrb[0].mxu0
      %1269 = vmatprep.mubr.f32.mxu0 0.0
      %1270 = vmatmul.mubr.f32.gmra.mrb[0].mxu0 %v970
      %v1271 = vpop.f32.mrb[0].mxu0
      %v1272 = vadd.f32 %v900, %v1271
      %v1273 = vpop.f32.mrb[0].mxu0
      %1274 = vmatprep.mubr.f32.mxu0 0.0
      %1275 = vmatmul.mubr.f32.gmra.mrb[0].mxu0 %v973
      %v1276 = vpop.f32.mrb[0].mxu0
      %v1277 = vadd.f32 %v900, %v1276
      %v1278 = vpop.f32.mrb[0].mxu0
      %1279 = vmatprep.mubr.f32.mxu0 0.0
      %1280 = vmatmul.mubr.f32.gmra.mrb[0].mxu0 %v976
      %v1281 = vpop.f32.mrb[0].mxu0
      %v1282 = vadd.f32 %v900, %v1281
      %v1283 = vpop.f32.mrb[0].mxu0
      %1284 = vmatprep.mubr.f32.mxu0 0.0
      %1285 = vmatmul.mubr.f32.gmra.mrb[0].mxu0 %v979
      %v1286 = vpop.f32.mrb[0].mxu0
      %v1287 = vadd.f32 %v900, %v1286
      %v1288 = vpop.f32.mrb[0].mxu0
      %1289 = vmatprep.mubr.f32.mxu0 0.0
      %1290 = vmatmul.mubr.f32.gmra.mrb[0].mxu0 %v982
      %v1291 = vpop.f32.mrb[0].mxu0
      %v1292 = vadd.f32 %v900, %v1291
      %v1293 = vpop.f32.mrb[0].mxu0
      %1294 = vmatprep.mubr.f32.mxu0 0.0
      %1295 = vmatmul.mubr.f32.gmra.mrb[0].mxu0 %v985
      %v1296 = vpop.f32.mrb[0].mxu0
      %v1297 = vadd.f32 %v900, %v1296
      %v1298 = vpop.f32.mrb[0].mxu0
      %1299 = vmatprep.mubr.f32.mxu0 0.0
      %1300 = vmatmul.mubr.f32.gmra.mrb[0].mxu0 %v988
      %v1301 = vpop.f32.mrb[0].mxu0
      %v1302 = vadd.f32 %v900, %v1301
      %v1303 = vpop.f32.mrb[0].mxu0
      %1304 = vmatprep.mubr.f32.mxu0 0.0
      %1305 = vmatmul.mubr.f32.gmra.mrb[0].mxu0 %v991
      %v1306 = vpop.f32.mrb[0].mxu0
      %v1307 = vadd.f32 %v900, %v1306
      %v1308 = vpop.f32.mrb[0].mxu0
      %1309 = vmatprep.mubr.f32.mxu0 0.0
      %1310 = vmatmul.mubr.f32.gmra.mrb[0].mxu0 %v994
      %v1311 = vpop.f32.mrb[0].mxu0
      %v1312 = vadd.f32 %v900, %v1311
      %v1313 = vpop.f32.mrb[0].mxu0
      %1314 = vmatprep.mubr.f32.mxu0 0.0
      %1315 = vmatmul.mubr.f32.gmra.mrb[0].mxu0 %v997
      %v1316 = vpop.f32.mrb[0].mxu0
      %v1317 = vadd.f32 %v900, %v1316
      %v1318 = vpop.f32.mrb[0].mxu0
      %1319 = vmatprep.mubr.f32.mxu0 0.0
      %1320 = vmatmul.mubr.f32.gmra.mrb[0].mxu0 %v1000
      %v1321 = vpop.f32.mrb[0].mxu0
      %v1322 = vadd.f32 %v900, %v1321
      %v1323 = vpop.f32.mrb[0].mxu0
      %1324 = vmatprep.mubr.f32.mxu0 0.0
      %1325 = vmatmul.mubr.f32.gmra.mrb[0].mxu0 %v1003
      %v1326 = vpop.f32.mrb[0].mxu0
      %v1327 = vadd.f32 %v900, %v1326
      %v1328 = vpop.f32.mrb[0].mxu0
      %1329 = vmatprep.mubr.f32.mxu0 0.0
      %1330 = vmatmul.mubr.f32.gmra.mrb[0].mxu0 %v1006
      %v1331 = vpop.f32.mrb[0].mxu0
      %v1332 = vadd.f32 %v900, %v1331
      %v1333 = vpop.f32.mrb[0].mxu0
      %1334 = vmatprep.mubr.f32.mxu0 0.0
      %1335 = vmatmul.mubr.f32.gmra.mrb[0].mxu0 %v1009
      %v1336 = vpop.f32.mrb[0].mxu0
      %v1337 = vadd.f32 %v900, %v1336
      %v1338 = vpop.f32.mrb[0].mxu0
      %1339 = vmatprep.mubr.f32.mxu0 0.0
      %1340 = vmatmul.mubr.f32.gmra.mrb[0].mxu0 %v1012
      %v1341 = vpop.f32.mrb[0].mxu0
      %v1342 = vadd.f32 %v900, %v1341
      %v1343 = vpop.f32.mrb[0].mxu0
      %1344 = vmatprep.mubr.f32.mxu0 0.0
      %1345 = vmatmul.mubr.f32.gmra.mrb[0].mxu0 %v1015
      %v1346 = vpop.f32.mrb[0].mxu0
      %v1347 = vadd.f32 %v900, %v1346
      %v1348 = vpop.f32.mrb[0].mxu0
      %1349 = vmatprep.mubr.f32.mxu0 0.0
      %1350 = vmatmul.mubr.f32.gmra.mrb[0].mxu0 %v1018
      %v1351 = vpop.f32.mrb[0].mxu0
      %v1352 = vadd.f32 %v900, %v1351
      %v1353 = vpop.f32.mrb[0].mxu0
      %1354 = vmatprep.mubr.f32.mxu0 0.0
      %1355 = vmatmul.mubr.f32.gmra.mrb[0].mxu0 %v1021
      %v1356 = vpop.f32.mrb[0].mxu0
      %v1357 = vadd.f32 %v900, %v1356
      %v1358 = vpop.f32.mrb[0].mxu0
      %1359 = vmatprep.mubr.f32.mxu0 0.0
      %1360 = vmatmul.mubr.f32.gmra.mrb[0].mxu0 %v1024
      %v1361 = vpop.f32.mrb[0].mxu0
      %v1362 = vadd.f32 %v900, %v1361
      %v1363 = vpop.f32.mrb[0].mxu0
      %1364 = vmatprep.mubr.f32.mxu0 0.0
      %1365 = vmatmul.mubr.f32.gmra.mrb[0].mxu0 %v1027
      %v1366 = vpop.f32.mrb[0].mxu0
      %v1367 = vadd.f32 %v900, %v1366
      %v1368 = vpop.f32.mrb[0].mxu0
      %1369 = vmatprep.mubr.f32.mxu0 0.0
      %1370 = vmatmul.mubr.f32.gmra.mrb[0].mxu0 %v1030
      %v1371 = vpop.f32.mrb[0].mxu0
      %v1372 = vadd.f32 %v900, %v1371
      %v1373 = vpop.f32.mrb[0].mxu0
      %1374 = vmatprep.mubr.f32.mxu0 0.0
      %1375 = vmatmul.mubr.f32.gmra.mrb[0].mxu0 %v1033
      %v1376 = vpop.f32.mrb[0].mxu0
      %v1377 = vadd.f32 %v900, %v1376
      %v1378 = vpop.f32.mrb[0].mxu0
      %1379 = vmatprep.mubr.f32.mxu0 0.0
      %1380 = vmatmul.mubr.f32.gmra.mrb[0].mxu0 %v1036
      %v1381 = vpop.f32.mrb[0].mxu0
      %v1382 = vadd.f32 %v900, %v1381
      %v1383 = vpop.f32.mrb[0].mxu0
      %1384 = vmatprep.mubr.f32.mxu0 0.0
      %1385 = vmatmul.mubr.f32.gmra.mrb[0].mxu0 %v1039
      %v1386 = vpop.f32.mrb[0].mxu0
      %v1387 = vadd.f32 %v900, %v1386
      %v1388 = vpop.f32.mrb[0].mxu0
      %1389 = vmatprep.mubr.f32.mxu0 0.0
      %1390 = vmatmul.mubr.f32.gmra.mrb[0].mxu0 %v1042
      %v1391 = vpop.f32.mrb[0].mxu0
      %v1392 = vadd.f32 %v900, %v1391
      %v1393 = vpop.f32.mrb[0].mxu0
      %1394 = vmatprep.mubr.f32.mxu0 0.0
      %1395 = vmatmul.mubr.f32.gmra.mrb[0].mxu0 %v1045
      %v1396 = vpop.f32.mrb[0].mxu0
      %v1397 = vadd.f32 %v900, %v1396
      %v1398 = vpop.f32.mrb[0].mxu0
      %1399 = vmatprep.mubr.f32.mxu0 0.0
      %1400 = vmatmul.mubr.f32.gmra.mrb[0].mxu0 %v1048
      %v1401 = vpop.f32.mrb[0].mxu0
      %v1402 = vadd.f32 %v900, %v1401
      %v1403 = vpop.f32.mrb[0].mxu0
      %1404 = vmatprep.mubr.f32.mxu0 0.0
      %1405 = vmatmul.mubr.f32.gmra.mrb[0].mxu0 %v1051
      %v1406 = vpop.f32.mrb[0].mxu0
      %v1407 = vadd.f32 %v900, %v1406
      %v1408 = vpop.f32.mrb[0].mxu0
      %1409 = vmatprep.mubr.f32.mxu0 0.0
      %1410 = vmatmul.mubr.f32.gmra.mrb[0].mxu0 %v1054
      %v1411 = vpop.f32.mrb[0].mxu0
      %v1412 = vadd.f32 %v900, %v1411
      %v1413 = vpop.f32.mrb[0].mxu0
      %1414 = vmatprep.mubr.f32.mxu0 0.0
      %1415 = vmatmul.mubr.f32.gmra.mrb[0].mxu0 %v1057
      %v1416 = vpop.f32.mrb[0].mxu0
      %v1417 = vadd.f32 %v900, %v1416
      %v1418 = vpop.f32.mrb[0].mxu0
      %1419 = vmatprep.mubr.f32.mxu0 0.0
      %1420 = vmatmul.mubr.f32.gmra.mrb[0].mxu0 %v1060
      %v1421 = vpop.f32.mrb[0].mxu0
      %v1422 = vadd.f32 %v900, %v1421
      %v1423 = vpop.f32.mrb[0].mxu0
      %1424 = vmatprep.mubr.f32.mxu0 0.0
      %1425 = vmatmul.mubr.f32.gmra.mrb[0].mxu0 %v1063
      %v1426 = vpop.f32.mrb[0].mxu0
      %v1427 = vadd.f32 %v900, %v1426
      %v1428 = vpop.f32.mrb[0].mxu0
      %1429 = vmatprep.mubr.f32.mxu0 0.0
      %1430 = vmatmul.mubr.f32.gmra.mrb[0].mxu0 %v1066
      %v1431 = vpop.f32.mrb[0].mxu0
      %v1432 = vadd.f32 %v900, %v1431
      %v1433 = vpop.f32.mrb[0].mxu0
      %1434 = vmatprep.mubr.f32.mxu0 0.0
      %1435 = vmatmul.mubr.f32.gmra.mrb[0].mxu0 %v1069
      %v1436 = vpop.f32.mrb[0].mxu0
      %v1437 = vadd.f32 %v900, %v1436
      %v1438 = vpop.f32.mrb[0].mxu0
      %1439 = vmatprep.mubr.f32.mxu0 0.0
      %1440 = vmatmul.mubr.f32.gmra.mrb[0].mxu0 %v1072
      %v1441 = vpop.f32.mrb[0].mxu0
      %v1442 = vadd.f32 %v900, %v1441
      %v1443 = vpop.f32.mrb[0].mxu0
      %1444 = vmatprep.mubr.f32.mxu0 0.0
      %1445 = vmatmul.mubr.f32.gmra.mrb[0].mxu0 %v1075
      %v1446 = vpop.f32.mrb[0].mxu0
      %v1447 = vadd.f32 %v900, %v1446
      %v1448 = vpop.f32.mrb[0].mxu0
      %1449 = vmatprep.mubr.f32.mxu0 0.0
      %1450 = vmatmul.mubr.f32.gmra.mrb[0].mxu0 %v1078
      %v1451 = vpop.f32.mrb[0].mxu0
      %v1452 = vadd.f32 %v900, %v1451
      %v1453 = vpop.f32.mrb[0].mxu0
      %1454 = vmatprep.mubr.f32.mxu0 0.0
      %1455 = vmatmul.mubr.f32.gmra.mrb[0].mxu0 %v1081
      %v1456 = vpop.f32.mrb[0].mxu0
      %v1457 = vadd.f32 %v900, %v1456
      %v1458 = vpop.f32.mrb[0].mxu0
      %1459 = vmatprep.mubr.f32.mxu0 0.0
      %1460 = vmatmul.mubr.f32.gmra.mrb[0].mxu0 %v1084
      %v1461 = vpop.f32.mrb[0].mxu0
      %v1462 = vadd.f32 %v900, %v1461
      %v1463 = vpop.f32.mrb[0].mxu0
      %1464 = vmatprep.mubr.f32.mxu0 0.0
      %1465 = vmatmul.mubr.f32.gmra.mrb[0].mxu0 %v1087
      %v1466 = vpop.f32.mrb[0].mxu0
      %v1467 = vadd.f32 %v900, %v1466
      %v1468 = vpop.f32.mrb[0].mxu0
      %1469 = vmatprep.mubr.f32.mxu0 0.0
      %1470 = vmatmul.mubr.f32.gmra.mrb[0].mxu0 %v1090
      %v1471 = vpop.f32.mrb[0].mxu0
      %v1472 = vadd.f32 %v900, %v1471
      %v1473 = vpop.f32.mrb[0].mxu0
      %1474 = vmatprep.mubr.f32.mxu0 0.0
      %1475 = vmatmul.mubr.f32.gmra.mrb[0].mxu0 %v1093
      %v1476 = vpop.f32.mrb[0].mxu0
      %v1477 = vadd.f32 %v900, %v1476
      %v1478 = vpop.f32.mrb[0].mxu0
      %1479 = vdwg.mxu0
      %v1480 = vtanh.pop %v1162
      %v1481 = vtanh.pop %v1167
      %v1482 = vtanh.pop %v1172
      %v1483 = vtanh.pop %v1177
      %v1484 = vtanh.pop %v1182
      %v1485 = vtanh.pop %v1187
      %v1486 = vtanh.pop %v1192
      %v1487 = vtanh.pop %v1197
      %v1488 = vtanh.pop %v1202
      %v1489 = vtanh.pop %v1207
      %v1490 = vtanh.pop %v1212
      %v1491 = vtanh.pop %v1217
      %v1492 = vtanh.pop %v1222
      %v1493 = vtanh.pop %v1227
      %v1494 = vtanh.pop %v1232
      %v1495 = vtanh.pop %v1237
      %v1496 = vtanh.pop %v1242
      %v1497 = vtanh.pop %v1247
      %v1498 = vtanh.pop %v1252
      %v1499 = vtanh.pop %v1257
      %v1500 = vtanh.pop %v1262
      %v1501 = vtanh.pop %v1267
      %v1502 = vtanh.pop %v1272
      %v1503 = vtanh.pop %v1277
      %v1504 = vtanh.pop %v1282
      %v1505 = vtanh.pop %v1287
      %v1506 = vtanh.pop %v1292
      %v1507 = vtanh.pop %v1297
      %v1508 = vtanh.pop %v1302
      %v1509 = vtanh.pop %v1307
      %v1510 = vtanh.pop %v1312
      %v1511 = vtanh.pop %v1317
      %v1512 = vtanh.pop %v1322
      %v1513 = vtanh.pop %v1327
      %v1514 = vtanh.pop %v1332
      %v1515 = vtanh.pop %v1337
      %v1516 = vtanh.pop %v1342
      %v1517 = vtanh.pop %v1347
      %v1518 = vtanh.pop %v1352
      %v1519 = vtanh.pop %v1357
      %v1520 = vtanh.pop %v1362
      %v1521 = vtanh.pop %v1367
      %v1522 = vtanh.pop %v1372
      %v1523 = vtanh.pop %v1377
      %v1524 = vtanh.pop %v1382
      %v1525 = vtanh.pop %v1387
      %v1526 = vtanh.pop %v1392
      %v1527 = vtanh.pop %v1397
      %v1528 = vtanh.pop %v1402
      %v1529 = vtanh.pop %v1407
      %v1530 = vtanh.pop %v1412
      %v1531 = vtanh.pop %v1417
      %v1532 = vtanh.pop %v1422
      %v1533 = vtanh.pop %v1427
      %v1534 = vtanh.pop %v1432
      %v1535 = vtanh.pop %v1437
      %v1536 = vtanh.pop %v1442
      %v1537 = vtanh.pop %v1447
      %v1538 = vtanh.pop %v1452
      %v1539 = vtanh.pop %v1457
      %v1540 = vtanh.pop %v1462
      %v1541 = vtanh.pop %v1467
      %v1542 = vtanh.pop %v1472
      %v1543 = vtanh.pop %v1477
      %v1544 = vadd.f32 %v825, %v1480
      %v1545 = vadd.f32 %v826, %v1481
      %v1546 = vadd.f32 %v827, %v1482
      %v1547 = vadd.f32 %v828, %v1483
      %v1548 = vadd.f32 %v829, %v1484
      %v1549 = vadd.f32 %v830, %v1485
      %v1550 = vadd.f32 %v831, %v1486
      %v1551 = vadd.f32 %v832, %v1487
      %v1552 = vadd.f32 %v833, %v1488
      %v1553 = vadd.f32 %v834, %v1489
      %v1554 = vadd.f32 %v835, %v1490
      %v1555 = vadd.f32 %v836, %v1491
      %v1556 = vadd.f32 %v837, %v1492
      %v1557 = vadd.f32 %v838, %v1493
      %v1558 = vadd.f32 %v839, %v1494
      %v1559 = vadd.f32 %v840, %v1495
      %v1560 = vadd.f32 %v841, %v1496
      %v1561 = vadd.f32 %v842, %v1497
      %v1562 = vadd.f32 %v843, %v1498
      %v1563 = vadd.f32 %v844, %v1499
      %v1564 = vadd.f32 %v845, %v1500
      %v1565 = vadd.f32 %v846, %v1501
      %v1566 = vadd.f32 %v847, %v1502
      %v1567 = vadd.f32 %v848, %v1503
      %v1568 = vadd.f32 %v849, %v1504
      %v1569 = vadd.f32 %v850, %v1505
      %v1570 = vadd.f32 %v851, %v1506
      %v1571 = vadd.f32 %v852, %v1507
      %v1572 = vadd.f32 %v853, %v1508
      %v1573 = vadd.f32 %v854, %v1509
      %v1574 = vadd.f32 %v855, %v1510
      %v1575 = vadd.f32 %v856, %v1511
      %v1576 = vadd.f32 %v857, %v1512
      %v1577 = vadd.f32 %v858, %v1513
      %v1578 = vadd.f32 %v859, %v1514
      %v1579 = vadd.f32 %v860, %v1515
      %v1580 = vadd.f32 %v861, %v1516
      %v1581 = vadd.f32 %v862, %v1517
      %v1582 = vadd.f32 %v863, %v1518
      %v1583 = vadd.f32 %v864, %v1519
      %v1584 = vadd.f32 %v865, %v1520
      %v1585 = vadd.f32 %v866, %v1521
      %v1586 = vadd.f32 %v867, %v1522
      %v1587 = vadd.f32 %v868, %v1523
      %v1588 = vadd.f32 %v869, %v1524
      %v1589 = vadd.f32 %v870, %v1525
      %v1590 = vadd.f32 %v871, %v1526
      %v1591 = vadd.f32 %v872, %v1527
      %v1592 = vadd.f32 %v873, %v1528
      %v1593 = vadd.f32 %v874, %v1529
      %v1594 = vadd.f32 %v875, %v1530
      %v1595 = vadd.f32 %v876, %v1531
      %v1596 = vadd.f32 %v877, %v1532
      %v1597 = vadd.f32 %v878, %v1533
      %v1598 = vadd.f32 %v879, %v1534
      %v1599 = vadd.f32 %v880, %v1535
      %v1600 = vadd.f32 %v881, %v1536
      %v1601 = vadd.f32 %v882, %v1537
      %v1602 = vadd.f32 %v883, %v1538
      %v1603 = vadd.f32 %v884, %v1539
      %v1604 = vadd.f32 %v885, %v1540
      %v1605 = vadd.f32 %v886, %v1541
      %v1606 = vadd.f32 %v887, %v1542
      %v1607 = vadd.f32 %v888, %v1543
      %s1608 = scalar_lea.vmem %s1, 64
      %v1609 = vld [vmem:[%s1608] sm:$0xff]
      %v1610 = vld [vmem:[%s1608 + $0x8] sm:$0xff]
      %v1611 = vld [vmem:[%s1608 + $0x10] sm:$0xff]
      %v1612 = vld [vmem:[%s1608 + $0x18] sm:$0xff]
      %s1613 = scalar_lea.vmem %s2, 2
      %v1614 = vld [vmem:[%s1613] sm:$0x1]
      %v1616 = vlaneseq
      %v1617 = vshrl.u32 %v1616, 7
      %v1618 = vsub.s32 0, %v1617
      %v1619 = vrot.slane %v1614, %v1618
      %v1622 = vsel %vm902, %v1544, 0
      %v1625 = vsel %vm902, %v1545, 0
      %v1628 = vsel %vm902, %v1546, 0
      %v1631 = vsel %vm902, %v1547, 0
      %v1634 = vsel %vm902, %v1548, 0
      %v1637 = vsel %vm902, %v1549, 0
      %v1640 = vsel %vm902, %v1550, 0
      %v1643 = vsel %vm902, %v1551, 0
      %v1646 = vsel %vm902, %v1552, 0
      %v1649 = vsel %vm902, %v1553, 0
      %v1652 = vsel %vm902, %v1554, 0
      %v1655 = vsel %vm902, %v1555, 0
      %v1658 = vsel %vm902, %v1556, 0
      %v1661 = vsel %vm902, %v1557, 0
      %v1664 = vsel %vm902, %v1558, 0
      %v1667 = vsel %vm902, %v1559, 0
      %v1670 = vsel %vm902, %v1560, 0
      %v1673 = vsel %vm902, %v1561, 0
      %v1676 = vsel %vm902, %v1562, 0
      %v1679 = vsel %vm902, %v1563, 0
      %v1682 = vsel %vm902, %v1564, 0
      %v1685 = vsel %vm902, %v1565, 0
      %v1688 = vsel %vm902, %v1566, 0
      %v1691 = vsel %vm902, %v1567, 0
      %v1694 = vsel %vm902, %v1568, 0
      %v1697 = vsel %vm902, %v1569, 0
      %v1700 = vsel %vm902, %v1570, 0
      %v1703 = vsel %vm902, %v1571, 0
      %v1706 = vsel %vm902, %v1572, 0
      %v1709 = vsel %vm902, %v1573, 0
      %v1712 = vsel %vm902, %v1574, 0
      %v1715 = vsel %vm902, %v1575, 0
      %v1718 = vsel %vm902, %v1576, 0
      %v1721 = vsel %vm902, %v1577, 0
      %v1724 = vsel %vm902, %v1578, 0
      %v1727 = vsel %vm902, %v1579, 0
      %v1730 = vsel %vm902, %v1580, 0
      %v1733 = vsel %vm902, %v1581, 0
      %v1736 = vsel %vm902, %v1582, 0
      %v1739 = vsel %vm902, %v1583, 0
      %v1742 = vsel %vm902, %v1584, 0
      %v1745 = vsel %vm902, %v1585, 0
      %v1748 = vsel %vm902, %v1586, 0
      %v1751 = vsel %vm902, %v1587, 0
      %v1754 = vsel %vm902, %v1588, 0
      %v1757 = vsel %vm902, %v1589, 0
      %v1760 = vsel %vm902, %v1590, 0
      %v1763 = vsel %vm902, %v1591, 0
      %v1766 = vsel %vm902, %v1592, 0
      %v1769 = vsel %vm902, %v1593, 0
      %v1772 = vsel %vm902, %v1594, 0
      %v1775 = vsel %vm902, %v1595, 0
      %v1778 = vsel %vm902, %v1596, 0
      %v1781 = vsel %vm902, %v1597, 0
      %v1784 = vsel %vm902, %v1598, 0
      %v1787 = vsel %vm902, %v1599, 0
      %v1790 = vsel %vm902, %v1600, 0
      %v1793 = vsel %vm902, %v1601, 0
      %v1796 = vsel %vm902, %v1602, 0
      %v1799 = vsel %vm902, %v1603, 0
      %v1802 = vsel %vm902, %v1604, 0
      %v1805 = vsel %vm902, %v1605, 0
      %v1808 = vsel %vm902, %v1606, 0
      %v1811 = vsel %vm902, %v1607, 0
      %1813 = vmatprep.subr.mxu0 0.0
      %1814 = vmatpush1.msra.mxu0 %v1609
      %1815 = vmatprep.subr.mxu0 0.0
      %1816 = vmatpush1.msra.mxu0 %v1610
      %1817 = vmatprep.subr.mxu0 0.0
      %1818 = vmatpush1.msra.mxu0 %v1611
      %1819 = vmatprep.subr.mxu0 0.0
      %1820 = vmatpush1.msra.mxu0 %v1612
      %1821 = vmatprep.subr.mxu0 0.0
      %1822 = vmatpush1.msra.mxu0 0.0
      %1823 = vmatprep.subr.mxu0 0.0
      %1824 = vmatpush1.msra.mxu0 0.0
      %1825 = vmatprep.subr.mxu0 0.0
      %1826 = vmatpush1.msra.mxu0 0.0
      %1827 = vmatprep.subr.mxu0 0.0
      %1828 = vmatpush1.msra.mxu0 0.0
      %1829 = vmatprep.subr.mxu0 0.0
      %1830 = vmatpush1.msra.mxu0 0.0
      %1831 = vmatprep.subr.mxu0 0.0
      %1832 = vmatpush1.msra.mxu0 0.0
      %1833 = vmatprep.subr.mxu0 0.0
      %1834 = vmatpush1.msra.mxu0 0.0
      %1835 = vmatprep.subr.mxu0 0.0
      %1836 = vmatpush1.msra.mxu0 0.0
      %1837 = vmatprep.subr.mxu0 0.0
      %1838 = vmatpush1.msra.mxu0 0.0
      %1839 = vmatprep.subr.mxu0 0.0
      %1840 = vmatpush1.msra.mxu0 0.0
      %1841 = vmatprep.subr.mxu0 0.0
      %1842 = vmatpush1.msra.mxu0 0.0
      %1843 = vmatprep.subr.mxu0 0.0
      %1844 = vmatpush1.msra.mxu0 0.0
      %1845 = vmatprep.subr.mxu0 0.0
      %1846 = vmatpush1.msra.mxu0 0.0
      %1847 = vmatprep.subr.mxu0 0.0
      %1848 = vmatpush1.msra.mxu0 0.0
      %1849 = vmatprep.subr.mxu0 0.0
      %1850 = vmatpush1.msra.mxu0 0.0
      %1851 = vmatprep.subr.mxu0 0.0
      %1852 = vmatpush1.msra.mxu0 0.0
      %1853 = vmatprep.subr.mxu0 0.0
      %1854 = vmatpush1.msra.mxu0 0.0
      %1855 = vmatprep.subr.mxu0 0.0
      %1856 = vmatpush1.msra.mxu0 0.0
      %1857 = vmatprep.subr.mxu0 0.0
      %1858 = vmatpush1.msra.mxu0 0.0
      %1859 = vmatprep.subr.mxu0 0.0
      %1860 = vmatpush1.msra.mxu0 0.0
      %1861 = vmatprep.subr.mxu0 0.0
      %1862 = vmatpush1.msra.mxu0 0.0
      %1863 = vmatprep.subr.mxu0 0.0
      %1864 = vmatpush1.msra.mxu0 0.0
      %1865 = vmatprep.subr.mxu0 0.0
      %1866 = vmatpush1.msra.mxu0 0.0
      %1867 = vmatprep.subr.mxu0 0.0
      %1868 = vmatpush1.msra.mxu0 0.0
      %1869 = vmatprep.subr.mxu0 0.0
      %1870 = vmatpush1.msra.mxu0 0.0
      %1871 = vmatprep.subr.mxu0 0.0
      %1872 = vmatpush1.msra.mxu0 0.0
      %1873 = vmatprep.subr.mxu0 0.0
      %1874 = vmatpush1.msra.mxu0 0.0
      %1875 = vmatprep.subr.mxu0 0.0
      %1876 = vmatpush1.msra.mxu0 0.0
      %1877 = vmatprep.mubr.f32.mxu0 0.0
      %1878 = vmatmul.mubr.f32.gmra.mrb[0].mxu0 %v1622
      %v1879 = vpop.f32.mrb[0].mxu0
      %v1880 = vadd.f32 %v1619, %v1879
      %v1881 = vpop.f32.mrb[0].mxu0
      %1882 = vmatprep.mubr.f32.mxu0 0.0
      %1883 = vmatmul.mubr.f32.gmra.mrb[0].mxu0 %v1625
      %v1884 = vpop.f32.mrb[0].mxu0
      %v1885 = vadd.f32 %v1619, %v1884
      %v1886 = vpop.f32.mrb[0].mxu0
      %1887 = vmatprep.mubr.f32.mxu0 0.0
      %1888 = vmatmul.mubr.f32.gmra.mrb[0].mxu0 %v1628
      %v1889 = vpop.f32.mrb[0].mxu0
      %v1890 = vadd.f32 %v1619, %v1889
      %v1891 = vpop.f32.mrb[0].mxu0
      %1892 = vmatprep.mubr.f32.mxu0 0.0
      %1893 = vmatmul.mubr.f32.gmra.mrb[0].mxu0 %v1631
      %v1894 = vpop.f32.mrb[0].mxu0
      %v1895 = vadd.f32 %v1619, %v1894
      %v1896 = vpop.f32.mrb[0].mxu0
      %1897 = vmatprep.mubr.f32.mxu0 0.0
      %1898 = vmatmul.mubr.f32.gmra.mrb[0].mxu0 %v1634
      %v1899 = vpop.f32.mrb[0].mxu0
      %v1900 = vadd.f32 %v1619, %v1899
      %v1901 = vpop.f32.mrb[0].mxu0
      %1902 = vmatprep.mubr.f32.mxu0 0.0
      %1903 = vmatmul.mubr.f32.gmra.mrb[0].mxu0 %v1637
      %v1904 = vpop.f32.mrb[0].mxu0
      %v1905 = vadd.f32 %v1619, %v1904
      %v1906 = vpop.f32.mrb[0].mxu0
      %1907 = vmatprep.mubr.f32.mxu0 0.0
      %1908 = vmatmul.mubr.f32.gmra.mrb[0].mxu0 %v1640
      %v1909 = vpop.f32.mrb[0].mxu0
      %v1910 = vadd.f32 %v1619, %v1909
      %v1911 = vpop.f32.mrb[0].mxu0
      %1912 = vmatprep.mubr.f32.mxu0 0.0
      %1913 = vmatmul.mubr.f32.gmra.mrb[0].mxu0 %v1643
      %v1914 = vpop.f32.mrb[0].mxu0
      %v1915 = vadd.f32 %v1619, %v1914
      %v1916 = vpop.f32.mrb[0].mxu0
      %1917 = vmatprep.mubr.f32.mxu0 0.0
      %1918 = vmatmul.mubr.f32.gmra.mrb[0].mxu0 %v1646
      %v1919 = vpop.f32.mrb[0].mxu0
      %v1920 = vadd.f32 %v1619, %v1919
      %v1921 = vpop.f32.mrb[0].mxu0
      %1922 = vmatprep.mubr.f32.mxu0 0.0
      %1923 = vmatmul.mubr.f32.gmra.mrb[0].mxu0 %v1649
      %v1924 = vpop.f32.mrb[0].mxu0
      %v1925 = vadd.f32 %v1619, %v1924
      %v1926 = vpop.f32.mrb[0].mxu0
      %1927 = vmatprep.mubr.f32.mxu0 0.0
      %1928 = vmatmul.mubr.f32.gmra.mrb[0].mxu0 %v1652
      %v1929 = vpop.f32.mrb[0].mxu0
      %v1930 = vadd.f32 %v1619, %v1929
      %v1931 = vpop.f32.mrb[0].mxu0
      %1932 = vmatprep.mubr.f32.mxu0 0.0
      %1933 = vmatmul.mubr.f32.gmra.mrb[0].mxu0 %v1655
      %v1934 = vpop.f32.mrb[0].mxu0
      %v1935 = vadd.f32 %v1619, %v1934
      %v1936 = vpop.f32.mrb[0].mxu0
      %1937 = vmatprep.mubr.f32.mxu0 0.0
      %1938 = vmatmul.mubr.f32.gmra.mrb[0].mxu0 %v1658
      %v1939 = vpop.f32.mrb[0].mxu0
      %v1940 = vadd.f32 %v1619, %v1939
      %v1941 = vpop.f32.mrb[0].mxu0
      %1942 = vmatprep.mubr.f32.mxu0 0.0
      %1943 = vmatmul.mubr.f32.gmra.mrb[0].mxu0 %v1661
      %v1944 = vpop.f32.mrb[0].mxu0
      %v1945 = vadd.f32 %v1619, %v1944
      %v1946 = vpop.f32.mrb[0].mxu0
      %1947 = vmatprep.mubr.f32.mxu0 0.0
      %1948 = vmatmul.mubr.f32.gmra.mrb[0].mxu0 %v1664
      %v1949 = vpop.f32.mrb[0].mxu0
      %v1950 = vadd.f32 %v1619, %v1949
      %v1951 = vpop.f32.mrb[0].mxu0
      %1952 = vmatprep.mubr.f32.mxu0 0.0
      %1953 = vmatmul.mubr.f32.gmra.mrb[0].mxu0 %v1667
      %v1954 = vpop.f32.mrb[0].mxu0
      %v1955 = vadd.f32 %v1619, %v1954
      %v1956 = vpop.f32.mrb[0].mxu0
      %1957 = vmatprep.mubr.f32.mxu0 0.0
      %1958 = vmatmul.mubr.f32.gmra.mrb[0].mxu0 %v1670
      %v1959 = vpop.f32.mrb[0].mxu0
      %v1960 = vadd.f32 %v1619, %v1959
      %v1961 = vpop.f32.mrb[0].mxu0
      %1962 = vmatprep.mubr.f32.mxu0 0.0
      %1963 = vmatmul.mubr.f32.gmra.mrb[0].mxu0 %v1673
      %v1964 = vpop.f32.mrb[0].mxu0
      %v1965 = vadd.f32 %v1619, %v1964
      %v1966 = vpop.f32.mrb[0].mxu0
      %1967 = vmatprep.mubr.f32.mxu0 0.0
      %1968 = vmatmul.mubr.f32.gmra.mrb[0].mxu0 %v1676
      %v1969 = vpop.f32.mrb[0].mxu0
      %v1970 = vadd.f32 %v1619, %v1969
      %v1971 = vpop.f32.mrb[0].mxu0
      %1972 = vmatprep.mubr.f32.mxu0 0.0
      %1973 = vmatmul.mubr.f32.gmra.mrb[0].mxu0 %v1679
      %v1974 = vpop.f32.mrb[0].mxu0
      %v1975 = vadd.f32 %v1619, %v1974
      %v1976 = vpop.f32.mrb[0].mxu0
      %1977 = vmatprep.mubr.f32.mxu0 0.0
      %1978 = vmatmul.mubr.f32.gmra.mrb[0].mxu0 %v1682
      %v1979 = vpop.f32.mrb[0].mxu0
      %v1980 = vadd.f32 %v1619, %v1979
      %v1981 = vpop.f32.mrb[0].mxu0
      %1982 = vmatprep.mubr.f32.mxu0 0.0
      %1983 = vmatmul.mubr.f32.gmra.mrb[0].mxu0 %v1685
      %v1984 = vpop.f32.mrb[0].mxu0
      %v1985 = vadd.f32 %v1619, %v1984
      %v1986 = vpop.f32.mrb[0].mxu0
      %1987 = vmatprep.mubr.f32.mxu0 0.0
      %1988 = vmatmul.mubr.f32.gmra.mrb[0].mxu0 %v1688
      %v1989 = vpop.f32.mrb[0].mxu0
      %v1990 = vadd.f32 %v1619, %v1989
      %v1991 = vpop.f32.mrb[0].mxu0
      %1992 = vmatprep.mubr.f32.mxu0 0.0
      %1993 = vmatmul.mubr.f32.gmra.mrb[0].mxu0 %v1691
      %v1994 = vpop.f32.mrb[0].mxu0
      %v1995 = vadd.f32 %v1619, %v1994
      %v1996 = vpop.f32.mrb[0].mxu0
      %1997 = vmatprep.mubr.f32.mxu0 0.0
      %1998 = vmatmul.mubr.f32.gmra.mrb[0].mxu0 %v1694
      %v1999 = vpop.f32.mrb[0].mxu0
      %v2000 = vadd.f32 %v1619, %v1999
      %v2001 = vpop.f32.mrb[0].mxu0
      %2002 = vmatprep.mubr.f32.mxu0 0.0
      %2003 = vmatmul.mubr.f32.gmra.mrb[0].mxu0 %v1697
      %v2004 = vpop.f32.mrb[0].mxu0
      %v2005 = vadd.f32 %v1619, %v2004
      %v2006 = vpop.f32.mrb[0].mxu0
      %2007 = vmatprep.mubr.f32.mxu0 0.0
      %2008 = vmatmul.mubr.f32.gmra.mrb[0].mxu0 %v1700
      %v2009 = vpop.f32.mrb[0].mxu0
      %v2010 = vadd.f32 %v1619, %v2009
      %v2011 = vpop.f32.mrb[0].mxu0
      %2012 = vmatprep.mubr.f32.mxu0 0.0
      %2013 = vmatmul.mubr.f32.gmra.mrb[0].mxu0 %v1703
      %v2014 = vpop.f32.mrb[0].mxu0
      %v2015 = vadd.f32 %v1619, %v2014
      %v2016 = vpop.f32.mrb[0].mxu0
      %2017 = vmatprep.mubr.f32.mxu0 0.0
      %2018 = vmatmul.mubr.f32.gmra.mrb[0].mxu0 %v1706
      %v2019 = vpop.f32.mrb[0].mxu0
      %v2020 = vadd.f32 %v1619, %v2019
      %v2021 = vpop.f32.mrb[0].mxu0
      %2022 = vmatprep.mubr.f32.mxu0 0.0
      %2023 = vmatmul.mubr.f32.gmra.mrb[0].mxu0 %v1709
      %v2024 = vpop.f32.mrb[0].mxu0
      %v2025 = vadd.f32 %v1619, %v2024
      %v2026 = vpop.f32.mrb[0].mxu0
      %2027 = vmatprep.mubr.f32.mxu0 0.0
      %2028 = vmatmul.mubr.f32.gmra.mrb[0].mxu0 %v1712
      %v2029 = vpop.f32.mrb[0].mxu0
      %v2030 = vadd.f32 %v1619, %v2029
      %v2031 = vpop.f32.mrb[0].mxu0
      %2032 = vmatprep.mubr.f32.mxu0 0.0
      %2033 = vmatmul.mubr.f32.gmra.mrb[0].mxu0 %v1715
      %v2034 = vpop.f32.mrb[0].mxu0
      %v2035 = vadd.f32 %v1619, %v2034
      %v2036 = vpop.f32.mrb[0].mxu0
      %2037 = vmatprep.mubr.f32.mxu0 0.0
      %2038 = vmatmul.mubr.f32.gmra.mrb[0].mxu0 %v1718
      %v2039 = vpop.f32.mrb[0].mxu0
      %v2040 = vadd.f32 %v1619, %v2039
      %v2041 = vpop.f32.mrb[0].mxu0
      %2042 = vmatprep.mubr.f32.mxu0 0.0
      %2043 = vmatmul.mubr.f32.gmra.mrb[0].mxu0 %v1721
      %v2044 = vpop.f32.mrb[0].mxu0
      %v2045 = vadd.f32 %v1619, %v2044
      %v2046 = vpop.f32.mrb[0].mxu0
      %2047 = vmatprep.mubr.f32.mxu0 0.0
      %2048 = vmatmul.mubr.f32.gmra.mrb[0].mxu0 %v1724
      %v2049 = vpop.f32.mrb[0].mxu0
      %v2050 = vadd.f32 %v1619, %v2049
      %v2051 = vpop.f32.mrb[0].mxu0
      %2052 = vmatprep.mubr.f32.mxu0 0.0
      %2053 = vmatmul.mubr.f32.gmra.mrb[0].mxu0 %v1727
      %v2054 = vpop.f32.mrb[0].mxu0
      %v2055 = vadd.f32 %v1619, %v2054
      %v2056 = vpop.f32.mrb[0].mxu0
      %2057 = vmatprep.mubr.f32.mxu0 0.0
      %2058 = vmatmul.mubr.f32.gmra.mrb[0].mxu0 %v1730
      %v2059 = vpop.f32.mrb[0].mxu0
      %v2060 = vadd.f32 %v1619, %v2059
      %v2061 = vpop.f32.mrb[0].mxu0
      %2062 = vmatprep.mubr.f32.mxu0 0.0
      %2063 = vmatmul.mubr.f32.gmra.mrb[0].mxu0 %v1733
      %v2064 = vpop.f32.mrb[0].mxu0
      %v2065 = vadd.f32 %v1619, %v2064
      %v2066 = vpop.f32.mrb[0].mxu0
      %2067 = vmatprep.mubr.f32.mxu0 0.0
      %2068 = vmatmul.mubr.f32.gmra.mrb[0].mxu0 %v1736
      %v2069 = vpop.f32.mrb[0].mxu0
      %v2070 = vadd.f32 %v1619, %v2069
      %v2071 = vpop.f32.mrb[0].mxu0
      %2072 = vmatprep.mubr.f32.mxu0 0.0
      %2073 = vmatmul.mubr.f32.gmra.mrb[0].mxu0 %v1739
      %v2074 = vpop.f32.mrb[0].mxu0
      %v2075 = vadd.f32 %v1619, %v2074
      %v2076 = vpop.f32.mrb[0].mxu0
      %2077 = vmatprep.mubr.f32.mxu0 0.0
      %2078 = vmatmul.mubr.f32.gmra.mrb[0].mxu0 %v1742
      %v2079 = vpop.f32.mrb[0].mxu0
      %v2080 = vadd.f32 %v1619, %v2079
      %v2081 = vpop.f32.mrb[0].mxu0
      %2082 = vmatprep.mubr.f32.mxu0 0.0
      %2083 = vmatmul.mubr.f32.gmra.mrb[0].mxu0 %v1745
      %v2084 = vpop.f32.mrb[0].mxu0
      %v2085 = vadd.f32 %v1619, %v2084
      %v2086 = vpop.f32.mrb[0].mxu0
      %2087 = vmatprep.mubr.f32.mxu0 0.0
      %2088 = vmatmul.mubr.f32.gmra.mrb[0].mxu0 %v1748
      %v2089 = vpop.f32.mrb[0].mxu0
      %v2090 = vadd.f32 %v1619, %v2089
      %v2091 = vpop.f32.mrb[0].mxu0
      %2092 = vmatprep.mubr.f32.mxu0 0.0
      %2093 = vmatmul.mubr.f32.gmra.mrb[0].mxu0 %v1751
      %v2094 = vpop.f32.mrb[0].mxu0
      %v2095 = vadd.f32 %v1619, %v2094
      %v2096 = vpop.f32.mrb[0].mxu0
      %2097 = vmatprep.mubr.f32.mxu0 0.0
      %2098 = vmatmul.mubr.f32.gmra.mrb[0].mxu0 %v1754
      %v2099 = vpop.f32.mrb[0].mxu0
      %v2100 = vadd.f32 %v1619, %v2099
      %v2101 = vpop.f32.mrb[0].mxu0
      %2102 = vmatprep.mubr.f32.mxu0 0.0
      %2103 = vmatmul.mubr.f32.gmra.mrb[0].mxu0 %v1757
      %v2104 = vpop.f32.mrb[0].mxu0
      %v2105 = vadd.f32 %v1619, %v2104
      %v2106 = vpop.f32.mrb[0].mxu0
      %2107 = vmatprep.mubr.f32.mxu0 0.0
      %2108 = vmatmul.mubr.f32.gmra.mrb[0].mxu0 %v1760
      %v2109 = vpop.f32.mrb[0].mxu0
      %v2110 = vadd.f32 %v1619, %v2109
      %v2111 = vpop.f32.mrb[0].mxu0
      %2112 = vmatprep.mubr.f32.mxu0 0.0
      %2113 = vmatmul.mubr.f32.gmra.mrb[0].mxu0 %v1763
      %v2114 = vpop.f32.mrb[0].mxu0
      %v2115 = vadd.f32 %v1619, %v2114
      %v2116 = vpop.f32.mrb[0].mxu0
      %2117 = vmatprep.mubr.f32.mxu0 0.0
      %2118 = vmatmul.mubr.f32.gmra.mrb[0].mxu0 %v1766
      %v2119 = vpop.f32.mrb[0].mxu0
      %v2120 = vadd.f32 %v1619, %v2119
      %v2121 = vpop.f32.mrb[0].mxu0
      %2122 = vmatprep.mubr.f32.mxu0 0.0
      %2123 = vmatmul.mubr.f32.gmra.mrb[0].mxu0 %v1769
      %v2124 = vpop.f32.mrb[0].mxu0
      %v2125 = vadd.f32 %v1619, %v2124
      %v2126 = vpop.f32.mrb[0].mxu0
      %2127 = vmatprep.mubr.f32.mxu0 0.0
      %2128 = vmatmul.mubr.f32.gmra.mrb[0].mxu0 %v1772
      %v2129 = vpop.f32.mrb[0].mxu0
      %v2130 = vadd.f32 %v1619, %v2129
      %v2131 = vpop.f32.mrb[0].mxu0
      %2132 = vmatprep.mubr.f32.mxu0 0.0
      %2133 = vmatmul.mubr.f32.gmra.mrb[0].mxu0 %v1775
      %v2134 = vpop.f32.mrb[0].mxu0
      %v2135 = vadd.f32 %v1619, %v2134
      %v2136 = vpop.f32.mrb[0].mxu0
      %2137 = vmatprep.mubr.f32.mxu0 0.0
      %2138 = vmatmul.mubr.f32.gmra.mrb[0].mxu0 %v1778
      %v2139 = vpop.f32.mrb[0].mxu0
      %v2140 = vadd.f32 %v1619, %v2139
      %v2141 = vpop.f32.mrb[0].mxu0
      %2142 = vmatprep.mubr.f32.mxu0 0.0
      %2143 = vmatmul.mubr.f32.gmra.mrb[0].mxu0 %v1781
      %v2144 = vpop.f32.mrb[0].mxu0
      %v2145 = vadd.f32 %v1619, %v2144
      %v2146 = vpop.f32.mrb[0].mxu0
      %2147 = vmatprep.mubr.f32.mxu0 0.0
      %2148 = vmatmul.mubr.f32.gmra.mrb[0].mxu0 %v1784
      %v2149 = vpop.f32.mrb[0].mxu0
      %v2150 = vadd.f32 %v1619, %v2149
      %v2151 = vpop.f32.mrb[0].mxu0
      %2152 = vmatprep.mubr.f32.mxu0 0.0
      %2153 = vmatmul.mubr.f32.gmra.mrb[0].mxu0 %v1787
      %v2154 = vpop.f32.mrb[0].mxu0
      %v2155 = vadd.f32 %v1619, %v2154
      %v2156 = vpop.f32.mrb[0].mxu0
      %2157 = vmatprep.mubr.f32.mxu0 0.0
      %2158 = vmatmul.mubr.f32.gmra.mrb[0].mxu0 %v1790
      %v2159 = vpop.f32.mrb[0].mxu0
      %v2160 = vadd.f32 %v1619, %v2159
      %v2161 = vpop.f32.mrb[0].mxu0
      %2162 = vmatprep.mubr.f32.mxu0 0.0
      %2163 = vmatmul.mubr.f32.gmra.mrb[0].mxu0 %v1793
      %v2164 = vpop.f32.mrb[0].mxu0
      %v2165 = vadd.f32 %v1619, %v2164
      %v2166 = vpop.f32.mrb[0].mxu0
      %2167 = vmatprep.mubr.f32.mxu0 0.0
      %2168 = vmatmul.mubr.f32.gmra.mrb[0].mxu0 %v1796
      %v2169 = vpop.f32.mrb[0].mxu0
      %v2170 = vadd.f32 %v1619, %v2169
      %v2171 = vpop.f32.mrb[0].mxu0
      %2172 = vmatprep.mubr.f32.mxu0 0.0
      %2173 = vmatmul.mubr.f32.gmra.mrb[0].mxu0 %v1799
      %v2174 = vpop.f32.mrb[0].mxu0
      %v2175 = vadd.f32 %v1619, %v2174
      %v2176 = vpop.f32.mrb[0].mxu0
      %2177 = vmatprep.mubr.f32.mxu0 0.0
      %2178 = vmatmul.mubr.f32.gmra.mrb[0].mxu0 %v1802
      %v2179 = vpop.f32.mrb[0].mxu0
      %v2180 = vadd.f32 %v1619, %v2179
      %v2181 = vpop.f32.mrb[0].mxu0
      %2182 = vmatprep.mubr.f32.mxu0 0.0
      %2183 = vmatmul.mubr.f32.gmra.mrb[0].mxu0 %v1805
      %v2184 = vpop.f32.mrb[0].mxu0
      %v2185 = vadd.f32 %v1619, %v2184
      %v2186 = vpop.f32.mrb[0].mxu0
      %2187 = vmatprep.mubr.f32.mxu0 0.0
      %2188 = vmatmul.mubr.f32.gmra.mrb[0].mxu0 %v1808
      %v2189 = vpop.f32.mrb[0].mxu0
      %v2190 = vadd.f32 %v1619, %v2189
      %v2191 = vpop.f32.mrb[0].mxu0
      %2192 = vmatprep.mubr.f32.mxu0 0.0
      %2193 = vmatmul.mubr.f32.gmra.mrb[0].mxu0 %v1811
      %v2194 = vpop.f32.mrb[0].mxu0
      %v2195 = vadd.f32 %v1619, %v2194
      %v2196 = vpop.f32.mrb[0].mxu0
      %2197 = vdwg.mxu0
      %v2198 = vtanh.pop %v1880
      %v2199 = vtanh.pop %v1885
      %v2200 = vtanh.pop %v1890
      %v2201 = vtanh.pop %v1895
      %v2202 = vtanh.pop %v1900
      %v2203 = vtanh.pop %v1905
      %v2204 = vtanh.pop %v1910
      %v2205 = vtanh.pop %v1915
      %v2206 = vtanh.pop %v1920
      %v2207 = vtanh.pop %v1925
      %v2208 = vtanh.pop %v1930
      %v2209 = vtanh.pop %v1935
      %v2210 = vtanh.pop %v1940
      %v2211 = vtanh.pop %v1945
      %v2212 = vtanh.pop %v1950
      %v2213 = vtanh.pop %v1955
      %v2214 = vtanh.pop %v1960
      %v2215 = vtanh.pop %v1965
      %v2216 = vtanh.pop %v1970
      %v2217 = vtanh.pop %v1975
      %v2218 = vtanh.pop %v1980
      %v2219 = vtanh.pop %v1985
      %v2220 = vtanh.pop %v1990
      %v2221 = vtanh.pop %v1995
      %v2222 = vtanh.pop %v2000
      %v2223 = vtanh.pop %v2005
      %v2224 = vtanh.pop %v2010
      %v2225 = vtanh.pop %v2015
      %v2226 = vtanh.pop %v2020
      %v2227 = vtanh.pop %v2025
      %v2228 = vtanh.pop %v2030
      %v2229 = vtanh.pop %v2035
      %v2230 = vtanh.pop %v2040
      %v2231 = vtanh.pop %v2045
      %v2232 = vtanh.pop %v2050
      %v2233 = vtanh.pop %v2055
      %v2234 = vtanh.pop %v2060
      %v2235 = vtanh.pop %v2065
      %v2236 = vtanh.pop %v2070
      %v2237 = vtanh.pop %v2075
      %v2238 = vtanh.pop %v2080
      %v2239 = vtanh.pop %v2085
      %v2240 = vtanh.pop %v2090
      %v2241 = vtanh.pop %v2095
      %v2242 = vtanh.pop %v2100
      %v2243 = vtanh.pop %v2105
      %v2244 = vtanh.pop %v2110
      %v2245 = vtanh.pop %v2115
      %v2246 = vtanh.pop %v2120
      %v2247 = vtanh.pop %v2125
      %v2248 = vtanh.pop %v2130
      %v2249 = vtanh.pop %v2135
      %v2250 = vtanh.pop %v2140
      %v2251 = vtanh.pop %v2145
      %v2252 = vtanh.pop %v2150
      %v2253 = vtanh.pop %v2155
      %v2254 = vtanh.pop %v2160
      %v2255 = vtanh.pop %v2165
      %v2256 = vtanh.pop %v2170
      %v2257 = vtanh.pop %v2175
      %v2258 = vtanh.pop %v2180
      %v2259 = vtanh.pop %v2185
      %v2260 = vtanh.pop %v2190
      %v2261 = vtanh.pop %v2195
      %v2262 = vadd.f32 %v1480, %v2198
      %v2263 = vadd.f32 %v1481, %v2199
      %v2264 = vadd.f32 %v1482, %v2200
      %v2265 = vadd.f32 %v1483, %v2201
      %v2266 = vadd.f32 %v1484, %v2202
      %v2267 = vadd.f32 %v1485, %v2203
      %v2268 = vadd.f32 %v1486, %v2204
      %v2269 = vadd.f32 %v1487, %v2205
      %v2270 = vadd.f32 %v1488, %v2206
      %v2271 = vadd.f32 %v1489, %v2207
      %v2272 = vadd.f32 %v1490, %v2208
      %v2273 = vadd.f32 %v1491, %v2209
      %v2274 = vadd.f32 %v1492, %v2210
      %v2275 = vadd.f32 %v1493, %v2211
      %v2276 = vadd.f32 %v1494, %v2212
      %v2277 = vadd.f32 %v1495, %v2213
      %v2278 = vadd.f32 %v1496, %v2214
      %v2279 = vadd.f32 %v1497, %v2215
      %v2280 = vadd.f32 %v1498, %v2216
      %v2281 = vadd.f32 %v1499, %v2217
      %v2282 = vadd.f32 %v1500, %v2218
      %v2283 = vadd.f32 %v1501, %v2219
      %v2284 = vadd.f32 %v1502, %v2220
      %v2285 = vadd.f32 %v1503, %v2221
      %v2286 = vadd.f32 %v1504, %v2222
      %v2287 = vadd.f32 %v1505, %v2223
      %v2288 = vadd.f32 %v1506, %v2224
      %v2289 = vadd.f32 %v1507, %v2225
      %v2290 = vadd.f32 %v1508, %v2226
      %v2291 = vadd.f32 %v1509, %v2227
      %v2292 = vadd.f32 %v1510, %v2228
      %v2293 = vadd.f32 %v1511, %v2229
      %v2294 = vadd.f32 %v1512, %v2230
      %v2295 = vadd.f32 %v1513, %v2231
      %v2296 = vadd.f32 %v1514, %v2232
      %v2297 = vadd.f32 %v1515, %v2233
      %v2298 = vadd.f32 %v1516, %v2234
      %v2299 = vadd.f32 %v1517, %v2235
      %v2300 = vadd.f32 %v1518, %v2236
      %v2301 = vadd.f32 %v1519, %v2237
      %v2302 = vadd.f32 %v1520, %v2238
      %v2303 = vadd.f32 %v1521, %v2239
      %v2304 = vadd.f32 %v1522, %v2240
      %v2305 = vadd.f32 %v1523, %v2241
      %v2306 = vadd.f32 %v1524, %v2242
      %v2307 = vadd.f32 %v1525, %v2243
      %v2308 = vadd.f32 %v1526, %v2244
      %v2309 = vadd.f32 %v1527, %v2245
      %v2310 = vadd.f32 %v1528, %v2246
      %v2311 = vadd.f32 %v1529, %v2247
      %v2312 = vadd.f32 %v1530, %v2248
      %v2313 = vadd.f32 %v1531, %v2249
      %v2314 = vadd.f32 %v1532, %v2250
      %v2315 = vadd.f32 %v1533, %v2251
      %v2316 = vadd.f32 %v1534, %v2252
      %v2317 = vadd.f32 %v1535, %v2253
      %v2318 = vadd.f32 %v1536, %v2254
      %v2319 = vadd.f32 %v1537, %v2255
      %v2320 = vadd.f32 %v1538, %v2256
      %v2321 = vadd.f32 %v1539, %v2257
      %v2322 = vadd.f32 %v1540, %v2258
      %v2323 = vadd.f32 %v1541, %v2259
      %v2324 = vadd.f32 %v1542, %v2260
      %v2325 = vadd.f32 %v1543, %v2261
      %s2326 = scalar_lea.vmem %s1, 96
      %v2327 = vld [vmem:[%s2326] sm:$0xff]
      %v2328 = vld [vmem:[%s2326 + $0x8] sm:$0xff]
      %v2329 = vld [vmem:[%s2326 + $0x10] sm:$0xff]
      %v2330 = vld [vmem:[%s2326 + $0x18] sm:$0xff]
      %s2331 = scalar_lea.vmem %s2, 3
      %v2332 = vld [vmem:[%s2331] sm:$0x1]
      %v2334 = vlaneseq
      %v2335 = vshrl.u32 %v2334, 7
      %v2336 = vsub.s32 0, %v2335
      %v2337 = vrot.slane %v2332, %v2336
      %v2340 = vsel %vm902, %v2262, 0
      %v2343 = vsel %vm902, %v2263, 0
      %v2346 = vsel %vm902, %v2264, 0
      %v2349 = vsel %vm902, %v2265, 0
      %v2352 = vsel %vm902, %v2266, 0
      %v2355 = vsel %vm902, %v2267, 0
      %v2358 = vsel %vm902, %v2268, 0
      %v2361 = vsel %vm902, %v2269, 0
      %v2364 = vsel %vm902, %v2270, 0
      %v2367 = vsel %vm902, %v2271, 0
      %v2370 = vsel %vm902, %v2272, 0
      %v2373 = vsel %vm902, %v2273, 0
      %v2376 = vsel %vm902, %v2274, 0
      %v2379 = vsel %vm902, %v2275, 0
      %v2382 = vsel %vm902, %v2276, 0
      %v2385 = vsel %vm902, %v2277, 0
      %v2388 = vsel %vm902, %v2278, 0
      %v2391 = vsel %vm902, %v2279, 0
      %v2394 = vsel %vm902, %v2280, 0
      %v2397 = vsel %vm902, %v2281, 0
      %v2400 = vsel %vm902, %v2282, 0
      %v2403 = vsel %vm902, %v2283, 0
      %v2406 = vsel %vm902, %v2284, 0
      %v2409 = vsel %vm902, %v2285, 0
      %v2412 = vsel %vm902, %v2286, 0
      %v2415 = vsel %vm902, %v2287, 0
      %v2418 = vsel %vm902, %v2288, 0
      %v2421 = vsel %vm902, %v2289, 0
      %v2424 = vsel %vm902, %v2290, 0
      %v2427 = vsel %vm902, %v2291, 0
      %v2430 = vsel %vm902, %v2292, 0
      %v2433 = vsel %vm902, %v2293, 0
      %v2436 = vsel %vm902, %v2294, 0
      %v2439 = vsel %vm902, %v2295, 0
      %v2442 = vsel %vm902, %v2296, 0
      %v2445 = vsel %vm902, %v2297, 0
      %v2448 = vsel %vm902, %v2298, 0
      %v2451 = vsel %vm902, %v2299, 0
      %v2454 = vsel %vm902, %v2300, 0
      %v2457 = vsel %vm902, %v2301, 0
      %v2460 = vsel %vm902, %v2302, 0
      %v2463 = vsel %vm902, %v2303, 0
      %v2466 = vsel %vm902, %v2304, 0
      %v2469 = vsel %vm902, %v2305, 0
      %v2472 = vsel %vm902, %v2306, 0
      %v2475 = vsel %vm902, %v2307, 0
      %v2478 = vsel %vm902, %v2308, 0
      %v2481 = vsel %vm902, %v2309, 0
      %v2484 = vsel %vm902, %v2310, 0
      %v2487 = vsel %vm902, %v2311, 0
      %v2490 = vsel %vm902, %v2312, 0
      %v2493 = vsel %vm902, %v2313, 0
      %v2496 = vsel %vm902, %v2314, 0
      %v2499 = vsel %vm902, %v2315, 0
      %v2502 = vsel %vm902, %v2316, 0
      %v2505 = vsel %vm902, %v2317, 0
      %v2508 = vsel %vm902, %v2318, 0
      %v2511 = vsel %vm902, %v2319, 0
      %v2514 = vsel %vm902, %v2320, 0
      %v2517 = vsel %vm902, %v2321, 0
      %v2520 = vsel %vm902, %v2322, 0
      %v2523 = vsel %vm902, %v2323, 0
      %v2526 = vsel %vm902, %v2324, 0
      %v2529 = vsel %vm902, %v2325, 0
      %2531 = vmatprep.subr.mxu0 0.0
      %2532 = vmatpush1.msra.mxu0 %v2327
      %2533 = vmatprep.subr.mxu0 0.0
      %2534 = vmatpush1.msra.mxu0 %v2328
      %2535 = vmatprep.subr.mxu0 0.0
      %2536 = vmatpush1.msra.mxu0 %v2329
      %2537 = vmatprep.subr.mxu0 0.0
      %2538 = vmatpush1.msra.mxu0 %v2330
      %2539 = vmatprep.subr.mxu0 0.0
      %2540 = vmatpush1.msra.mxu0 0.0
      %2541 = vmatprep.subr.mxu0 0.0
      %2542 = vmatpush1.msra.mxu0 0.0
      %2543 = vmatprep.subr.mxu0 0.0
      %2544 = vmatpush1.msra.mxu0 0.0
      %2545 = vmatprep.subr.mxu0 0.0
      %2546 = vmatpush1.msra.mxu0 0.0
      %2547 = vmatprep.subr.mxu0 0.0
      %2548 = vmatpush1.msra.mxu0 0.0
      %2549 = vmatprep.subr.mxu0 0.0
      %2550 = vmatpush1.msra.mxu0 0.0
      %2551 = vmatprep.subr.mxu0 0.0
      %2552 = vmatpush1.msra.mxu0 0.0
      %2553 = vmatprep.subr.mxu0 0.0
      %2554 = vmatpush1.msra.mxu0 0.0
      %2555 = vmatprep.subr.mxu0 0.0
      %2556 = vmatpush1.msra.mxu0 0.0
      %2557 = vmatprep.subr.mxu0 0.0
      %2558 = vmatpush1.msra.mxu0 0.0
      %2559 = vmatprep.subr.mxu0 0.0
      %2560 = vmatpush1.msra.mxu0 0.0
      %2561 = vmatprep.subr.mxu0 0.0
      %2562 = vmatpush1.msra.mxu0 0.0
      %2563 = vmatprep.subr.mxu0 0.0
      %2564 = vmatpush1.msra.mxu0 0.0
      %2565 = vmatprep.subr.mxu0 0.0
      %2566 = vmatpush1.msra.mxu0 0.0
      %2567 = vmatprep.subr.mxu0 0.0
      %2568 = vmatpush1.msra.mxu0 0.0
      %2569 = vmatprep.subr.mxu0 0.0
      %2570 = vmatpush1.msra.mxu0 0.0
      %2571 = vmatprep.subr.mxu0 0.0
      %2572 = vmatpush1.msra.mxu0 0.0
      %2573 = vmatprep.subr.mxu0 0.0
      %2574 = vmatpush1.msra.mxu0 0.0
      %2575 = vmatprep.subr.mxu0 0.0
      %2576 = vmatpush1.msra.mxu0 0.0
      %2577 = vmatprep.subr.mxu0 0.0
      %2578 = vmatpush1.msra.mxu0 0.0
      %2579 = vmatprep.subr.mxu0 0.0
      %2580 = vmatpush1.msra.mxu0 0.0
      %2581 = vmatprep.subr.mxu0 0.0
      %2582 = vmatpush1.msra.mxu0 0.0
      %2583 = vmatprep.subr.mxu0 0.0
      %2584 = vmatpush1.msra.mxu0 0.0
      %2585 = vmatprep.subr.mxu0 0.0
      %2586 = vmatpush1.msra.mxu0 0.0
      %2587 = vmatprep.subr.mxu0 0.0
      %2588 = vmatpush1.msra.mxu0 0.0
      %2589 = vmatprep.subr.mxu0 0.0
      %2590 = vmatpush1.msra.mxu0 0.0
      %2591 = vmatprep.subr.mxu0 0.0
      %2592 = vmatpush1.msra.mxu0 0.0
      %2593 = vmatprep.subr.mxu0 0.0
      %2594 = vmatpush1.msra.mxu0 0.0
      %2595 = vmatprep.mubr.f32.mxu0 0.0
      %2596 = vmatmul.mubr.f32.gmra.mrb[0].mxu0 %v2340
      %v2597 = vpop.f32.mrb[0].mxu0
      %v2598 = vadd.f32 %v2337, %v2597
      %v2599 = vpop.f32.mrb[0].mxu0
      %2600 = vmatprep.mubr.f32.mxu0 0.0
      %2601 = vmatmul.mubr.f32.gmra.mrb[0].mxu0 %v2343
      %v2602 = vpop.f32.mrb[0].mxu0
      %v2603 = vadd.f32 %v2337, %v2602
      %v2604 = vpop.f32.mrb[0].mxu0
      %2605 = vmatprep.mubr.f32.mxu0 0.0
      %2606 = vmatmul.mubr.f32.gmra.mrb[0].mxu0 %v2346
      %v2607 = vpop.f32.mrb[0].mxu0
      %v2608 = vadd.f32 %v2337, %v2607
      %v2609 = vpop.f32.mrb[0].mxu0
      %2610 = vmatprep.mubr.f32.mxu0 0.0
      %2611 = vmatmul.mubr.f32.gmra.mrb[0].mxu0 %v2349
      %v2612 = vpop.f32.mrb[0].mxu0
      %v2613 = vadd.f32 %v2337, %v2612
      %v2614 = vpop.f32.mrb[0].mxu0
      %2615 = vmatprep.mubr.f32.mxu0 0.0
      %2616 = vmatmul.mubr.f32.gmra.mrb[0].mxu0 %v2352
      %v2617 = vpop.f32.mrb[0].mxu0
      %v2618 = vadd.f32 %v2337, %v2617
      %v2619 = vpop.f32.mrb[0].mxu0
      %2620 = vmatprep.mubr.f32.mxu0 0.0
      %2621 = vmatmul.mubr.f32.gmra.mrb[0].mxu0 %v2355
      %v2622 = vpop.f32.mrb[0].mxu0
      %v2623 = vadd.f32 %v2337, %v2622
      %v2624 = vpop.f32.mrb[0].mxu0
      %2625 = vmatprep.mubr.f32.mxu0 0.0
      %2626 = vmatmul.mubr.f32.gmra.mrb[0].mxu0 %v2358
      %v2627 = vpop.f32.mrb[0].mxu0
      %v2628 = vadd.f32 %v2337, %v2627
      %v2629 = vpop.f32.mrb[0].mxu0
      %2630 = vmatprep.mubr.f32.mxu0 0.0
      %2631 = vmatmul.mubr.f32.gmra.mrb[0].mxu0 %v2361
      %v2632 = vpop.f32.mrb[0].mxu0
      %v2633 = vadd.f32 %v2337, %v2632
      %v2634 = vpop.f32.mrb[0].mxu0
      %2635 = vmatprep.mubr.f32.mxu0 0.0
      %2636 = vmatmul.mubr.f32.gmra.mrb[0].mxu0 %v2364
      %v2637 = vpop.f32.mrb[0].mxu0
      %v2638 = vadd.f32 %v2337, %v2637
      %v2639 = vpop.f32.mrb[0].mxu0
      %2640 = vmatprep.mubr.f32.mxu0 0.0
      %2641 = vmatmul.mubr.f32.gmra.mrb[0].mxu0 %v2367
      %v2642 = vpop.f32.mrb[0].mxu0
      %v2643 = vadd.f32 %v2337, %v2642
      %v2644 = vpop.f32.mrb[0].mxu0
      %2645 = vmatprep.mubr.f32.mxu0 0.0
      %2646 = vmatmul.mubr.f32.gmra.mrb[0].mxu0 %v2370
      %v2647 = vpop.f32.mrb[0].mxu0
      %v2648 = vadd.f32 %v2337, %v2647
      %v2649 = vpop.f32.mrb[0].mxu0
      %2650 = vmatprep.mubr.f32.mxu0 0.0
      %2651 = vmatmul.mubr.f32.gmra.mrb[0].mxu0 %v2373
      %v2652 = vpop.f32.mrb[0].mxu0
      %v2653 = vadd.f32 %v2337, %v2652
      %v2654 = vpop.f32.mrb[0].mxu0
      %2655 = vmatprep.mubr.f32.mxu0 0.0
      %2656 = vmatmul.mubr.f32.gmra.mrb[0].mxu0 %v2376
      %v2657 = vpop.f32.mrb[0].mxu0
      %v2658 = vadd.f32 %v2337, %v2657
      %v2659 = vpop.f32.mrb[0].mxu0
      %2660 = vmatprep.mubr.f32.mxu0 0.0
      %2661 = vmatmul.mubr.f32.gmra.mrb[0].mxu0 %v2379
      %v2662 = vpop.f32.mrb[0].mxu0
      %v2663 = vadd.f32 %v2337, %v2662
      %v2664 = vpop.f32.mrb[0].mxu0
      %2665 = vmatprep.mubr.f32.mxu0 0.0
      %2666 = vmatmul.mubr.f32.gmra.mrb[0].mxu0 %v2382
      %v2667 = vpop.f32.mrb[0].mxu0
      %v2668 = vadd.f32 %v2337, %v2667
      %v2669 = vpop.f32.mrb[0].mxu0
      %2670 = vmatprep.mubr.f32.mxu0 0.0
      %2671 = vmatmul.mubr.f32.gmra.mrb[0].mxu0 %v2385
      %v2672 = vpop.f32.mrb[0].mxu0
      %v2673 = vadd.f32 %v2337, %v2672
      %v2674 = vpop.f32.mrb[0].mxu0
      %2675 = vmatprep.mubr.f32.mxu0 0.0
      %2676 = vmatmul.mubr.f32.gmra.mrb[0].mxu0 %v2388
      %v2677 = vpop.f32.mrb[0].mxu0
      %v2678 = vadd.f32 %v2337, %v2677
      %v2679 = vpop.f32.mrb[0].mxu0
      %2680 = vmatprep.mubr.f32.mxu0 0.0
      %2681 = vmatmul.mubr.f32.gmra.mrb[0].mxu0 %v2391
      %v2682 = vpop.f32.mrb[0].mxu0
      %v2683 = vadd.f32 %v2337, %v2682
      %v2684 = vpop.f32.mrb[0].mxu0
      %2685 = vmatprep.mubr.f32.mxu0 0.0
      %2686 = vmatmul.mubr.f32.gmra.mrb[0].mxu0 %v2394
      %v2687 = vpop.f32.mrb[0].mxu0
      %v2688 = vadd.f32 %v2337, %v2687
      %v2689 = vpop.f32.mrb[0].mxu0
      %2690 = vmatprep.mubr.f32.mxu0 0.0
      %2691 = vmatmul.mubr.f32.gmra.mrb[0].mxu0 %v2397
      %v2692 = vpop.f32.mrb[0].mxu0
      %v2693 = vadd.f32 %v2337, %v2692
      %v2694 = vpop.f32.mrb[0].mxu0
      %2695 = vmatprep.mubr.f32.mxu0 0.0
      %2696 = vmatmul.mubr.f32.gmra.mrb[0].mxu0 %v2400
      %v2697 = vpop.f32.mrb[0].mxu0
      %v2698 = vadd.f32 %v2337, %v2697
      %v2699 = vpop.f32.mrb[0].mxu0
      %2700 = vmatprep.mubr.f32.mxu0 0.0
      %2701 = vmatmul.mubr.f32.gmra.mrb[0].mxu0 %v2403
      %v2702 = vpop.f32.mrb[0].mxu0
      %v2703 = vadd.f32 %v2337, %v2702
      %v2704 = vpop.f32.mrb[0].mxu0
      %2705 = vmatprep.mubr.f32.mxu0 0.0
      %2706 = vmatmul.mubr.f32.gmra.mrb[0].mxu0 %v2406
      %v2707 = vpop.f32.mrb[0].mxu0
      %v2708 = vadd.f32 %v2337, %v2707
      %v2709 = vpop.f32.mrb[0].mxu0
      %2710 = vmatprep.mubr.f32.mxu0 0.0
      %2711 = vmatmul.mubr.f32.gmra.mrb[0].mxu0 %v2409
      %v2712 = vpop.f32.mrb[0].mxu0
      %v2713 = vadd.f32 %v2337, %v2712
      %v2714 = vpop.f32.mrb[0].mxu0
      %2715 = vmatprep.mubr.f32.mxu0 0.0
      %2716 = vmatmul.mubr.f32.gmra.mrb[0].mxu0 %v2412
      %v2717 = vpop.f32.mrb[0].mxu0
      %v2718 = vadd.f32 %v2337, %v2717
      %v2719 = vpop.f32.mrb[0].mxu0
      %2720 = vmatprep.mubr.f32.mxu0 0.0
      %2721 = vmatmul.mubr.f32.gmra.mrb[0].mxu0 %v2415
      %v2722 = vpop.f32.mrb[0].mxu0
      %v2723 = vadd.f32 %v2337, %v2722
      %v2724 = vpop.f32.mrb[0].mxu0
      %2725 = vmatprep.mubr.f32.mxu0 0.0
      %2726 = vmatmul.mubr.f32.gmra.mrb[0].mxu0 %v2418
      %v2727 = vpop.f32.mrb[0].mxu0
      %v2728 = vadd.f32 %v2337, %v2727
      %v2729 = vpop.f32.mrb[0].mxu0
      %2730 = vmatprep.mubr.f32.mxu0 0.0
      %2731 = vmatmul.mubr.f32.gmra.mrb[0].mxu0 %v2421
      %v2732 = vpop.f32.mrb[0].mxu0
      %v2733 = vadd.f32 %v2337, %v2732
      %v2734 = vpop.f32.mrb[0].mxu0
      %2735 = vmatprep.mubr.f32.mxu0 0.0
      %2736 = vmatmul.mubr.f32.gmra.mrb[0].mxu0 %v2424
      %v2737 = vpop.f32.mrb[0].mxu0
      %v2738 = vadd.f32 %v2337, %v2737
      %v2739 = vpop.f32.mrb[0].mxu0
      %2740 = vmatprep.mubr.f32.mxu0 0.0
      %2741 = vmatmul.mubr.f32.gmra.mrb[0].mxu0 %v2427
      %v2742 = vpop.f32.mrb[0].mxu0
      %v2743 = vadd.f32 %v2337, %v2742
      %v2744 = vpop.f32.mrb[0].mxu0
      %2745 = vmatprep.mubr.f32.mxu0 0.0
      %2746 = vmatmul.mubr.f32.gmra.mrb[0].mxu0 %v2430
      %v2747 = vpop.f32.mrb[0].mxu0
      %v2748 = vadd.f32 %v2337, %v2747
      %v2749 = vpop.f32.mrb[0].mxu0
      %2750 = vmatprep.mubr.f32.mxu0 0.0
      %2751 = vmatmul.mubr.f32.gmra.mrb[0].mxu0 %v2433
      %v2752 = vpop.f32.mrb[0].mxu0
      %v2753 = vadd.f32 %v2337, %v2752
      %v2754 = vpop.f32.mrb[0].mxu0
      %2755 = vmatprep.mubr.f32.mxu0 0.0
      %2756 = vmatmul.mubr.f32.gmra.mrb[0].mxu0 %v2436
      %v2757 = vpop.f32.mrb[0].mxu0
      %v2758 = vadd.f32 %v2337, %v2757
      %v2759 = vpop.f32.mrb[0].mxu0
      %2760 = vmatprep.mubr.f32.mxu0 0.0
      %2761 = vmatmul.mubr.f32.gmra.mrb[0].mxu0 %v2439
      %v2762 = vpop.f32.mrb[0].mxu0
      %v2763 = vadd.f32 %v2337, %v2762
      %v2764 = vpop.f32.mrb[0].mxu0
      %2765 = vmatprep.mubr.f32.mxu0 0.0
      %2766 = vmatmul.mubr.f32.gmra.mrb[0].mxu0 %v2442
      %v2767 = vpop.f32.mrb[0].mxu0
      %v2768 = vadd.f32 %v2337, %v2767
      %v2769 = vpop.f32.mrb[0].mxu0
      %2770 = vmatprep.mubr.f32.mxu0 0.0
      %2771 = vmatmul.mubr.f32.gmra.mrb[0].mxu0 %v2445
      %v2772 = vpop.f32.mrb[0].mxu0
      %v2773 = vadd.f32 %v2337, %v2772
      %v2774 = vpop.f32.mrb[0].mxu0
      %2775 = vmatprep.mubr.f32.mxu0 0.0
      %2776 = vmatmul.mubr.f32.gmra.mrb[0].mxu0 %v2448
      %v2777 = vpop.f32.mrb[0].mxu0
      %v2778 = vadd.f32 %v2337, %v2777
      %v2779 = vpop.f32.mrb[0].mxu0
      %2780 = vmatprep.mubr.f32.mxu0 0.0
      %2781 = vmatmul.mubr.f32.gmra.mrb[0].mxu0 %v2451
      %v2782 = vpop.f32.mrb[0].mxu0
      %v2783 = vadd.f32 %v2337, %v2782
      %v2784 = vpop.f32.mrb[0].mxu0
      %2785 = vmatprep.mubr.f32.mxu0 0.0
      %2786 = vmatmul.mubr.f32.gmra.mrb[0].mxu0 %v2454
      %v2787 = vpop.f32.mrb[0].mxu0
      %v2788 = vadd.f32 %v2337, %v2787
      %v2789 = vpop.f32.mrb[0].mxu0
      %2790 = vmatprep.mubr.f32.mxu0 0.0
      %2791 = vmatmul.mubr.f32.gmra.mrb[0].mxu0 %v2457
      %v2792 = vpop.f32.mrb[0].mxu0
      %v2793 = vadd.f32 %v2337, %v2792
      %v2794 = vpop.f32.mrb[0].mxu0
      %2795 = vmatprep.mubr.f32.mxu0 0.0
      %2796 = vmatmul.mubr.f32.gmra.mrb[0].mxu0 %v2460
      %v2797 = vpop.f32.mrb[0].mxu0
      %v2798 = vadd.f32 %v2337, %v2797
      %v2799 = vpop.f32.mrb[0].mxu0
      %2800 = vmatprep.mubr.f32.mxu0 0.0
      %2801 = vmatmul.mubr.f32.gmra.mrb[0].mxu0 %v2463
      %v2802 = vpop.f32.mrb[0].mxu0
      %v2803 = vadd.f32 %v2337, %v2802
      %v2804 = vpop.f32.mrb[0].mxu0
      %2805 = vmatprep.mubr.f32.mxu0 0.0
      %2806 = vmatmul.mubr.f32.gmra.mrb[0].mxu0 %v2466
      %v2807 = vpop.f32.mrb[0].mxu0
      %v2808 = vadd.f32 %v2337, %v2807
      %v2809 = vpop.f32.mrb[0].mxu0
      %2810 = vmatprep.mubr.f32.mxu0 0.0
      %2811 = vmatmul.mubr.f32.gmra.mrb[0].mxu0 %v2469
      %v2812 = vpop.f32.mrb[0].mxu0
      %v2813 = vadd.f32 %v2337, %v2812
      %v2814 = vpop.f32.mrb[0].mxu0
      %2815 = vmatprep.mubr.f32.mxu0 0.0
      %2816 = vmatmul.mubr.f32.gmra.mrb[0].mxu0 %v2472
      %v2817 = vpop.f32.mrb[0].mxu0
      %v2818 = vadd.f32 %v2337, %v2817
      %v2819 = vpop.f32.mrb[0].mxu0
      %2820 = vmatprep.mubr.f32.mxu0 0.0
      %2821 = vmatmul.mubr.f32.gmra.mrb[0].mxu0 %v2475
      %v2822 = vpop.f32.mrb[0].mxu0
      %v2823 = vadd.f32 %v2337, %v2822
      %v2824 = vpop.f32.mrb[0].mxu0
      %2825 = vmatprep.mubr.f32.mxu0 0.0
      %2826 = vmatmul.mubr.f32.gmra.mrb[0].mxu0 %v2478
      %v2827 = vpop.f32.mrb[0].mxu0
      %v2828 = vadd.f32 %v2337, %v2827
      %v2829 = vpop.f32.mrb[0].mxu0
      %2830 = vmatprep.mubr.f32.mxu0 0.0
      %2831 = vmatmul.mubr.f32.gmra.mrb[0].mxu0 %v2481
      %v2832 = vpop.f32.mrb[0].mxu0
      %v2833 = vadd.f32 %v2337, %v2832
      %v2834 = vpop.f32.mrb[0].mxu0
      %2835 = vmatprep.mubr.f32.mxu0 0.0
      %2836 = vmatmul.mubr.f32.gmra.mrb[0].mxu0 %v2484
      %v2837 = vpop.f32.mrb[0].mxu0
      %v2838 = vadd.f32 %v2337, %v2837
      %v2839 = vpop.f32.mrb[0].mxu0
      %2840 = vmatprep.mubr.f32.mxu0 0.0
      %2841 = vmatmul.mubr.f32.gmra.mrb[0].mxu0 %v2487
      %v2842 = vpop.f32.mrb[0].mxu0
      %v2843 = vadd.f32 %v2337, %v2842
      %v2844 = vpop.f32.mrb[0].mxu0
      %2845 = vmatprep.mubr.f32.mxu0 0.0
      %2846 = vmatmul.mubr.f32.gmra.mrb[0].mxu0 %v2490
      %v2847 = vpop.f32.mrb[0].mxu0
      %v2848 = vadd.f32 %v2337, %v2847
      %v2849 = vpop.f32.mrb[0].mxu0
      %2850 = vmatprep.mubr.f32.mxu0 0.0
      %2851 = vmatmul.mubr.f32.gmra.mrb[0].mxu0 %v2493
      %v2852 = vpop.f32.mrb[0].mxu0
      %v2853 = vadd.f32 %v2337, %v2852
      %v2854 = vpop.f32.mrb[0].mxu0
      %2855 = vmatprep.mubr.f32.mxu0 0.0
      %2856 = vmatmul.mubr.f32.gmra.mrb[0].mxu0 %v2496
      %v2857 = vpop.f32.mrb[0].mxu0
      %v2858 = vadd.f32 %v2337, %v2857
      %v2859 = vpop.f32.mrb[0].mxu0
      %2860 = vmatprep.mubr.f32.mxu0 0.0
      %2861 = vmatmul.mubr.f32.gmra.mrb[0].mxu0 %v2499
      %v2862 = vpop.f32.mrb[0].mxu0
      %v2863 = vadd.f32 %v2337, %v2862
      %v2864 = vpop.f32.mrb[0].mxu0
      %2865 = vmatprep.mubr.f32.mxu0 0.0
      %2866 = vmatmul.mubr.f32.gmra.mrb[0].mxu0 %v2502
      %v2867 = vpop.f32.mrb[0].mxu0
      %v2868 = vadd.f32 %v2337, %v2867
      %v2869 = vpop.f32.mrb[0].mxu0
      %2870 = vmatprep.mubr.f32.mxu0 0.0
      %2871 = vmatmul.mubr.f32.gmra.mrb[0].mxu0 %v2505
      %v2872 = vpop.f32.mrb[0].mxu0
      %v2873 = vadd.f32 %v2337, %v2872
      %v2874 = vpop.f32.mrb[0].mxu0
      %2875 = vmatprep.mubr.f32.mxu0 0.0
      %2876 = vmatmul.mubr.f32.gmra.mrb[0].mxu0 %v2508
      %v2877 = vpop.f32.mrb[0].mxu0
      %v2878 = vadd.f32 %v2337, %v2877
      %v2879 = vpop.f32.mrb[0].mxu0
      %2880 = vmatprep.mubr.f32.mxu0 0.0
      %2881 = vmatmul.mubr.f32.gmra.mrb[0].mxu0 %v2511
      %v2882 = vpop.f32.mrb[0].mxu0
      %v2883 = vadd.f32 %v2337, %v2882
      %v2884 = vpop.f32.mrb[0].mxu0
      %2885 = vmatprep.mubr.f32.mxu0 0.0
      %2886 = vmatmul.mubr.f32.gmra.mrb[0].mxu0 %v2514
      %v2887 = vpop.f32.mrb[0].mxu0
      %v2888 = vadd.f32 %v2337, %v2887
      %v2889 = vpop.f32.mrb[0].mxu0
      %2890 = vmatprep.mubr.f32.mxu0 0.0
      %2891 = vmatmul.mubr.f32.gmra.mrb[0].mxu0 %v2517
      %v2892 = vpop.f32.mrb[0].mxu0
      %v2893 = vadd.f32 %v2337, %v2892
      %v2894 = vpop.f32.mrb[0].mxu0
      %2895 = vmatprep.mubr.f32.mxu0 0.0
      %2896 = vmatmul.mubr.f32.gmra.mrb[0].mxu0 %v2520
      %v2897 = vpop.f32.mrb[0].mxu0
      %v2898 = vadd.f32 %v2337, %v2897
      %v2899 = vpop.f32.mrb[0].mxu0
      %2900 = vmatprep.mubr.f32.mxu0 0.0
      %2901 = vmatmul.mubr.f32.gmra.mrb[0].mxu0 %v2523
      %v2902 = vpop.f32.mrb[0].mxu0
      %v2903 = vadd.f32 %v2337, %v2902
      %v2904 = vpop.f32.mrb[0].mxu0
      %2905 = vmatprep.mubr.f32.mxu0 0.0
      %2906 = vmatmul.mubr.f32.gmra.mrb[0].mxu0 %v2526
      %v2907 = vpop.f32.mrb[0].mxu0
      %v2908 = vadd.f32 %v2337, %v2907
      %v2909 = vpop.f32.mrb[0].mxu0
      %2910 = vmatprep.mubr.f32.mxu0 0.0
      %2911 = vmatmul.mubr.f32.gmra.mrb[0].mxu0 %v2529
      %v2912 = vpop.f32.mrb[0].mxu0
      %v2913 = vadd.f32 %v2337, %v2912
      %v2914 = vpop.f32.mrb[0].mxu0
      %2915 = vdwg.mxu0
      %v2916 = vtanh.pop %v2598
      %v2917 = vtanh.pop %v2603
      %v2918 = vtanh.pop %v2608
      %v2919 = vtanh.pop %v2613
      %v2920 = vtanh.pop %v2618
      %v2921 = vtanh.pop %v2623
      %v2922 = vtanh.pop %v2628
      %v2923 = vtanh.pop %v2633
      %v2924 = vtanh.pop %v2638
      %v2925 = vtanh.pop %v2643
      %v2926 = vtanh.pop %v2648
      %v2927 = vtanh.pop %v2653
      %v2928 = vtanh.pop %v2658
      %v2929 = vtanh.pop %v2663
      %v2930 = vtanh.pop %v2668
      %v2931 = vtanh.pop %v2673
      %v2932 = vtanh.pop %v2678
      %v2933 = vtanh.pop %v2683
      %v2934 = vtanh.pop %v2688
      %v2935 = vtanh.pop %v2693
      %v2936 = vtanh.pop %v2698
      %v2937 = vtanh.pop %v2703
      %v2938 = vtanh.pop %v2708
      %v2939 = vtanh.pop %v2713
      %v2940 = vtanh.pop %v2718
      %v2941 = vtanh.pop %v2723
      %v2942 = vtanh.pop %v2728
      %v2943 = vtanh.pop %v2733
      %v2944 = vtanh.pop %v2738
      %v2945 = vtanh.pop %v2743
      %v2946 = vtanh.pop %v2748
      %v2947 = vtanh.pop %v2753
      %v2948 = vtanh.pop %v2758
      %v2949 = vtanh.pop %v2763
      %v2950 = vtanh.pop %v2768
      %v2951 = vtanh.pop %v2773
      %v2952 = vtanh.pop %v2778
      %v2953 = vtanh.pop %v2783
      %v2954 = vtanh.pop %v2788
      %v2955 = vtanh.pop %v2793
      %v2956 = vtanh.pop %v2798
      %v2957 = vtanh.pop %v2803
      %v2958 = vtanh.pop %v2808
      %v2959 = vtanh.pop %v2813
      %v2960 = vtanh.pop %v2818
      %v2961 = vtanh.pop %v2823
      %v2962 = vtanh.pop %v2828
      %v2963 = vtanh.pop %v2833
      %v2964 = vtanh.pop %v2838
      %v2965 = vtanh.pop %v2843
      %v2966 = vtanh.pop %v2848
      %v2967 = vtanh.pop %v2853
      %v2968 = vtanh.pop %v2858
      %v2969 = vtanh.pop %v2863
      %v2970 = vtanh.pop %v2868
      %v2971 = vtanh.pop %v2873
      %v2972 = vtanh.pop %v2878
      %v2973 = vtanh.pop %v2883
      %v2974 = vtanh.pop %v2888
      %v2975 = vtanh.pop %v2893
      %v2976 = vtanh.pop %v2898
      %v2977 = vtanh.pop %v2903
      %v2978 = vtanh.pop %v2908
      %v2979 = vtanh.pop %v2913
      %s2980 = scalar_lea.vmem %s1, 128
      %v2981 = vld [vmem:[%s2980] sm:$0xff]
      %v2982 = vld [vmem:[%s2980 + $0x8] sm:$0xff]
      %v2983 = vld [vmem:[%s2980 + $0x10] sm:$0xff]
      %v2984 = vld [vmem:[%s2980 + $0x18] sm:$0xff]
      %s2985 = scalar_lea.vmem %s2, 4
      %v2986 = vld [vmem:[%s2985] sm:$0x1]
      %v2988 = vlaneseq
      %v2989 = vshrl.u32 %v2988, 7
      %v2990 = vsub.s32 0, %v2989
      %v2991 = vrot.slane %v2986, %v2990
      %v2994 = vsel %vm902, %v2916, 0
      %v2997 = vsel %vm902, %v2917, 0
      %v3000 = vsel %vm902, %v2918, 0
      %v3003 = vsel %vm902, %v2919, 0
      %v3006 = vsel %vm902, %v2920, 0
      %v3009 = vsel %vm902, %v2921, 0
      %v3012 = vsel %vm902, %v2922, 0
      %v3015 = vsel %vm902, %v2923, 0
      %v3018 = vsel %vm902, %v2924, 0
      %v3021 = vsel %vm902, %v2925, 0
      %v3024 = vsel %vm902, %v2926, 0
      %v3027 = vsel %vm902, %v2927, 0
      %v3030 = vsel %vm902, %v2928, 0
      %v3033 = vsel %vm902, %v2929, 0
      %v3036 = vsel %vm902, %v2930, 0
      %v3039 = vsel %vm902, %v2931, 0
      %v3042 = vsel %vm902, %v2932, 0
      %v3045 = vsel %vm902, %v2933, 0
      %v3048 = vsel %vm902, %v2934, 0
      %v3051 = vsel %vm902, %v2935, 0
      %v3054 = vsel %vm902, %v2936, 0
      %v3057 = vsel %vm902, %v2937, 0
      %v3060 = vsel %vm902, %v2938, 0
      %v3063 = vsel %vm902, %v2939, 0
      %v3066 = vsel %vm902, %v2940, 0
      %v3069 = vsel %vm902, %v2941, 0
      %v3072 = vsel %vm902, %v2942, 0
      %v3075 = vsel %vm902, %v2943, 0
      %v3078 = vsel %vm902, %v2944, 0
      %v3081 = vsel %vm902, %v2945, 0
      %v3084 = vsel %vm902, %v2946, 0
      %v3087 = vsel %vm902, %v2947, 0
      %v3090 = vsel %vm902, %v2948, 0
      %v3093 = vsel %vm902, %v2949, 0
      %v3096 = vsel %vm902, %v2950, 0
      %v3099 = vsel %vm902, %v2951, 0
      %v3102 = vsel %vm902, %v2952, 0
      %v3105 = vsel %vm902, %v2953, 0
      %v3108 = vsel %vm902, %v2954, 0
      %v3111 = vsel %vm902, %v2955, 0
      %v3114 = vsel %vm902, %v2956, 0
      %v3117 = vsel %vm902, %v2957, 0
      %v3120 = vsel %vm902, %v2958, 0
      %v3123 = vsel %vm902, %v2959, 0
      %v3126 = vsel %vm902, %v2960, 0
      %v3129 = vsel %vm902, %v2961, 0
      %v3132 = vsel %vm902, %v2962, 0
      %v3135 = vsel %vm902, %v2963, 0
      %v3138 = vsel %vm902, %v2964, 0
      %v3141 = vsel %vm902, %v2965, 0
      %v3144 = vsel %vm902, %v2966, 0
      %v3147 = vsel %vm902, %v2967, 0
      %v3150 = vsel %vm902, %v2968, 0
      %v3153 = vsel %vm902, %v2969, 0
      %v3156 = vsel %vm902, %v2970, 0
      %v3159 = vsel %vm902, %v2971, 0
      %v3162 = vsel %vm902, %v2972, 0
      %v3165 = vsel %vm902, %v2973, 0
      %v3168 = vsel %vm902, %v2974, 0
      %v3171 = vsel %vm902, %v2975, 0
      %v3174 = vsel %vm902, %v2976, 0
      %v3177 = vsel %vm902, %v2977, 0
      %v3180 = vsel %vm902, %v2978, 0
      %v3183 = vsel %vm902, %v2979, 0
      %3185 = vmatprep.subr.mxu0 0.0
      %3186 = vmatpush1.msra.mxu0 %v2981
      %3187 = vmatprep.subr.mxu0 0.0
      %3188 = vmatpush1.msra.mxu0 %v2982
      %3189 = vmatprep.subr.mxu0 0.0
      %3190 = vmatpush1.msra.mxu0 %v2983
      %3191 = vmatprep.subr.mxu0 0.0
      %3192 = vmatpush1.msra.mxu0 %v2984
      %3193 = vmatprep.subr.mxu0 0.0
      %3194 = vmatpush1.msra.mxu0 0.0
      %3195 = vmatprep.subr.mxu0 0.0
      %3196 = vmatpush1.msra.mxu0 0.0
      %3197 = vmatprep.subr.mxu0 0.0
      %3198 = vmatpush1.msra.mxu0 0.0
      %3199 = vmatprep.subr.mxu0 0.0
      %3200 = vmatpush1.msra.mxu0 0.0
      %3201 = vmatprep.subr.mxu0 0.0
      %3202 = vmatpush1.msra.mxu0 0.0
      %3203 = vmatprep.subr.mxu0 0.0
      %3204 = vmatpush1.msra.mxu0 0.0
      %3205 = vmatprep.subr.mxu0 0.0
      %3206 = vmatpush1.msra.mxu0 0.0
      %3207 = vmatprep.subr.mxu0 0.0
      %3208 = vmatpush1.msra.mxu0 0.0
      %3209 = vmatprep.subr.mxu0 0.0
      %3210 = vmatpush1.msra.mxu0 0.0
      %3211 = vmatprep.subr.mxu0 0.0
      %3212 = vmatpush1.msra.mxu0 0.0
      %3213 = vmatprep.subr.mxu0 0.0
      %3214 = vmatpush1.msra.mxu0 0.0
      %3215 = vmatprep.subr.mxu0 0.0
      %3216 = vmatpush1.msra.mxu0 0.0
      %3217 = vmatprep.subr.mxu0 0.0
      %3218 = vmatpush1.msra.mxu0 0.0
      %3219 = vmatprep.subr.mxu0 0.0
      %3220 = vmatpush1.msra.mxu0 0.0
      %3221 = vmatprep.subr.mxu0 0.0
      %3222 = vmatpush1.msra.mxu0 0.0
      %3223 = vmatprep.subr.mxu0 0.0
      %3224 = vmatpush1.msra.mxu0 0.0
      %3225 = vmatprep.subr.mxu0 0.0
      %3226 = vmatpush1.msra.mxu0 0.0
      %3227 = vmatprep.subr.mxu0 0.0
      %3228 = vmatpush1.msra.mxu0 0.0
      %3229 = vmatprep.subr.mxu0 0.0
      %3230 = vmatpush1.msra.mxu0 0.0
      %3231 = vmatprep.subr.mxu0 0.0
      %3232 = vmatpush1.msra.mxu0 0.0
      %3233 = vmatprep.subr.mxu0 0.0
      %3234 = vmatpush1.msra.mxu0 0.0
      %3235 = vmatprep.subr.mxu0 0.0
      %3236 = vmatpush1.msra.mxu0 0.0
      %3237 = vmatprep.subr.mxu0 0.0
      %3238 = vmatpush1.msra.mxu0 0.0
      %3239 = vmatprep.subr.mxu0 0.0
      %3240 = vmatpush1.msra.mxu0 0.0
      %3241 = vmatprep.subr.mxu0 0.0
      %3242 = vmatpush1.msra.mxu0 0.0
      %3243 = vmatprep.subr.mxu0 0.0
      %3244 = vmatpush1.msra.mxu0 0.0
      %3245 = vmatprep.subr.mxu0 0.0
      %3246 = vmatpush1.msra.mxu0 0.0
      %3247 = vmatprep.subr.mxu0 0.0
      %3248 = vmatpush1.msra.mxu0 0.0
      %3249 = vmatprep.mubr.f32.mxu0 0.0
      %3250 = vmatmul.mubr.f32.gmra.mrb[0].mxu0 %v2994
      %v3251 = vpop.f32.mrb[0].mxu0
      %v3252 = vadd.f32 %v2991, %v3251
      %v3253 = vpop.f32.mrb[0].mxu0
      %3254 = vmatprep.mubr.f32.mxu0 0.0
      %3255 = vmatmul.mubr.f32.gmra.mrb[0].mxu0 %v2997
      %v3256 = vpop.f32.mrb[0].mxu0
      %v3257 = vadd.f32 %v2991, %v3256
      %v3258 = vpop.f32.mrb[0].mxu0
      %3259 = vmatprep.mubr.f32.mxu0 0.0
      %3260 = vmatmul.mubr.f32.gmra.mrb[0].mxu0 %v3000
      %v3261 = vpop.f32.mrb[0].mxu0
      %v3262 = vadd.f32 %v2991, %v3261
      %v3263 = vpop.f32.mrb[0].mxu0
      %3264 = vmatprep.mubr.f32.mxu0 0.0
      %3265 = vmatmul.mubr.f32.gmra.mrb[0].mxu0 %v3003
      %v3266 = vpop.f32.mrb[0].mxu0
      %v3267 = vadd.f32 %v2991, %v3266
      %v3268 = vpop.f32.mrb[0].mxu0
      %3269 = vmatprep.mubr.f32.mxu0 0.0
      %3270 = vmatmul.mubr.f32.gmra.mrb[0].mxu0 %v3006
      %v3271 = vpop.f32.mrb[0].mxu0
      %v3272 = vadd.f32 %v2991, %v3271
      %v3273 = vpop.f32.mrb[0].mxu0
      %3274 = vmatprep.mubr.f32.mxu0 0.0
      %3275 = vmatmul.mubr.f32.gmra.mrb[0].mxu0 %v3009
      %v3276 = vpop.f32.mrb[0].mxu0
      %v3277 = vadd.f32 %v2991, %v3276
      %v3278 = vpop.f32.mrb[0].mxu0
      %3279 = vmatprep.mubr.f32.mxu0 0.0
      %3280 = vmatmul.mubr.f32.gmra.mrb[0].mxu0 %v3012
      %v3281 = vpop.f32.mrb[0].mxu0
      %v3282 = vadd.f32 %v2991, %v3281
      %v3283 = vpop.f32.mrb[0].mxu0
      %3284 = vmatprep.mubr.f32.mxu0 0.0
      %3285 = vmatmul.mubr.f32.gmra.mrb[0].mxu0 %v3015
      %v3286 = vpop.f32.mrb[0].mxu0
      %v3287 = vadd.f32 %v2991, %v3286
      %v3288 = vpop.f32.mrb[0].mxu0
      %3289 = vmatprep.mubr.f32.mxu0 0.0
      %3290 = vmatmul.mubr.f32.gmra.mrb[0].mxu0 %v3018
      %v3291 = vpop.f32.mrb[0].mxu0
      %v3292 = vadd.f32 %v2991, %v3291
      %v3293 = vpop.f32.mrb[0].mxu0
      %3294 = vmatprep.mubr.f32.mxu0 0.0
      %3295 = vmatmul.mubr.f32.gmra.mrb[0].mxu0 %v3021
      %v3296 = vpop.f32.mrb[0].mxu0
      %v3297 = vadd.f32 %v2991, %v3296
      %v3298 = vpop.f32.mrb[0].mxu0
      %3299 = vmatprep.mubr.f32.mxu0 0.0
      %3300 = vmatmul.mubr.f32.gmra.mrb[0].mxu0 %v3024
      %v3301 = vpop.f32.mrb[0].mxu0
      %v3302 = vadd.f32 %v2991, %v3301
      %v3303 = vpop.f32.mrb[0].mxu0
      %3304 = vmatprep.mubr.f32.mxu0 0.0
      %3305 = vmatmul.mubr.f32.gmra.mrb[0].mxu0 %v3027
      %v3306 = vpop.f32.mrb[0].mxu0
      %v3307 = vadd.f32 %v2991, %v3306
      %v3308 = vpop.f32.mrb[0].mxu0
      %3309 = vmatprep.mubr.f32.mxu0 0.0
      %3310 = vmatmul.mubr.f32.gmra.mrb[0].mxu0 %v3030
      %v3311 = vpop.f32.mrb[0].mxu0
      %v3312 = vadd.f32 %v2991, %v3311
      %v3313 = vpop.f32.mrb[0].mxu0
      %3314 = vmatprep.mubr.f32.mxu0 0.0
      %3315 = vmatmul.mubr.f32.gmra.mrb[0].mxu0 %v3033
      %v3316 = vpop.f32.mrb[0].mxu0
      %v3317 = vadd.f32 %v2991, %v3316
      %v3318 = vpop.f32.mrb[0].mxu0
      %3319 = vmatprep.mubr.f32.mxu0 0.0
      %3320 = vmatmul.mubr.f32.gmra.mrb[0].mxu0 %v3036
      %v3321 = vpop.f32.mrb[0].mxu0
      %v3322 = vadd.f32 %v2991, %v3321
      %v3323 = vpop.f32.mrb[0].mxu0
      %3324 = vmatprep.mubr.f32.mxu0 0.0
      %3325 = vmatmul.mubr.f32.gmra.mrb[0].mxu0 %v3039
      %v3326 = vpop.f32.mrb[0].mxu0
      %v3327 = vadd.f32 %v2991, %v3326
      %v3328 = vpop.f32.mrb[0].mxu0
      %3329 = vmatprep.mubr.f32.mxu0 0.0
      %3330 = vmatmul.mubr.f32.gmra.mrb[0].mxu0 %v3042
      %v3331 = vpop.f32.mrb[0].mxu0
      %v3332 = vadd.f32 %v2991, %v3331
      %v3333 = vpop.f32.mrb[0].mxu0
      %3334 = vmatprep.mubr.f32.mxu0 0.0
      %3335 = vmatmul.mubr.f32.gmra.mrb[0].mxu0 %v3045
      %v3336 = vpop.f32.mrb[0].mxu0
      %v3337 = vadd.f32 %v2991, %v3336
      %v3338 = vpop.f32.mrb[0].mxu0
      %3339 = vmatprep.mubr.f32.mxu0 0.0
      %3340 = vmatmul.mubr.f32.gmra.mrb[0].mxu0 %v3048
      %v3341 = vpop.f32.mrb[0].mxu0
      %v3342 = vadd.f32 %v2991, %v3341
      %v3343 = vpop.f32.mrb[0].mxu0
      %3344 = vmatprep.mubr.f32.mxu0 0.0
      %3345 = vmatmul.mubr.f32.gmra.mrb[0].mxu0 %v3051
      %v3346 = vpop.f32.mrb[0].mxu0
      %v3347 = vadd.f32 %v2991, %v3346
      %v3348 = vpop.f32.mrb[0].mxu0
      %3349 = vmatprep.mubr.f32.mxu0 0.0
      %3350 = vmatmul.mubr.f32.gmra.mrb[0].mxu0 %v3054
      %v3351 = vpop.f32.mrb[0].mxu0
      %v3352 = vadd.f32 %v2991, %v3351
      %v3353 = vpop.f32.mrb[0].mxu0
      %3354 = vmatprep.mubr.f32.mxu0 0.0
      %3355 = vmatmul.mubr.f32.gmra.mrb[0].mxu0 %v3057
      %v3356 = vpop.f32.mrb[0].mxu0
      %v3357 = vadd.f32 %v2991, %v3356
      %v3358 = vpop.f32.mrb[0].mxu0
      %3359 = vmatprep.mubr.f32.mxu0 0.0
      %3360 = vmatmul.mubr.f32.gmra.mrb[0].mxu0 %v3060
      %v3361 = vpop.f32.mrb[0].mxu0
      %v3362 = vadd.f32 %v2991, %v3361
      %v3363 = vpop.f32.mrb[0].mxu0
      %3364 = vmatprep.mubr.f32.mxu0 0.0
      %3365 = vmatmul.mubr.f32.gmra.mrb[0].mxu0 %v3063
      %v3366 = vpop.f32.mrb[0].mxu0
      %v3367 = vadd.f32 %v2991, %v3366
      %v3368 = vpop.f32.mrb[0].mxu0
      %3369 = vmatprep.mubr.f32.mxu0 0.0
      %3370 = vmatmul.mubr.f32.gmra.mrb[0].mxu0 %v3066
      %v3371 = vpop.f32.mrb[0].mxu0
      %v3372 = vadd.f32 %v2991, %v3371
      %v3373 = vpop.f32.mrb[0].mxu0
      %3374 = vmatprep.mubr.f32.mxu0 0.0
      %3375 = vmatmul.mubr.f32.gmra.mrb[0].mxu0 %v3069
      %v3376 = vpop.f32.mrb[0].mxu0
      %v3377 = vadd.f32 %v2991, %v3376
      %v3378 = vpop.f32.mrb[0].mxu0
      %3379 = vmatprep.mubr.f32.mxu0 0.0
      %3380 = vmatmul.mubr.f32.gmra.mrb[0].mxu0 %v3072
      %v3381 = vpop.f32.mrb[0].mxu0
      %v3382 = vadd.f32 %v2991, %v3381
      %v3383 = vpop.f32.mrb[0].mxu0
      %3384 = vmatprep.mubr.f32.mxu0 0.0
      %3385 = vmatmul.mubr.f32.gmra.mrb[0].mxu0 %v3075
      %v3386 = vpop.f32.mrb[0].mxu0
      %v3387 = vadd.f32 %v2991, %v3386
      %v3388 = vpop.f32.mrb[0].mxu0
      %3389 = vmatprep.mubr.f32.mxu0 0.0
      %3390 = vmatmul.mubr.f32.gmra.mrb[0].mxu0 %v3078
      %v3391 = vpop.f32.mrb[0].mxu0
      %v3392 = vadd.f32 %v2991, %v3391
      %v3393 = vpop.f32.mrb[0].mxu0
      %3394 = vmatprep.mubr.f32.mxu0 0.0
      %3395 = vmatmul.mubr.f32.gmra.mrb[0].mxu0 %v3081
      %v3396 = vpop.f32.mrb[0].mxu0
      %v3397 = vadd.f32 %v2991, %v3396
      %v3398 = vpop.f32.mrb[0].mxu0
      %3399 = vmatprep.mubr.f32.mxu0 0.0
      %3400 = vmatmul.mubr.f32.gmra.mrb[0].mxu0 %v3084
      %v3401 = vpop.f32.mrb[0].mxu0
      %v3402 = vadd.f32 %v2991, %v3401
      %v3403 = vpop.f32.mrb[0].mxu0
      %3404 = vmatprep.mubr.f32.mxu0 0.0
      %3405 = vmatmul.mubr.f32.gmra.mrb[0].mxu0 %v3087
      %v3406 = vpop.f32.mrb[0].mxu0
      %v3407 = vadd.f32 %v2991, %v3406
      %v3408 = vpop.f32.mrb[0].mxu0
      %3409 = vmatprep.mubr.f32.mxu0 0.0
      %3410 = vmatmul.mubr.f32.gmra.mrb[0].mxu0 %v3090
      %v3411 = vpop.f32.mrb[0].mxu0
      %v3412 = vadd.f32 %v2991, %v3411
      %v3413 = vpop.f32.mrb[0].mxu0
      %3414 = vmatprep.mubr.f32.mxu0 0.0
      %3415 = vmatmul.mubr.f32.gmra.mrb[0].mxu0 %v3093
      %v3416 = vpop.f32.mrb[0].mxu0
      %v3417 = vadd.f32 %v2991, %v3416
      %v3418 = vpop.f32.mrb[0].mxu0
      %3419 = vmatprep.mubr.f32.mxu0 0.0
      %3420 = vmatmul.mubr.f32.gmra.mrb[0].mxu0 %v3096
      %v3421 = vpop.f32.mrb[0].mxu0
      %v3422 = vadd.f32 %v2991, %v3421
      %v3423 = vpop.f32.mrb[0].mxu0
      %3424 = vmatprep.mubr.f32.mxu0 0.0
      %3425 = vmatmul.mubr.f32.gmra.mrb[0].mxu0 %v3099
      %v3426 = vpop.f32.mrb[0].mxu0
      %v3427 = vadd.f32 %v2991, %v3426
      %v3428 = vpop.f32.mrb[0].mxu0
      %3429 = vmatprep.mubr.f32.mxu0 0.0
      %3430 = vmatmul.mubr.f32.gmra.mrb[0].mxu0 %v3102
      %v3431 = vpop.f32.mrb[0].mxu0
      %v3432 = vadd.f32 %v2991, %v3431
      %v3433 = vpop.f32.mrb[0].mxu0
      %3434 = vmatprep.mubr.f32.mxu0 0.0
      %3435 = vmatmul.mubr.f32.gmra.mrb[0].mxu0 %v3105
      %v3436 = vpop.f32.mrb[0].mxu0
      %v3437 = vadd.f32 %v2991, %v3436
      %v3438 = vpop.f32.mrb[0].mxu0
      %3439 = vmatprep.mubr.f32.mxu0 0.0
      %3440 = vmatmul.mubr.f32.gmra.mrb[0].mxu0 %v3108
      %v3441 = vpop.f32.mrb[0].mxu0
      %v3442 = vadd.f32 %v2991, %v3441
      %v3443 = vpop.f32.mrb[0].mxu0
      %3444 = vmatprep.mubr.f32.mxu0 0.0
      %3445 = vmatmul.mubr.f32.gmra.mrb[0].mxu0 %v3111
      %v3446 = vpop.f32.mrb[0].mxu0
      %v3447 = vadd.f32 %v2991, %v3446
      %v3448 = vpop.f32.mrb[0].mxu0
      %3449 = vmatprep.mubr.f32.mxu0 0.0
      %3450 = vmatmul.mubr.f32.gmra.mrb[0].mxu0 %v3114
      %v3451 = vpop.f32.mrb[0].mxu0
      %v3452 = vadd.f32 %v2991, %v3451
      %v3453 = vpop.f32.mrb[0].mxu0
      %3454 = vmatprep.mubr.f32.mxu0 0.0
      %3455 = vmatmul.mubr.f32.gmra.mrb[0].mxu0 %v3117
      %v3456 = vpop.f32.mrb[0].mxu0
      %v3457 = vadd.f32 %v2991, %v3456
      %v3458 = vpop.f32.mrb[0].mxu0
      %3459 = vmatprep.mubr.f32.mxu0 0.0
      %3460 = vmatmul.mubr.f32.gmra.mrb[0].mxu0 %v3120
      %v3461 = vpop.f32.mrb[0].mxu0
      %v3462 = vadd.f32 %v2991, %v3461
      %v3463 = vpop.f32.mrb[0].mxu0
      %3464 = vmatprep.mubr.f32.mxu0 0.0
      %3465 = vmatmul.mubr.f32.gmra.mrb[0].mxu0 %v3123
      %v3466 = vpop.f32.mrb[0].mxu0
      %v3467 = vadd.f32 %v2991, %v3466
      %v3468 = vpop.f32.mrb[0].mxu0
      %3469 = vmatprep.mubr.f32.mxu0 0.0
      %3470 = vmatmul.mubr.f32.gmra.mrb[0].mxu0 %v3126
      %v3471 = vpop.f32.mrb[0].mxu0
      %v3472 = vadd.f32 %v2991, %v3471
      %v3473 = vpop.f32.mrb[0].mxu0
      %3474 = vmatprep.mubr.f32.mxu0 0.0
      %3475 = vmatmul.mubr.f32.gmra.mrb[0].mxu0 %v3129
      %v3476 = vpop.f32.mrb[0].mxu0
      %v3477 = vadd.f32 %v2991, %v3476
      %v3478 = vpop.f32.mrb[0].mxu0
      %3479 = vmatprep.mubr.f32.mxu0 0.0
      %3480 = vmatmul.mubr.f32.gmra.mrb[0].mxu0 %v3132
      %v3481 = vpop.f32.mrb[0].mxu0
      %v3482 = vadd.f32 %v2991, %v3481
      %v3483 = vpop.f32.mrb[0].mxu0
      %3484 = vmatprep.mubr.f32.mxu0 0.0
      %3485 = vmatmul.mubr.f32.gmra.mrb[0].mxu0 %v3135
      %v3486 = vpop.f32.mrb[0].mxu0
      %v3487 = vadd.f32 %v2991, %v3486
      %v3488 = vpop.f32.mrb[0].mxu0
      %3489 = vmatprep.mubr.f32.mxu0 0.0
      %3490 = vmatmul.mubr.f32.gmra.mrb[0].mxu0 %v3138
      %v3491 = vpop.f32.mrb[0].mxu0
      %v3492 = vadd.f32 %v2991, %v3491
      %v3493 = vpop.f32.mrb[0].mxu0
      %3494 = vmatprep.mubr.f32.mxu0 0.0
      %3495 = vmatmul.mubr.f32.gmra.mrb[0].mxu0 %v3141
      %v3496 = vpop.f32.mrb[0].mxu0
      %v3497 = vadd.f32 %v2991, %v3496
      %v3498 = vpop.f32.mrb[0].mxu0
      %3499 = vmatprep.mubr.f32.mxu0 0.0
      %3500 = vmatmul.mubr.f32.gmra.mrb[0].mxu0 %v3144
      %v3501 = vpop.f32.mrb[0].mxu0
      %v3502 = vadd.f32 %v2991, %v3501
      %v3503 = vpop.f32.mrb[0].mxu0
      %3504 = vmatprep.mubr.f32.mxu0 0.0
      %3505 = vmatmul.mubr.f32.gmra.mrb[0].mxu0 %v3147
      %v3506 = vpop.f32.mrb[0].mxu0
      %v3507 = vadd.f32 %v2991, %v3506
      %v3508 = vpop.f32.mrb[0].mxu0
      %3509 = vmatprep.mubr.f32.mxu0 0.0
      %3510 = vmatmul.mubr.f32.gmra.mrb[0].mxu0 %v3150
      %v3511 = vpop.f32.mrb[0].mxu0
      %v3512 = vadd.f32 %v2991, %v3511
      %v3513 = vpop.f32.mrb[0].mxu0
      %3514 = vmatprep.mubr.f32.mxu0 0.0
      %3515 = vmatmul.mubr.f32.gmra.mrb[0].mxu0 %v3153
      %v3516 = vpop.f32.mrb[0].mxu0
      %v3517 = vadd.f32 %v2991, %v3516
      %v3518 = vpop.f32.mrb[0].mxu0
      %3519 = vmatprep.mubr.f32.mxu0 0.0
      %3520 = vmatmul.mubr.f32.gmra.mrb[0].mxu0 %v3156
      %v3521 = vpop.f32.mrb[0].mxu0
      %v3522 = vadd.f32 %v2991, %v3521
      %v3523 = vpop.f32.mrb[0].mxu0
      %3524 = vmatprep.mubr.f32.mxu0 0.0
      %3525 = vmatmul.mubr.f32.gmra.mrb[0].mxu0 %v3159
      %v3526 = vpop.f32.mrb[0].mxu0
      %v3527 = vadd.f32 %v2991, %v3526
      %v3528 = vpop.f32.mrb[0].mxu0
      %3529 = vmatprep.mubr.f32.mxu0 0.0
      %3530 = vmatmul.mubr.f32.gmra.mrb[0].mxu0 %v3162
      %v3531 = vpop.f32.mrb[0].mxu0
      %v3532 = vadd.f32 %v2991, %v3531
      %v3533 = vpop.f32.mrb[0].mxu0
      %3534 = vmatprep.mubr.f32.mxu0 0.0
      %3535 = vmatmul.mubr.f32.gmra.mrb[0].mxu0 %v3165
      %v3536 = vpop.f32.mrb[0].mxu0
      %v3537 = vadd.f32 %v2991, %v3536
      %v3538 = vpop.f32.mrb[0].mxu0
      %3539 = vmatprep.mubr.f32.mxu0 0.0
      %3540 = vmatmul.mubr.f32.gmra.mrb[0].mxu0 %v3168
      %v3541 = vpop.f32.mrb[0].mxu0
      %v3542 = vadd.f32 %v2991, %v3541
      %v3543 = vpop.f32.mrb[0].mxu0
      %3544 = vmatprep.mubr.f32.mxu0 0.0
      %3545 = vmatmul.mubr.f32.gmra.mrb[0].mxu0 %v3171
      %v3546 = vpop.f32.mrb[0].mxu0
      %v3547 = vadd.f32 %v2991, %v3546
      %v3548 = vpop.f32.mrb[0].mxu0
      %3549 = vmatprep.mubr.f32.mxu0 0.0
      %3550 = vmatmul.mubr.f32.gmra.mrb[0].mxu0 %v3174
      %v3551 = vpop.f32.mrb[0].mxu0
      %v3552 = vadd.f32 %v2991, %v3551
      %v3553 = vpop.f32.mrb[0].mxu0
      %3554 = vmatprep.mubr.f32.mxu0 0.0
      %3555 = vmatmul.mubr.f32.gmra.mrb[0].mxu0 %v3177
      %v3556 = vpop.f32.mrb[0].mxu0
      %v3557 = vadd.f32 %v2991, %v3556
      %v3558 = vpop.f32.mrb[0].mxu0
      %3559 = vmatprep.mubr.f32.mxu0 0.0
      %3560 = vmatmul.mubr.f32.gmra.mrb[0].mxu0 %v3180
      %v3561 = vpop.f32.mrb[0].mxu0
      %v3562 = vadd.f32 %v2991, %v3561
      %v3563 = vpop.f32.mrb[0].mxu0
      %3564 = vmatprep.mubr.f32.mxu0 0.0
      %3565 = vmatmul.mubr.f32.gmra.mrb[0].mxu0 %v3183
      %v3566 = vpop.f32.mrb[0].mxu0
      %v3567 = vadd.f32 %v2991, %v3566
      %v3568 = vpop.f32.mrb[0].mxu0
      %3569 = vdwg.mxu0
      %v3570 = vlaneseq
      %v3571 = vand.u32 %v3570, 127
      %vm3572 = vcmp.lt.s32.totalorder %v3571, 8
      %v3573 = vmax.f32 %v3252, 0.0
      %v3574 = vmax.f32 %v3257, 0.0
      %v3575 = vmax.f32 %v3262, 0.0
      %v3576 = vmax.f32 %v3267, 0.0
      %v3577 = vmax.f32 %v3272, 0.0
      %v3578 = vmax.f32 %v3277, 0.0
      %v3579 = vmax.f32 %v3282, 0.0
      %v3580 = vmax.f32 %v3287, 0.0
      %v3581 = vmax.f32 %v3292, 0.0
      %v3582 = vmax.f32 %v3297, 0.0
      %v3583 = vmax.f32 %v3302, 0.0
      %v3584 = vmax.f32 %v3307, 0.0
      %v3585 = vmax.f32 %v3312, 0.0
      %v3586 = vmax.f32 %v3317, 0.0
      %v3587 = vmax.f32 %v3322, 0.0
      %v3588 = vmax.f32 %v3327, 0.0
      %v3589 = vmax.f32 %v3332, 0.0
      %v3590 = vmax.f32 %v3337, 0.0
      %v3591 = vmax.f32 %v3342, 0.0
      %v3592 = vmax.f32 %v3347, 0.0
      %v3593 = vmax.f32 %v3352, 0.0
      %v3594 = vmax.f32 %v3357, 0.0
      %v3595 = vmax.f32 %v3362, 0.0
      %v3596 = vmax.f32 %v3367, 0.0
      %v3597 = vmax.f32 %v3372, 0.0
      %v3598 = vmax.f32 %v3377, 0.0
      %v3599 = vmax.f32 %v3382, 0.0
      %v3600 = vmax.f32 %v3387, 0.0
      %v3601 = vmax.f32 %v3392, 0.0
      %v3602 = vmax.f32 %v3397, 0.0
      %v3603 = vmax.f32 %v3402, 0.0
      %v3604 = vmax.f32 %v3407, 0.0
      %v3605 = vmax.f32 %v3412, 0.0
      %v3606 = vmax.f32 %v3417, 0.0
      %v3607 = vmax.f32 %v3422, 0.0
      %v3608 = vmax.f32 %v3427, 0.0
      %v3609 = vmax.f32 %v3432, 0.0
      %v3610 = vmax.f32 %v3437, 0.0
      %v3611 = vmax.f32 %v3442, 0.0
      %v3612 = vmax.f32 %v3447, 0.0
      %v3613 = vmax.f32 %v3452, 0.0
      %v3614 = vmax.f32 %v3457, 0.0
      %v3615 = vmax.f32 %v3462, 0.0
      %v3616 = vmax.f32 %v3467, 0.0
      %v3617 = vmax.f32 %v3472, 0.0
      %v3618 = vmax.f32 %v3477, 0.0
      %v3619 = vmax.f32 %v3482, 0.0
      %v3620 = vmax.f32 %v3487, 0.0
      %v3621 = vmax.f32 %v3492, 0.0
      %v3622 = vmax.f32 %v3497, 0.0
      %v3623 = vmax.f32 %v3502, 0.0
      %v3624 = vmax.f32 %v3507, 0.0
      %v3625 = vmax.f32 %v3512, 0.0
      %v3626 = vmax.f32 %v3517, 0.0
      %v3627 = vmax.f32 %v3522, 0.0
      %v3628 = vmax.f32 %v3527, 0.0
      %v3629 = vmax.f32 %v3532, 0.0
      %v3630 = vmax.f32 %v3537, 0.0
      %v3631 = vmax.f32 %v3542, 0.0
      %v3632 = vmax.f32 %v3547, 0.0
      %v3633 = vmax.f32 %v3552, 0.0
      %v3634 = vmax.f32 %v3557, 0.0
      %v3635 = vmax.f32 %v3562, 0.0
      %v3636 = vmax.f32 %v3567, 0.0
      %vm3637 = vcmp.ne.f32.partialorder %v3252, %v3252
      %vm3638 = vcmp.ne.f32.partialorder %v3257, %v3257
      %vm3639 = vcmp.ne.f32.partialorder %v3262, %v3262
      %vm3640 = vcmp.ne.f32.partialorder %v3267, %v3267
      %vm3641 = vcmp.ne.f32.partialorder %v3272, %v3272
      %vm3642 = vcmp.ne.f32.partialorder %v3277, %v3277
      %vm3643 = vcmp.ne.f32.partialorder %v3282, %v3282
      %vm3644 = vcmp.ne.f32.partialorder %v3287, %v3287
      %vm3645 = vcmp.ne.f32.partialorder %v3292, %v3292
      %vm3646 = vcmp.ne.f32.partialorder %v3297, %v3297
      %vm3647 = vcmp.ne.f32.partialorder %v3302, %v3302
      %vm3648 = vcmp.ne.f32.partialorder %v3307, %v3307
      %vm3649 = vcmp.ne.f32.partialorder %v3312, %v3312
      %vm3650 = vcmp.ne.f32.partialorder %v3317, %v3317
      %vm3651 = vcmp.ne.f32.partialorder %v3322, %v3322
      %vm3652 = vcmp.ne.f32.partialorder %v3327, %v3327
      %vm3653 = vcmp.ne.f32.partialorder %v3332, %v3332
      %vm3654 = vcmp.ne.f32.partialorder %v3337, %v3337
      %vm3655 = vcmp.ne.f32.partialorder %v3342, %v3342
      %vm3656 = vcmp.ne.f32.partialorder %v3347, %v3347
      %vm3657 = vcmp.ne.f32.partialorder %v3352, %v3352
      %vm3658 = vcmp.ne.f32.partialorder %v3357, %v3357
      %vm3659 = vcmp.ne.f32.partialorder %v3362, %v3362
      %vm3660 = vcmp.ne.f32.partialorder %v3367, %v3367
      %vm3661 = vcmp.ne.f32.partialorder %v3372, %v3372
      %vm3662 = vcmp.ne.f32.partialorder %v3377, %v3377
      %vm3663 = vcmp.ne.f32.partialorder %v3382, %v3382
      %vm3664 = vcmp.ne.f32.partialorder %v3387, %v3387
      %vm3665 = vcmp.ne.f32.partialorder %v3392, %v3392
      %vm3666 = vcmp.ne.f32.partialorder %v3397, %v3397
      %vm3667 = vcmp.ne.f32.partialorder %v3402, %v3402
      %vm3668 = vcmp.ne.f32.partialorder %v3407, %v3407
      %vm3669 = vcmp.ne.f32.partialorder %v3412, %v3412
      %vm3670 = vcmp.ne.f32.partialorder %v3417, %v3417
      %vm3671 = vcmp.ne.f32.partialorder %v3422, %v3422
      %vm3672 = vcmp.ne.f32.partialorder %v3427, %v3427
      %vm3673 = vcmp.ne.f32.partialorder %v3432, %v3432
      %vm3674 = vcmp.ne.f32.partialorder %v3437, %v3437
      %vm3675 = vcmp.ne.f32.partialorder %v3442, %v3442
      %vm3676 = vcmp.ne.f32.partialorder %v3447, %v3447
      %vm3677 = vcmp.ne.f32.partialorder %v3452, %v3452
      %vm3678 = vcmp.ne.f32.partialorder %v3457, %v3457
      %vm3679 = vcmp.ne.f32.partialorder %v3462, %v3462
      %vm3680 = vcmp.ne.f32.partialorder %v3467, %v3467
      %vm3681 = vcmp.ne.f32.partialorder %v3472, %v3472
      %vm3682 = vcmp.ne.f32.partialorder %v3477, %v3477
      %vm3683 = vcmp.ne.f32.partialorder %v3482, %v3482
      %vm3684 = vcmp.ne.f32.partialorder %v3487, %v3487
      %vm3685 = vcmp.ne.f32.partialorder %v3492, %v3492
      %vm3686 = vcmp.ne.f32.partialorder %v3497, %v3497
      %vm3687 = vcmp.ne.f32.partialorder %v3502, %v3502
      %vm3688 = vcmp.ne.f32.partialorder %v3507, %v3507
      %vm3689 = vcmp.ne.f32.partialorder %v3512, %v3512
      %vm3690 = vcmp.ne.f32.partialorder %v3517, %v3517
      %vm3691 = vcmp.ne.f32.partialorder %v3522, %v3522
      %vm3692 = vcmp.ne.f32.partialorder %v3527, %v3527
      %vm3693 = vcmp.ne.f32.partialorder %v3532, %v3532
      %vm3694 = vcmp.ne.f32.partialorder %v3537, %v3537
      %vm3695 = vcmp.ne.f32.partialorder %v3542, %v3542
      %vm3696 = vcmp.ne.f32.partialorder %v3547, %v3547
      %vm3697 = vcmp.ne.f32.partialorder %v3552, %v3552
      %vm3698 = vcmp.ne.f32.partialorder %v3557, %v3557
      %vm3699 = vcmp.ne.f32.partialorder %v3562, %v3562
      %vm3700 = vcmp.ne.f32.partialorder %v3567, %v3567
      %v3701 = vadd.f32 %v3252, 0.0
      %v3702 = vadd.f32 %v3257, 0.0
      %v3703 = vadd.f32 %v3262, 0.0
      %v3704 = vadd.f32 %v3267, 0.0
      %v3705 = vadd.f32 %v3272, 0.0
      %v3706 = vadd.f32 %v3277, 0.0
      %v3707 = vadd.f32 %v3282, 0.0
      %v3708 = vadd.f32 %v3287, 0.0
      %v3709 = vadd.f32 %v3292, 0.0
      %v3710 = vadd.f32 %v3297, 0.0
      %v3711 = vadd.f32 %v3302, 0.0
      %v3712 = vadd.f32 %v3307, 0.0
      %v3713 = vadd.f32 %v3312, 0.0
      %v3714 = vadd.f32 %v3317, 0.0
      %v3715 = vadd.f32 %v3322, 0.0
      %v3716 = vadd.f32 %v3327, 0.0
      %v3717 = vadd.f32 %v3332, 0.0
      %v3718 = vadd.f32 %v3337, 0.0
      %v3719 = vadd.f32 %v3342, 0.0
      %v3720 = vadd.f32 %v3347, 0.0
      %v3721 = vadd.f32 %v3352, 0.0
      %v3722 = vadd.f32 %v3357, 0.0
      %v3723 = vadd.f32 %v3362, 0.0
      %v3724 = vadd.f32 %v3367, 0.0
      %v3725 = vadd.f32 %v3372, 0.0
      %v3726 = vadd.f32 %v3377, 0.0
      %v3727 = vadd.f32 %v3382, 0.0
      %v3728 = vadd.f32 %v3387, 0.0
      %v3729 = vadd.f32 %v3392, 0.0
      %v3730 = vadd.f32 %v3397, 0.0
      %v3731 = vadd.f32 %v3402, 0.0
      %v3732 = vadd.f32 %v3407, 0.0
      %v3733 = vadd.f32 %v3412, 0.0
      %v3734 = vadd.f32 %v3417, 0.0
      %v3735 = vadd.f32 %v3422, 0.0
      %v3736 = vadd.f32 %v3427, 0.0
      %v3737 = vadd.f32 %v3432, 0.0
      %v3738 = vadd.f32 %v3437, 0.0
      %v3739 = vadd.f32 %v3442, 0.0
      %v3740 = vadd.f32 %v3447, 0.0
      %v3741 = vadd.f32 %v3452, 0.0
      %v3742 = vadd.f32 %v3457, 0.0
      %v3743 = vadd.f32 %v3462, 0.0
      %v3744 = vadd.f32 %v3467, 0.0
      %v3745 = vadd.f32 %v3472, 0.0
      %v3746 = vadd.f32 %v3477, 0.0
      %v3747 = vadd.f32 %v3482, 0.0
      %v3748 = vadd.f32 %v3487, 0.0
      %v3749 = vadd.f32 %v3492, 0.0
      %v3750 = vadd.f32 %v3497, 0.0
      %v3751 = vadd.f32 %v3502, 0.0
      %v3752 = vadd.f32 %v3507, 0.0
      %v3753 = vadd.f32 %v3512, 0.0
      %v3754 = vadd.f32 %v3517, 0.0
      %v3755 = vadd.f32 %v3522, 0.0
      %v3756 = vadd.f32 %v3527, 0.0
      %v3757 = vadd.f32 %v3532, 0.0
      %v3758 = vadd.f32 %v3537, 0.0
      %v3759 = vadd.f32 %v3542, 0.0
      %v3760 = vadd.f32 %v3547, 0.0
      %v3761 = vadd.f32 %v3552, 0.0
      %v3762 = vadd.f32 %v3557, 0.0
      %v3763 = vadd.f32 %v3562, 0.0
      %v3764 = vadd.f32 %v3567, 0.0
      %v3765 = vand.u32 2147483647, %v3252
      %v3766 = vand.u32 2147483647, %v3257
      %v3767 = vand.u32 2147483647, %v3262
      %v3768 = vand.u32 2147483647, %v3267
      %v3769 = vand.u32 2147483647, %v3272
      %v3770 = vand.u32 2147483647, %v3277
      %v3771 = vand.u32 2147483647, %v3282
      %v3772 = vand.u32 2147483647, %v3287
      %v3773 = vand.u32 2147483647, %v3292
      %v3774 = vand.u32 2147483647, %v3297
      %v3775 = vand.u32 2147483647, %v3302
      %v3776 = vand.u32 2147483647, %v3307
      %v3777 = vand.u32 2147483647, %v3312
      %v3778 = vand.u32 2147483647, %v3317
      %v3779 = vand.u32 2147483647, %v3322
      %v3780 = vand.u32 2147483647, %v3327
      %v3781 = vand.u32 2147483647, %v3332
      %v3782 = vand.u32 2147483647, %v3337
      %v3783 = vand.u32 2147483647, %v3342
      %v3784 = vand.u32 2147483647, %v3347
      %v3785 = vand.u32 2147483647, %v3352
      %v3786 = vand.u32 2147483647, %v3357
      %v3787 = vand.u32 2147483647, %v3362
      %v3788 = vand.u32 2147483647, %v3367
      %v3789 = vand.u32 2147483647, %v3372
      %v3790 = vand.u32 2147483647, %v3377
      %v3791 = vand.u32 2147483647, %v3382
      %v3792 = vand.u32 2147483647, %v3387
      %v3793 = vand.u32 2147483647, %v3392
      %v3794 = vand.u32 2147483647, %v3397
      %v3795 = vand.u32 2147483647, %v3402
      %v3796 = vand.u32 2147483647, %v3407
      %v3797 = vand.u32 2147483647, %v3412
      %v3798 = vand.u32 2147483647, %v3417
      %v3799 = vand.u32 2147483647, %v3422
      %v3800 = vand.u32 2147483647, %v3427
      %v3801 = vand.u32 2147483647, %v3432
      %v3802 = vand.u32 2147483647, %v3437
      %v3803 = vand.u32 2147483647, %v3442
      %v3804 = vand.u32 2147483647, %v3447
      %v3805 = vand.u32 2147483647, %v3452
      %v3806 = vand.u32 2147483647, %v3457
      %v3807 = vand.u32 2147483647, %v3462
      %v3808 = vand.u32 2147483647, %v3467
      %v3809 = vand.u32 2147483647, %v3472
      %v3810 = vand.u32 2147483647, %v3477
      %v3811 = vand.u32 2147483647, %v3482
      %v3812 = vand.u32 2147483647, %v3487
      %v3813 = vand.u32 2147483647, %v3492
      %v3814 = vand.u32 2147483647, %v3497
      %v3815 = vand.u32 2147483647, %v3502
      %v3816 = vand.u32 2147483647, %v3507
      %v3817 = vand.u32 2147483647, %v3512
      %v3818 = vand.u32 2147483647, %v3517
      %v3819 = vand.u32 2147483647, %v3522
      %v3820 = vand.u32 2147483647, %v3527
      %v3821 = vand.u32 2147483647, %v3532
      %v3822 = vand.u32 2147483647, %v3537
      %v3823 = vand.u32 2147483647, %v3542
      %v3824 = vand.u32 2147483647, %v3547
      %v3825 = vand.u32 2147483647, %v3552
      %v3826 = vand.u32 2147483647, %v3557
      %v3827 = vand.u32 2147483647, %v3562
      %v3828 = vand.u32 2147483647, %v3567
      %v3829 = vsub.f32 0.0, %v3765
      %v3830 = vsub.f32 0.0, %v3766
      %v3831 = vsub.f32 0.0, %v3767
      %v3832 = vsub.f32 0.0, %v3768
      %v3833 = vsub.f32 0.0, %v3769
      %v3834 = vsub.f32 0.0, %v3770
      %v3835 = vsub.f32 0.0, %v3771
      %v3836 = vsub.f32 0.0, %v3772
      %v3837 = vsub.f32 0.0, %v3773
      %v3838 = vsub.f32 0.0, %v3774
      %v3839 = vsub.f32 0.0, %v3775
      %v3840 = vsub.f32 0.0, %v3776
      %v3841 = vsub.f32 0.0, %v3777
      %v3842 = vsub.f32 0.0, %v3778
      %v3843 = vsub.f32 0.0, %v3779
      %v3844 = vsub.f32 0.0, %v3780
      %v3845 = vsub.f32 0.0, %v3781
      %v3846 = vsub.f32 0.0, %v3782
      %v3847 = vsub.f32 0.0, %v3783
      %v3848 = vsub.f32 0.0, %v3784
      %v3849 = vsub.f32 0.0, %v3785
      %v3850 = vsub.f32 0.0, %v3786
      %v3851 = vsub.f32 0.0, %v3787
      %v3852 = vsub.f32 0.0, %v3788
      %v3853 = vsub.f32 0.0, %v3789
      %v3854 = vsub.f32 0.0, %v3790
      %v3855 = vsub.f32 0.0, %v3791
      %v3856 = vsub.f32 0.0, %v3792
      %v3857 = vsub.f32 0.0, %v3793
      %v3858 = vsub.f32 0.0, %v3794
      %v3859 = vsub.f32 0.0, %v3795
      %v3860 = vsub.f32 0.0, %v3796
      %v3861 = vsub.f32 0.0, %v3797
      %v3862 = vsub.f32 0.0, %v3798
      %v3863 = vsub.f32 0.0, %v3799
      %v3864 = vsub.f32 0.0, %v3800
      %v3865 = vsub.f32 0.0, %v3801
      %v3866 = vsub.f32 0.0, %v3802
      %v3867 = vsub.f32 0.0, %v3803
      %v3868 = vsub.f32 0.0, %v3804
      %v3869 = vsub.f32 0.0, %v3805
      %v3870 = vsub.f32 0.0, %v3806
      %v3871 = vsub.f32 0.0, %v3807
      %v3872 = vsub.f32 0.0, %v3808
      %v3873 = vsub.f32 0.0, %v3809
      %v3874 = vsub.f32 0.0, %v3810
      %v3875 = vsub.f32 0.0, %v3811
      %v3876 = vsub.f32 0.0, %v3812
      %v3877 = vsub.f32 0.0, %v3813
      %v3878 = vsub.f32 0.0, %v3814
      %v3879 = vsub.f32 0.0, %v3815
      %v3880 = vsub.f32 0.0, %v3816
      %v3881 = vsub.f32 0.0, %v3817
      %v3882 = vsub.f32 0.0, %v3818
      %v3883 = vsub.f32 0.0, %v3819
      %v3884 = vsub.f32 0.0, %v3820
      %v3885 = vsub.f32 0.0, %v3821
      %v3886 = vsub.f32 0.0, %v3822
      %v3887 = vsub.f32 0.0, %v3823
      %v3888 = vsub.f32 0.0, %v3824
      %v3889 = vsub.f32 0.0, %v3825
      %v3890 = vsub.f32 0.0, %v3826
      %v3891 = vsub.f32 0.0, %v3827
      %v3892 = vsub.f32 0.0, %v3828
      %v3893 = vmul.f32 %v3829, 1.442695
      %v3894 = vpow.pop %v3893
      %v3895 = vmul.f32 %v3830, 1.442695
      %v3896 = vpow.pop %v3895
      %v3897 = vmul.f32 %v3831, 1.442695
      %v3898 = vpow.pop %v3897
      %v3899 = vmul.f32 %v3832, 1.442695
      %v3900 = vpow.pop %v3899
      %v3901 = vmul.f32 %v3833, 1.442695
      %v3902 = vpow.pop %v3901
      %v3903 = vmul.f32 %v3834, 1.442695
      %v3904 = vpow.pop %v3903
      %v3905 = vmul.f32 %v3835, 1.442695
      %v3906 = vpow.pop %v3905
      %v3907 = vmul.f32 %v3836, 1.442695
      %v3908 = vpow.pop %v3907
      %v3909 = vmul.f32 %v3837, 1.442695
      %v3910 = vpow.pop %v3909
      %v3911 = vmul.f32 %v3838, 1.442695
      %v3912 = vpow.pop %v3911
      %v3913 = vmul.f32 %v3839, 1.442695
      %v3914 = vpow.pop %v3913
      %v3915 = vmul.f32 %v3840, 1.442695
      %v3916 = vpow.pop %v3915
      %v3917 = vmul.f32 %v3841, 1.442695
      %v3918 = vpow.pop %v3917
      %v3919 = vmul.f32 %v3842, 1.442695
      %v3920 = vpow.pop %v3919
      %v3921 = vmul.f32 %v3843, 1.442695
      %v3922 = vpow.pop %v3921
      %v3923 = vmul.f32 %v3844, 1.442695
      %v3924 = vpow.pop %v3923
      %v3925 = vmul.f32 %v3845, 1.442695
      %v3926 = vpow.pop %v3925
      %v3927 = vmul.f32 %v3846, 1.442695
      %v3928 = vpow.pop %v3927
      %v3929 = vmul.f32 %v3847, 1.442695
      %v3930 = vpow.pop %v3929
      %v3931 = vmul.f32 %v3848, 1.442695
      %v3932 = vpow.pop %v3931
      %v3933 = vmul.f32 %v3849, 1.442695
      %v3934 = vpow.pop %v3933
      %v3935 = vmul.f32 %v3850, 1.442695
      %v3936 = vpow.pop %v3935
      %v3937 = vmul.f32 %v3851, 1.442695
      %v3938 = vpow.pop %v3937
      %v3939 = vmul.f32 %v3852, 1.442695
      %v3940 = vpow.pop %v3939
      %v3941 = vmul.f32 %v3853, 1.442695
      %v3942 = vpow.pop %v3941
      %v3943 = vmul.f32 %v3854, 1.442695
      %v3944 = vpow.pop %v3943
      %v3945 = vmul.f32 %v3855, 1.442695
      %v3946 = vpow.pop %v3945
      %v3947 = vmul.f32 %v3856, 1.442695
      %v3948 = vpow.pop %v3947
      %v3949 = vmul.f32 %v3857, 1.442695
      %v3950 = vpow.pop %v3949
      %v3951 = vmul.f32 %v3858, 1.442695
      %v3952 = vpow.pop %v3951
      %v3953 = vmul.f32 %v3859, 1.442695
      %v3954 = vpow.pop %v3953
      %v3955 = vmul.f32 %v3860, 1.442695
      %v3956 = vpow.pop %v3955
      %v3957 = vmul.f32 %v3861, 1.442695
      %v3958 = vpow.pop %v3957
      %v3959 = vmul.f32 %v3862, 1.442695
      %v3960 = vpow.pop %v3959
      %v3961 = vmul.f32 %v3863, 1.442695
      %v3962 = vpow.pop %v3961
      %v3963 = vmul.f32 %v3864, 1.442695
      %v3964 = vpow.pop %v3963
      %v3965 = vmul.f32 %v3865, 1.442695
      %v3966 = vpow.pop %v3965
      %v3967 = vmul.f32 %v3866, 1.442695
      %v3968 = vpow.pop %v3967
      %v3969 = vmul.f32 %v3867, 1.442695
      %v3970 = vpow.pop %v3969
      %v3971 = vmul.f32 %v3868, 1.442695
      %v3972 = vpow.pop %v3971
      %v3973 = vmul.f32 %v3869, 1.442695
      %v3974 = vpow.pop %v3973
      %v3975 = vmul.f32 %v3870, 1.442695
      %v3976 = vpow.pop %v3975
      %v3977 = vmul.f32 %v3871, 1.442695
      %v3978 = vpow.pop %v3977
      %v3979 = vmul.f32 %v3872, 1.442695
      %v3980 = vpow.pop %v3979
      %v3981 = vmul.f32 %v3873, 1.442695
      %v3982 = vpow.pop %v3981
      %v3983 = vmul.f32 %v3874, 1.442695
      %v3984 = vpow.pop %v3983
      %v3985 = vmul.f32 %v3875, 1.442695
      %v3986 = vpow.pop %v3985
      %v3987 = vmul.f32 %v3876, 1.442695
      %v3988 = vpow.pop %v3987
      %v3989 = vmul.f32 %v3877, 1.442695
      %v3990 = vpow.pop %v3989
      %v3991 = vmul.f32 %v3878, 1.442695
      %v3992 = vpow.pop %v3991
      %v3993 = vmul.f32 %v3879, 1.442695
      %v3994 = vpow.pop %v3993
      %v3995 = vmul.f32 %v3880, 1.442695
      %v3996 = vpow.pop %v3995
      %v3997 = vmul.f32 %v3881, 1.442695
      %v3998 = vpow.pop %v3997
      %v3999 = vmul.f32 %v3882, 1.442695
      %v4000 = vpow.pop %v3999
      %v4001 = vmul.f32 %v3883, 1.442695
      %v4002 = vpow.pop %v4001
      %v4003 = vmul.f32 %v3884, 1.442695
      %v4004 = vpow.pop %v4003
      %v4005 = vmul.f32 %v3885, 1.442695
      %v4006 = vpow.pop %v4005
      %v4007 = vmul.f32 %v3886, 1.442695
      %v4008 = vpow.pop %v4007
      %v4009 = vmul.f32 %v3887, 1.442695
      %v4010 = vpow.pop %v4009
      %v4011 = vmul.f32 %v3888, 1.442695
      %v4012 = vpow.pop %v4011
      %v4013 = vmul.f32 %v3889, 1.442695
      %v4014 = vpow.pop %v4013
      %v4015 = vmul.f32 %v3890, 1.442695
      %v4016 = vpow.pop %v4015
      %v4017 = vmul.f32 %v3891, 1.442695
      %v4018 = vpow.pop %v4017
      %v4019 = vmul.f32 %v3892, 1.442695
      %v4020 = vpow.pop %v4019
      %v4021 = vadd.f32 %v3894, 1.0
      %v4022 = vlog2.pop %v4021
      %v4023 = vmul.f32 %v4022, 0.6931472
      %v4024 = vmul.f32 -0.5, %v3894
      %v4025 = vadd.f32 %v4024, 1.0
      %v4026 = vmul.f32 %v4025, %v3894
      %v4027 = vand.u32 2147483647, %v3894
      %vm4028 = vcmp.lt.f32.partialorder %v4027, 0.0004427343
      %v4029 = vsel %vm4028, %v4026, %v4023
      %v4030 = vadd.f32 %v3896, 1.0
      %v4031 = vlog2.pop %v4030
      %v4032 = vmul.f32 %v4031, 0.6931472
      %v4033 = vmul.f32 -0.5, %v3896
      %v4034 = vadd.f32 %v4033, 1.0
      %v4035 = vmul.f32 %v4034, %v3896
      %v4036 = vand.u32 2147483647, %v3896
      %vm4037 = vcmp.lt.f32.partialorder %v4036, 0.0004427343
      %v4038 = vsel %vm4037, %v4035, %v4032
      %v4039 = vadd.f32 %v3898, 1.0
      %v4040 = vlog2.pop %v4039
      %v4041 = vmul.f32 %v4040, 0.6931472
      %v4042 = vmul.f32 -0.5, %v3898
      %v4043 = vadd.f32 %v4042, 1.0
      %v4044 = vmul.f32 %v4043, %v3898
      %v4045 = vand.u32 2147483647, %v3898
      %vm4046 = vcmp.lt.f32.partialorder %v4045, 0.0004427343
      %v4047 = vsel %vm4046, %v4044, %v4041
      %v4048 = vadd.f32 %v3900, 1.0
      %v4049 = vlog2.pop %v4048
      %v4050 = vmul.f32 %v4049, 0.6931472
      %v4051 = vmul.f32 -0.5, %v3900
      %v4052 = vadd.f32 %v4051, 1.0
      %v4053 = vmul.f32 %v4052, %v3900
      %v4054 = vand.u32 2147483647, %v3900
      %vm4055 = vcmp.lt.f32.partialorder %v4054, 0.0004427343
      %v4056 = vsel %vm4055, %v4053, %v4050
      %v4057 = vadd.f32 %v3902, 1.0
      %v4058 = vlog2.pop %v4057
      %v4059 = vmul.f32 %v4058, 0.6931472
      %v4060 = vmul.f32 -0.5, %v3902
      %v4061 = vadd.f32 %v4060, 1.0
      %v4062 = vmul.f32 %v4061, %v3902
      %v4063 = vand.u32 2147483647, %v3902
      %vm4064 = vcmp.lt.f32.partialorder %v4063, 0.0004427343
      %v4065 = vsel %vm4064, %v4062, %v4059
      %v4066 = vadd.f32 %v3904, 1.0
      %v4067 = vlog2.pop %v4066
      %v4068 = vmul.f32 %v4067, 0.6931472
      %v4069 = vmul.f32 -0.5, %v3904
      %v4070 = vadd.f32 %v4069, 1.0
      %v4071 = vmul.f32 %v4070, %v3904
      %v4072 = vand.u32 2147483647, %v3904
      %vm4073 = vcmp.lt.f32.partialorder %v4072, 0.0004427343
      %v4074 = vsel %vm4073, %v4071, %v4068
      %v4075 = vadd.f32 %v3906, 1.0
      %v4076 = vlog2.pop %v4075
      %v4077 = vmul.f32 %v4076, 0.6931472
      %v4078 = vmul.f32 -0.5, %v3906
      %v4079 = vadd.f32 %v4078, 1.0
      %v4080 = vmul.f32 %v4079, %v3906
      %v4081 = vand.u32 2147483647, %v3906
      %vm4082 = vcmp.lt.f32.partialorder %v4081, 0.0004427343
      %v4083 = vsel %vm4082, %v4080, %v4077
      %v4084 = vadd.f32 %v3908, 1.0
      %v4085 = vlog2.pop %v4084
      %v4086 = vmul.f32 %v4085, 0.6931472
      %v4087 = vmul.f32 -0.5, %v3908
      %v4088 = vadd.f32 %v4087, 1.0
      %v4089 = vmul.f32 %v4088, %v3908
      %v4090 = vand.u32 2147483647, %v3908
      %vm4091 = vcmp.lt.f32.partialorder %v4090, 0.0004427343
      %v4092 = vsel %vm4091, %v4089, %v4086
      %v4093 = vadd.f32 %v3910, 1.0
      %v4094 = vlog2.pop %v4093
      %v4095 = vmul.f32 %v4094, 0.6931472
      %v4096 = vmul.f32 -0.5, %v3910
      %v4097 = vadd.f32 %v4096, 1.0
      %v4098 = vmul.f32 %v4097, %v3910
      %v4099 = vand.u32 2147483647, %v3910
      %vm4100 = vcmp.lt.f32.partialorder %v4099, 0.0004427343
      %v4101 = vsel %vm4100, %v4098, %v4095
      %v4102 = vadd.f32 %v3912, 1.0
      %v4103 = vlog2.pop %v4102
      %v4104 = vmul.f32 %v4103, 0.6931472
      %v4105 = vmul.f32 -0.5, %v3912
      %v4106 = vadd.f32 %v4105, 1.0
      %v4107 = vmul.f32 %v4106, %v3912
      %v4108 = vand.u32 2147483647, %v3912
      %vm4109 = vcmp.lt.f32.partialorder %v4108, 0.0004427343
      %v4110 = vsel %vm4109, %v4107, %v4104
      %v4111 = vadd.f32 %v3914, 1.0
      %v4112 = vlog2.pop %v4111
      %v4113 = vmul.f32 %v4112, 0.6931472
      %v4114 = vmul.f32 -0.5, %v3914
      %v4115 = vadd.f32 %v4114, 1.0
      %v4116 = vmul.f32 %v4115, %v3914
      %v4117 = vand.u32 2147483647, %v3914
      %vm4118 = vcmp.lt.f32.partialorder %v4117, 0.0004427343
      %v4119 = vsel %vm4118, %v4116, %v4113
      %v4120 = vadd.f32 %v3916, 1.0
      %v4121 = vlog2.pop %v4120
      %v4122 = vmul.f32 %v4121, 0.6931472
      %v4123 = vmul.f32 -0.5, %v3916
      %v4124 = vadd.f32 %v4123, 1.0
      %v4125 = vmul.f32 %v4124, %v3916
      %v4126 = vand.u32 2147483647, %v3916
      %vm4127 = vcmp.lt.f32.partialorder %v4126, 0.0004427343
      %v4128 = vsel %vm4127, %v4125, %v4122
      %v4129 = vadd.f32 %v3918, 1.0
      %v4130 = vlog2.pop %v4129
      %v4131 = vmul.f32 %v4130, 0.6931472
      %v4132 = vmul.f32 -0.5, %v3918
      %v4133 = vadd.f32 %v4132, 1.0
      %v4134 = vmul.f32 %v4133, %v3918
      %v4135 = vand.u32 2147483647, %v3918
      %vm4136 = vcmp.lt.f32.partialorder %v4135, 0.0004427343
      %v4137 = vsel %vm4136, %v4134, %v4131
      %v4138 = vadd.f32 %v3920, 1.0
      %v4139 = vlog2.pop %v4138
      %v4140 = vmul.f32 %v4139, 0.6931472
      %v4141 = vmul.f32 -0.5, %v3920
      %v4142 = vadd.f32 %v4141, 1.0
      %v4143 = vmul.f32 %v4142, %v3920
      %v4144 = vand.u32 2147483647, %v3920
      %vm4145 = vcmp.lt.f32.partialorder %v4144, 0.0004427343
      %v4146 = vsel %vm4145, %v4143, %v4140
      %v4147 = vadd.f32 %v3922, 1.0
      %v4148 = vlog2.pop %v4147
      %v4149 = vmul.f32 %v4148, 0.6931472
      %v4150 = vmul.f32 -0.5, %v3922
      %v4151 = vadd.f32 %v4150, 1.0
      %v4152 = vmul.f32 %v4151, %v3922
      %v4153 = vand.u32 2147483647, %v3922
      %vm4154 = vcmp.lt.f32.partialorder %v4153, 0.0004427343
      %v4155 = vsel %vm4154, %v4152, %v4149
      %v4156 = vadd.f32 %v3924, 1.0
      %v4157 = vlog2.pop %v4156
      %v4158 = vmul.f32 %v4157, 0.6931472
      %v4159 = vmul.f32 -0.5, %v3924
      %v4160 = vadd.f32 %v4159, 1.0
      %v4161 = vmul.f32 %v4160, %v3924
      %v4162 = vand.u32 2147483647, %v3924
      %vm4163 = vcmp.lt.f32.partialorder %v4162, 0.0004427343
      %v4164 = vsel %vm4163, %v4161, %v4158
      %v4165 = vadd.f32 %v3926, 1.0
      %v4166 = vlog2.pop %v4165
      %v4167 = vmul.f32 %v4166, 0.6931472
      %v4168 = vmul.f32 -0.5, %v3926
      %v4169 = vadd.f32 %v4168, 1.0
      %v4170 = vmul.f32 %v4169, %v3926
      %v4171 = vand.u32 2147483647, %v3926
      %vm4172 = vcmp.lt.f32.partialorder %v4171, 0.0004427343
      %v4173 = vsel %vm4172, %v4170, %v4167
      %v4174 = vadd.f32 %v3928, 1.0
      %v4175 = vlog2.pop %v4174
      %v4176 = vmul.f32 %v4175, 0.6931472
      %v4177 = vmul.f32 -0.5, %v3928
      %v4178 = vadd.f32 %v4177, 1.0
      %v4179 = vmul.f32 %v4178, %v3928
      %v4180 = vand.u32 2147483647, %v3928
      %vm4181 = vcmp.lt.f32.partialorder %v4180, 0.0004427343
      %v4182 = vsel %vm4181, %v4179, %v4176
      %v4183 = vadd.f32 %v3930, 1.0
      %v4184 = vlog2.pop %v4183
      %v4185 = vmul.f32 %v4184, 0.6931472
      %v4186 = vmul.f32 -0.5, %v3930
      %v4187 = vadd.f32 %v4186, 1.0
      %v4188 = vmul.f32 %v4187, %v3930
      %v4189 = vand.u32 2147483647, %v3930
      %vm4190 = vcmp.lt.f32.partialorder %v4189, 0.0004427343
      %v4191 = vsel %vm4190, %v4188, %v4185
      %v4192 = vadd.f32 %v3932, 1.0
      %v4193 = vlog2.pop %v4192
      %v4194 = vmul.f32 %v4193, 0.6931472
      %v4195 = vmul.f32 -0.5, %v3932
      %v4196 = vadd.f32 %v4195, 1.0
      %v4197 = vmul.f32 %v4196, %v3932
      %v4198 = vand.u32 2147483647, %v3932
      %vm4199 = vcmp.lt.f32.partialorder %v4198, 0.0004427343
      %v4200 = vsel %vm4199, %v4197, %v4194
      %v4201 = vadd.f32 %v3934, 1.0
      %v4202 = vlog2.pop %v4201
      %v4203 = vmul.f32 %v4202, 0.6931472
      %v4204 = vmul.f32 -0.5, %v3934
      %v4205 = vadd.f32 %v4204, 1.0
      %v4206 = vmul.f32 %v4205, %v3934
      %v4207 = vand.u32 2147483647, %v3934
      %vm4208 = vcmp.lt.f32.partialorder %v4207, 0.0004427343
      %v4209 = vsel %vm4208, %v4206, %v4203
      %v4210 = vadd.f32 %v3936, 1.0
      %v4211 = vlog2.pop %v4210
      %v4212 = vmul.f32 %v4211, 0.6931472
      %v4213 = vmul.f32 -0.5, %v3936
      %v4214 = vadd.f32 %v4213, 1.0
      %v4215 = vmul.f32 %v4214, %v3936
      %v4216 = vand.u32 2147483647, %v3936
      %vm4217 = vcmp.lt.f32.partialorder %v4216, 0.0004427343
      %v4218 = vsel %vm4217, %v4215, %v4212
      %v4219 = vadd.f32 %v3938, 1.0
      %v4220 = vlog2.pop %v4219
      %v4221 = vmul.f32 %v4220, 0.6931472
      %v4222 = vmul.f32 -0.5, %v3938
      %v4223 = vadd.f32 %v4222, 1.0
      %v4224 = vmul.f32 %v4223, %v3938
      %v4225 = vand.u32 2147483647, %v3938
      %vm4226 = vcmp.lt.f32.partialorder %v4225, 0.0004427343
      %v4227 = vsel %vm4226, %v4224, %v4221
      %v4228 = vadd.f32 %v3940, 1.0
      %v4229 = vlog2.pop %v4228
      %v4230 = vmul.f32 %v4229, 0.6931472
      %v4231 = vmul.f32 -0.5, %v3940
      %v4232 = vadd.f32 %v4231, 1.0
      %v4233 = vmul.f32 %v4232, %v3940
      %v4234 = vand.u32 2147483647, %v3940
      %vm4235 = vcmp.lt.f32.partialorder %v4234, 0.0004427343
      %v4236 = vsel %vm4235, %v4233, %v4230
      %v4237 = vadd.f32 %v3942, 1.0
      %v4238 = vlog2.pop %v4237
      %v4239 = vmul.f32 %v4238, 0.6931472
      %v4240 = vmul.f32 -0.5, %v3942
      %v4241 = vadd.f32 %v4240, 1.0
      %v4242 = vmul.f32 %v4241, %v3942
      %v4243 = vand.u32 2147483647, %v3942
      %vm4244 = vcmp.lt.f32.partialorder %v4243, 0.0004427343
      %v4245 = vsel %vm4244, %v4242, %v4239
      %v4246 = vadd.f32 %v3944, 1.0
      %v4247 = vlog2.pop %v4246
      %v4248 = vmul.f32 %v4247, 0.6931472
      %v4249 = vmul.f32 -0.5, %v3944
      %v4250 = vadd.f32 %v4249, 1.0
      %v4251 = vmul.f32 %v4250, %v3944
      %v4252 = vand.u32 2147483647, %v3944
      %vm4253 = vcmp.lt.f32.partialorder %v4252, 0.0004427343
      %v4254 = vsel %vm4253, %v4251, %v4248
      %v4255 = vadd.f32 %v3946, 1.0
      %v4256 = vlog2.pop %v4255
      %v4257 = vmul.f32 %v4256, 0.6931472
      %v4258 = vmul.f32 -0.5, %v3946
      %v4259 = vadd.f32 %v4258, 1.0
      %v4260 = vmul.f32 %v4259, %v3946
      %v4261 = vand.u32 2147483647, %v3946
      %vm4262 = vcmp.lt.f32.partialorder %v4261, 0.0004427343
      %v4263 = vsel %vm4262, %v4260, %v4257
      %v4264 = vadd.f32 %v3948, 1.0
      %v4265 = vlog2.pop %v4264
      %v4266 = vmul.f32 %v4265, 0.6931472
      %v4267 = vmul.f32 -0.5, %v3948
      %v4268 = vadd.f32 %v4267, 1.0
      %v4269 = vmul.f32 %v4268, %v3948
      %v4270 = vand.u32 2147483647, %v3948
      %vm4271 = vcmp.lt.f32.partialorder %v4270, 0.0004427343
      %v4272 = vsel %vm4271, %v4269, %v4266
      %v4273 = vadd.f32 %v3950, 1.0
      %v4274 = vlog2.pop %v4273
      %v4275 = vmul.f32 %v4274, 0.6931472
      %v4276 = vmul.f32 -0.5, %v3950
      %v4277 = vadd.f32 %v4276, 1.0
      %v4278 = vmul.f32 %v4277, %v3950
      %v4279 = vand.u32 2147483647, %v3950
      %vm4280 = vcmp.lt.f32.partialorder %v4279, 0.0004427343
      %v4281 = vsel %vm4280, %v4278, %v4275
      %v4282 = vadd.f32 %v3952, 1.0
      %v4283 = vlog2.pop %v4282
      %v4284 = vmul.f32 %v4283, 0.6931472
      %v4285 = vmul.f32 -0.5, %v3952
      %v4286 = vadd.f32 %v4285, 1.0
      %v4287 = vmul.f32 %v4286, %v3952
      %v4288 = vand.u32 2147483647, %v3952
      %vm4289 = vcmp.lt.f32.partialorder %v4288, 0.0004427343
      %v4290 = vsel %vm4289, %v4287, %v4284
      %v4291 = vadd.f32 %v3954, 1.0
      %v4292 = vlog2.pop %v4291
      %v4293 = vmul.f32 %v4292, 0.6931472
      %v4294 = vmul.f32 -0.5, %v3954
      %v4295 = vadd.f32 %v4294, 1.0
      %v4296 = vmul.f32 %v4295, %v3954
      %v4297 = vand.u32 2147483647, %v3954
      %vm4298 = vcmp.lt.f32.partialorder %v4297, 0.0004427343
      %v4299 = vsel %vm4298, %v4296, %v4293
      %v4300 = vadd.f32 %v3956, 1.0
      %v4301 = vlog2.pop %v4300
      %v4302 = vmul.f32 %v4301, 0.6931472
      %v4303 = vmul.f32 -0.5, %v3956
      %v4304 = vadd.f32 %v4303, 1.0
      %v4305 = vmul.f32 %v4304, %v3956
      %v4306 = vand.u32 2147483647, %v3956
      %vm4307 = vcmp.lt.f32.partialorder %v4306, 0.0004427343
      %v4308 = vsel %vm4307, %v4305, %v4302
      %v4309 = vadd.f32 %v3958, 1.0
      %v4310 = vlog2.pop %v4309
      %v4311 = vmul.f32 %v4310, 0.6931472
      %v4312 = vmul.f32 -0.5, %v3958
      %v4313 = vadd.f32 %v4312, 1.0
      %v4314 = vmul.f32 %v4313, %v3958
      %v4315 = vand.u32 2147483647, %v3958
      %vm4316 = vcmp.lt.f32.partialorder %v4315, 0.0004427343
      %v4317 = vsel %vm4316, %v4314, %v4311
      %v4318 = vadd.f32 %v3960, 1.0
      %v4319 = vlog2.pop %v4318
      %v4320 = vmul.f32 %v4319, 0.6931472
      %v4321 = vmul.f32 -0.5, %v3960
      %v4322 = vadd.f32 %v4321, 1.0
      %v4323 = vmul.f32 %v4322, %v3960
      %v4324 = vand.u32 2147483647, %v3960
      %vm4325 = vcmp.lt.f32.partialorder %v4324, 0.0004427343
      %v4326 = vsel %vm4325, %v4323, %v4320
      %v4327 = vadd.f32 %v3962, 1.0
      %v4328 = vlog2.pop %v4327
      %v4329 = vmul.f32 %v4328, 0.6931472
      %v4330 = vmul.f32 -0.5, %v3962
      %v4331 = vadd.f32 %v4330, 1.0
      %v4332 = vmul.f32 %v4331, %v3962
      %v4333 = vand.u32 2147483647, %v3962
      %vm4334 = vcmp.lt.f32.partialorder %v4333, 0.0004427343
      %v4335 = vsel %vm4334, %v4332, %v4329
      %v4336 = vadd.f32 %v3964, 1.0
      %v4337 = vlog2.pop %v4336
      %v4338 = vmul.f32 %v4337, 0.6931472
      %v4339 = vmul.f32 -0.5, %v3964
      %v4340 = vadd.f32 %v4339, 1.0
      %v4341 = vmul.f32 %v4340, %v3964
      %v4342 = vand.u32 2147483647, %v3964
      %vm4343 = vcmp.lt.f32.partialorder %v4342, 0.0004427343
      %v4344 = vsel %vm4343, %v4341, %v4338
      %v4345 = vadd.f32 %v3966, 1.0
      %v4346 = vlog2.pop %v4345
      %v4347 = vmul.f32 %v4346, 0.6931472
      %v4348 = vmul.f32 -0.5, %v3966
      %v4349 = vadd.f32 %v4348, 1.0
      %v4350 = vmul.f32 %v4349, %v3966
      %v4351 = vand.u32 2147483647, %v3966
      %vm4352 = vcmp.lt.f32.partialorder %v4351, 0.0004427343
      %v4353 = vsel %vm4352, %v4350, %v4347
      %v4354 = vadd.f32 %v3968, 1.0
      %v4355 = vlog2.pop %v4354
      %v4356 = vmul.f32 %v4355, 0.6931472
      %v4357 = vmul.f32 -0.5, %v3968
      %v4358 = vadd.f32 %v4357, 1.0
      %v4359 = vmul.f32 %v4358, %v3968
      %v4360 = vand.u32 2147483647, %v3968
      %vm4361 = vcmp.lt.f32.partialorder %v4360, 0.0004427343
      %v4362 = vsel %vm4361, %v4359, %v4356
      %v4363 = vadd.f32 %v3970, 1.0
      %v4364 = vlog2.pop %v4363
      %v4365 = vmul.f32 %v4364, 0.6931472
      %v4366 = vmul.f32 -0.5, %v3970
      %v4367 = vadd.f32 %v4366, 1.0
      %v4368 = vmul.f32 %v4367, %v3970
      %v4369 = vand.u32 2147483647, %v3970
      %vm4370 = vcmp.lt.f32.partialorder %v4369, 0.0004427343
      %v4371 = vsel %vm4370, %v4368, %v4365
      %v4372 = vadd.f32 %v3972, 1.0
      %v4373 = vlog2.pop %v4372
      %v4374 = vmul.f32 %v4373, 0.6931472
      %v4375 = vmul.f32 -0.5, %v3972
      %v4376 = vadd.f32 %v4375, 1.0
      %v4377 = vmul.f32 %v4376, %v3972
      %v4378 = vand.u32 2147483647, %v3972
      %vm4379 = vcmp.lt.f32.partialorder %v4378, 0.0004427343
      %v4380 = vsel %vm4379, %v4377, %v4374
      %v4381 = vadd.f32 %v3974, 1.0
      %v4382 = vlog2.pop %v4381
      %v4383 = vmul.f32 %v4382, 0.6931472
      %v4384 = vmul.f32 -0.5, %v3974
      %v4385 = vadd.f32 %v4384, 1.0
      %v4386 = vmul.f32 %v4385, %v3974
      %v4387 = vand.u32 2147483647, %v3974
      %vm4388 = vcmp.lt.f32.partialorder %v4387, 0.0004427343
      %v4389 = vsel %vm4388, %v4386, %v4383
      %v4390 = vadd.f32 %v3976, 1.0
      %v4391 = vlog2.pop %v4390
      %v4392 = vmul.f32 %v4391, 0.6931472
      %v4393 = vmul.f32 -0.5, %v3976
      %v4394 = vadd.f32 %v4393, 1.0
      %v4395 = vmul.f32 %v4394, %v3976
      %v4396 = vand.u32 2147483647, %v3976
      %vm4397 = vcmp.lt.f32.partialorder %v4396, 0.0004427343
      %v4398 = vsel %vm4397, %v4395, %v4392
      %v4399 = vadd.f32 %v3978, 1.0
      %v4400 = vlog2.pop %v4399
      %v4401 = vmul.f32 %v4400, 0.6931472
      %v4402 = vmul.f32 -0.5, %v3978
      %v4403 = vadd.f32 %v4402, 1.0
      %v4404 = vmul.f32 %v4403, %v3978
      %v4405 = vand.u32 2147483647, %v3978
      %vm4406 = vcmp.lt.f32.partialorder %v4405, 0.0004427343
      %v4407 = vsel %vm4406, %v4404, %v4401
      %v4408 = vadd.f32 %v3980, 1.0
      %v4409 = vlog2.pop %v4408
      %v4410 = vmul.f32 %v4409, 0.6931472
      %v4411 = vmul.f32 -0.5, %v3980
      %v4412 = vadd.f32 %v4411, 1.0
      %v4413 = vmul.f32 %v4412, %v3980
      %v4414 = vand.u32 2147483647, %v3980
      %vm4415 = vcmp.lt.f32.partialorder %v4414, 0.0004427343
      %v4416 = vsel %vm4415, %v4413, %v4410
      %v4417 = vadd.f32 %v3982, 1.0
      %v4418 = vlog2.pop %v4417
      %v4419 = vmul.f32 %v4418, 0.6931472
      %v4420 = vmul.f32 -0.5, %v3982
      %v4421 = vadd.f32 %v4420, 1.0
      %v4422 = vmul.f32 %v4421, %v3982
      %v4423 = vand.u32 2147483647, %v3982
      %vm4424 = vcmp.lt.f32.partialorder %v4423, 0.0004427343
      %v4425 = vsel %vm4424, %v4422, %v4419
      %v4426 = vadd.f32 %v3984, 1.0
      %v4427 = vlog2.pop %v4426
      %v4428 = vmul.f32 %v4427, 0.6931472
      %v4429 = vmul.f32 -0.5, %v3984
      %v4430 = vadd.f32 %v4429, 1.0
      %v4431 = vmul.f32 %v4430, %v3984
      %v4432 = vand.u32 2147483647, %v3984
      %vm4433 = vcmp.lt.f32.partialorder %v4432, 0.0004427343
      %v4434 = vsel %vm4433, %v4431, %v4428
      %v4435 = vadd.f32 %v3986, 1.0
      %v4436 = vlog2.pop %v4435
      %v4437 = vmul.f32 %v4436, 0.6931472
      %v4438 = vmul.f32 -0.5, %v3986
      %v4439 = vadd.f32 %v4438, 1.0
      %v4440 = vmul.f32 %v4439, %v3986
      %v4441 = vand.u32 2147483647, %v3986
      %vm4442 = vcmp.lt.f32.partialorder %v4441, 0.0004427343
      %v4443 = vsel %vm4442, %v4440, %v4437
      %v4444 = vadd.f32 %v3988, 1.0
      %v4445 = vlog2.pop %v4444
      %v4446 = vmul.f32 %v4445, 0.6931472
      %v4447 = vmul.f32 -0.5, %v3988
      %v4448 = vadd.f32 %v4447, 1.0
      %v4449 = vmul.f32 %v4448, %v3988
      %v4450 = vand.u32 2147483647, %v3988
      %vm4451 = vcmp.lt.f32.partialorder %v4450, 0.0004427343
      %v4452 = vsel %vm4451, %v4449, %v4446
      %v4453 = vadd.f32 %v3990, 1.0
      %v4454 = vlog2.pop %v4453
      %v4455 = vmul.f32 %v4454, 0.6931472
      %v4456 = vmul.f32 -0.5, %v3990
      %v4457 = vadd.f32 %v4456, 1.0
      %v4458 = vmul.f32 %v4457, %v3990
      %v4459 = vand.u32 2147483647, %v3990
      %vm4460 = vcmp.lt.f32.partialorder %v4459, 0.0004427343
      %v4461 = vsel %vm4460, %v4458, %v4455
      %v4462 = vadd.f32 %v3992, 1.0
      %v4463 = vlog2.pop %v4462
      %v4464 = vmul.f32 %v4463, 0.6931472
      %v4465 = vmul.f32 -0.5, %v3992
      %v4466 = vadd.f32 %v4465, 1.0
      %v4467 = vmul.f32 %v4466, %v3992
      %v4468 = vand.u32 2147483647, %v3992
      %vm4469 = vcmp.lt.f32.partialorder %v4468, 0.0004427343
      %v4470 = vsel %vm4469, %v4467, %v4464
      %v4471 = vadd.f32 %v3994, 1.0
      %v4472 = vlog2.pop %v4471
      %v4473 = vmul.f32 %v4472, 0.6931472
      %v4474 = vmul.f32 -0.5, %v3994
      %v4475 = vadd.f32 %v4474, 1.0
      %v4476 = vmul.f32 %v4475, %v3994
      %v4477 = vand.u32 2147483647, %v3994
      %vm4478 = vcmp.lt.f32.partialorder %v4477, 0.0004427343
      %v4479 = vsel %vm4478, %v4476, %v4473
      %v4480 = vadd.f32 %v3996, 1.0
      %v4481 = vlog2.pop %v4480
      %v4482 = vmul.f32 %v4481, 0.6931472
      %v4483 = vmul.f32 -0.5, %v3996
      %v4484 = vadd.f32 %v4483, 1.0
      %v4485 = vmul.f32 %v4484, %v3996
      %v4486 = vand.u32 2147483647, %v3996
      %vm4487 = vcmp.lt.f32.partialorder %v4486, 0.0004427343
      %v4488 = vsel %vm4487, %v4485, %v4482
      %v4489 = vadd.f32 %v3998, 1.0
      %v4490 = vlog2.pop %v4489
      %v4491 = vmul.f32 %v4490, 0.6931472
      %v4492 = vmul.f32 -0.5, %v3998
      %v4493 = vadd.f32 %v4492, 1.0
      %v4494 = vmul.f32 %v4493, %v3998
      %v4495 = vand.u32 2147483647, %v3998
      %vm4496 = vcmp.lt.f32.partialorder %v4495, 0.0004427343
      %v4497 = vsel %vm4496, %v4494, %v4491
      %v4498 = vadd.f32 %v4000, 1.0
      %v4499 = vlog2.pop %v4498
      %v4500 = vmul.f32 %v4499, 0.6931472
      %v4501 = vmul.f32 -0.5, %v4000
      %v4502 = vadd.f32 %v4501, 1.0
      %v4503 = vmul.f32 %v4502, %v4000
      %v4504 = vand.u32 2147483647, %v4000
      %vm4505 = vcmp.lt.f32.partialorder %v4504, 0.0004427343
      %v4506 = vsel %vm4505, %v4503, %v4500
      %v4507 = vadd.f32 %v4002, 1.0
      %v4508 = vlog2.pop %v4507
      %v4509 = vmul.f32 %v4508, 0.6931472
      %v4510 = vmul.f32 -0.5, %v4002
      %v4511 = vadd.f32 %v4510, 1.0
      %v4512 = vmul.f32 %v4511, %v4002
      %v4513 = vand.u32 2147483647, %v4002
      %vm4514 = vcmp.lt.f32.partialorder %v4513, 0.0004427343
      %v4515 = vsel %vm4514, %v4512, %v4509
      %v4516 = vadd.f32 %v4004, 1.0
      %v4517 = vlog2.pop %v4516
      %v4518 = vmul.f32 %v4517, 0.6931472
      %v4519 = vmul.f32 -0.5, %v4004
      %v4520 = vadd.f32 %v4519, 1.0
      %v4521 = vmul.f32 %v4520, %v4004
      %v4522 = vand.u32 2147483647, %v4004
      %vm4523 = vcmp.lt.f32.partialorder %v4522, 0.0004427343
      %v4524 = vsel %vm4523, %v4521, %v4518
      %v4525 = vadd.f32 %v4006, 1.0
      %v4526 = vlog2.pop %v4525
      %v4527 = vmul.f32 %v4526, 0.6931472
      %v4528 = vmul.f32 -0.5, %v4006
      %v4529 = vadd.f32 %v4528, 1.0
      %v4530 = vmul.f32 %v4529, %v4006
      %v4531 = vand.u32 2147483647, %v4006
      %vm4532 = vcmp.lt.f32.partialorder %v4531, 0.0004427343
      %v4533 = vsel %vm4532, %v4530, %v4527
      %v4534 = vadd.f32 %v4008, 1.0
      %v4535 = vlog2.pop %v4534
      %v4536 = vmul.f32 %v4535, 0.6931472
      %v4537 = vmul.f32 -0.5, %v4008
      %v4538 = vadd.f32 %v4537, 1.0
      %v4539 = vmul.f32 %v4538, %v4008
      %v4540 = vand.u32 2147483647, %v4008
      %vm4541 = vcmp.lt.f32.partialorder %v4540, 0.0004427343
      %v4542 = vsel %vm4541, %v4539, %v4536
      %v4543 = vadd.f32 %v4010, 1.0
      %v4544 = vlog2.pop %v4543
      %v4545 = vmul.f32 %v4544, 0.6931472
      %v4546 = vmul.f32 -0.5, %v4010
      %v4547 = vadd.f32 %v4546, 1.0
      %v4548 = vmul.f32 %v4547, %v4010
      %v4549 = vand.u32 2147483647, %v4010
      %vm4550 = vcmp.lt.f32.partialorder %v4549, 0.0004427343
      %v4551 = vsel %vm4550, %v4548, %v4545
      %v4552 = vadd.f32 %v4012, 1.0
      %v4553 = vlog2.pop %v4552
      %v4554 = vmul.f32 %v4553, 0.6931472
      %v4555 = vmul.f32 -0.5, %v4012
      %v4556 = vadd.f32 %v4555, 1.0
      %v4557 = vmul.f32 %v4556, %v4012
      %v4558 = vand.u32 2147483647, %v4012
      %vm4559 = vcmp.lt.f32.partialorder %v4558, 0.0004427343
      %v4560 = vsel %vm4559, %v4557, %v4554
      %v4561 = vadd.f32 %v4014, 1.0
      %v4562 = vlog2.pop %v4561
      %v4563 = vmul.f32 %v4562, 0.6931472
      %v4564 = vmul.f32 -0.5, %v4014
      %v4565 = vadd.f32 %v4564, 1.0
      %v4566 = vmul.f32 %v4565, %v4014
      %v4567 = vand.u32 2147483647, %v4014
      %vm4568 = vcmp.lt.f32.partialorder %v4567, 0.0004427343
      %v4569 = vsel %vm4568, %v4566, %v4563
      %v4570 = vadd.f32 %v4016, 1.0
      %v4571 = vlog2.pop %v4570
      %v4572 = vmul.f32 %v4571, 0.6931472
      %v4573 = vmul.f32 -0.5, %v4016
      %v4574 = vadd.f32 %v4573, 1.0
      %v4575 = vmul.f32 %v4574, %v4016
      %v4576 = vand.u32 2147483647, %v4016
      %vm4577 = vcmp.lt.f32.partialorder %v4576, 0.0004427343
      %v4578 = vsel %vm4577, %v4575, %v4572
      %v4579 = vadd.f32 %v4018, 1.0
      %v4580 = vlog2.pop %v4579
      %v4581 = vmul.f32 %v4580, 0.6931472
      %v4582 = vmul.f32 -0.5, %v4018
      %v4583 = vadd.f32 %v4582, 1.0
      %v4584 = vmul.f32 %v4583, %v4018
      %v4585 = vand.u32 2147483647, %v4018
      %vm4586 = vcmp.lt.f32.partialorder %v4585, 0.0004427343
      %v4587 = vsel %vm4586, %v4584, %v4581
      %v4588 = vadd.f32 %v4020, 1.0
      %v4589 = vlog2.pop %v4588
      %v4590 = vmul.f32 %v4589, 0.6931472
      %v4591 = vmul.f32 -0.5, %v4020
      %v4592 = vadd.f32 %v4591, 1.0
      %v4593 = vmul.f32 %v4592, %v4020
      %v4594 = vand.u32 2147483647, %v4020
      %vm4595 = vcmp.lt.f32.partialorder %v4594, 0.0004427343
      %v4596 = vsel %vm4595, %v4593, %v4590
      %v4597 = vadd.f32 %v3573, %v4029
      %v4598 = vadd.f32 %v3574, %v4038
      %v4599 = vadd.f32 %v3575, %v4047
      %v4600 = vadd.f32 %v3576, %v4056
      %v4601 = vadd.f32 %v3577, %v4065
      %v4602 = vadd.f32 %v3578, %v4074
      %v4603 = vadd.f32 %v3579, %v4083
      %v4604 = vadd.f32 %v3580, %v4092
      %v4605 = vadd.f32 %v3581, %v4101
      %v4606 = vadd.f32 %v3582, %v4110
      %v4607 = vadd.f32 %v3583, %v4119
      %v4608 = vadd.f32 %v3584, %v4128
      %v4609 = vadd.f32 %v3585, %v4137
      %v4610 = vadd.f32 %v3586, %v4146
      %v4611 = vadd.f32 %v3587, %v4155
      %v4612 = vadd.f32 %v3588, %v4164
      %v4613 = vadd.f32 %v3589, %v4173
      %v4614 = vadd.f32 %v3590, %v4182
      %v4615 = vadd.f32 %v3591, %v4191
      %v4616 = vadd.f32 %v3592, %v4200
      %v4617 = vadd.f32 %v3593, %v4209
      %v4618 = vadd.f32 %v3594, %v4218
      %v4619 = vadd.f32 %v3595, %v4227
      %v4620 = vadd.f32 %v3596, %v4236
      %v4621 = vadd.f32 %v3597, %v4245
      %v4622 = vadd.f32 %v3598, %v4254
      %v4623 = vadd.f32 %v3599, %v4263
      %v4624 = vadd.f32 %v3600, %v4272
      %v4625 = vadd.f32 %v3601, %v4281
      %v4626 = vadd.f32 %v3602, %v4290
      %v4627 = vadd.f32 %v3603, %v4299
      %v4628 = vadd.f32 %v3604, %v4308
      %v4629 = vadd.f32 %v3605, %v4317
      %v4630 = vadd.f32 %v3606, %v4326
      %v4631 = vadd.f32 %v3607, %v4335
      %v4632 = vadd.f32 %v3608, %v4344
      %v4633 = vadd.f32 %v3609, %v4353
      %v4634 = vadd.f32 %v3610, %v4362
      %v4635 = vadd.f32 %v3611, %v4371
      %v4636 = vadd.f32 %v3612, %v4380
      %v4637 = vadd.f32 %v3613, %v4389
      %v4638 = vadd.f32 %v3614, %v4398
      %v4639 = vadd.f32 %v3615, %v4407
      %v4640 = vadd.f32 %v3616, %v4416
      %v4641 = vadd.f32 %v3617, %v4425
      %v4642 = vadd.f32 %v3618, %v4434
      %v4643 = vadd.f32 %v3619, %v4443
      %v4644 = vadd.f32 %v3620, %v4452
      %v4645 = vadd.f32 %v3621, %v4461
      %v4646 = vadd.f32 %v3622, %v4470
      %v4647 = vadd.f32 %v3623, %v4479
      %v4648 = vadd.f32 %v3624, %v4488
      %v4649 = vadd.f32 %v3625, %v4497
      %v4650 = vadd.f32 %v3626, %v4506
      %v4651 = vadd.f32 %v3627, %v4515
      %v4652 = vadd.f32 %v3628, %v4524
      %v4653 = vadd.f32 %v3629, %v4533
      %v4654 = vadd.f32 %v3630, %v4542
      %v4655 = vadd.f32 %v3631, %v4551
      %v4656 = vadd.f32 %v3632, %v4560
      %v4657 = vadd.f32 %v3633, %v4569
      %v4658 = vadd.f32 %v3634, %v4578
      %v4659 = vadd.f32 %v3635, %v4587
      %v4660 = vadd.f32 %v3636, %v4596
      %v4661 = vsel %vm3637, %v3701, %v4597
      %v4662 = vsel %vm3638, %v3702, %v4598
      %v4663 = vsel %vm3639, %v3703, %v4599
      %v4664 = vsel %vm3640, %v3704, %v4600
      %v4665 = vsel %vm3641, %v3705, %v4601
      %v4666 = vsel %vm3642, %v3706, %v4602
      %v4667 = vsel %vm3643, %v3707, %v4603
      %v4668 = vsel %vm3644, %v3708, %v4604
      %v4669 = vsel %vm3645, %v3709, %v4605
      %v4670 = vsel %vm3646, %v3710, %v4606
      %v4671 = vsel %vm3647, %v3711, %v4607
      %v4672 = vsel %vm3648, %v3712, %v4608
      %v4673 = vsel %vm3649, %v3713, %v4609
      %v4674 = vsel %vm3650, %v3714, %v4610
      %v4675 = vsel %vm3651, %v3715, %v4611
      %v4676 = vsel %vm3652, %v3716, %v4612
      %v4677 = vsel %vm3653, %v3717, %v4613
      %v4678 = vsel %vm3654, %v3718, %v4614
      %v4679 = vsel %vm3655, %v3719, %v4615
      %v4680 = vsel %vm3656, %v3720, %v4616
      %v4681 = vsel %vm3657, %v3721, %v4617
      %v4682 = vsel %vm3658, %v3722, %v4618
      %v4683 = vsel %vm3659, %v3723, %v4619
      %v4684 = vsel %vm3660, %v3724, %v4620
      %v4685 = vsel %vm3661, %v3725, %v4621
      %v4686 = vsel %vm3662, %v3726, %v4622
      %v4687 = vsel %vm3663, %v3727, %v4623
      %v4688 = vsel %vm3664, %v3728, %v4624
      %v4689 = vsel %vm3665, %v3729, %v4625
      %v4690 = vsel %vm3666, %v3730, %v4626
      %v4691 = vsel %vm3667, %v3731, %v4627
      %v4692 = vsel %vm3668, %v3732, %v4628
      %v4693 = vsel %vm3669, %v3733, %v4629
      %v4694 = vsel %vm3670, %v3734, %v4630
      %v4695 = vsel %vm3671, %v3735, %v4631
      %v4696 = vsel %vm3672, %v3736, %v4632
      %v4697 = vsel %vm3673, %v3737, %v4633
      %v4698 = vsel %vm3674, %v3738, %v4634
      %v4699 = vsel %vm3675, %v3739, %v4635
      %v4700 = vsel %vm3676, %v3740, %v4636
      %v4701 = vsel %vm3677, %v3741, %v4637
      %v4702 = vsel %vm3678, %v3742, %v4638
      %v4703 = vsel %vm3679, %v3743, %v4639
      %v4704 = vsel %vm3680, %v3744, %v4640
      %v4705 = vsel %vm3681, %v3745, %v4641
      %v4706 = vsel %vm3682, %v3746, %v4642
      %v4707 = vsel %vm3683, %v3747, %v4643
      %v4708 = vsel %vm3684, %v3748, %v4644
      %v4709 = vsel %vm3685, %v3749, %v4645
      %v4710 = vsel %vm3686, %v3750, %v4646
      %v4711 = vsel %vm3687, %v3751, %v4647
      %v4712 = vsel %vm3688, %v3752, %v4648
      %v4713 = vsel %vm3689, %v3753, %v4649
      %v4714 = vsel %vm3690, %v3754, %v4650
      %v4715 = vsel %vm3691, %v3755, %v4651
      %v4716 = vsel %vm3692, %v3756, %v4652
      %v4717 = vsel %vm3693, %v3757, %v4653
      %v4718 = vsel %vm3694, %v3758, %v4654
      %v4719 = vsel %vm3695, %v3759, %v4655
      %v4720 = vsel %vm3696, %v3760, %v4656
      %v4721 = vsel %vm3697, %v3761, %v4657
      %v4722 = vsel %vm3698, %v3762, %v4658
      %v4723 = vsel %vm3699, %v3763, %v4659
      %v4724 = vsel %vm3700, %v3764, %v4660
      %v4725 = vadd.f32 %v4661, 0.0001
      %v4726 = vadd.f32 %v4662, 0.0001
      %v4727 = vadd.f32 %v4663, 0.0001
      %v4728 = vadd.f32 %v4664, 0.0001
      %v4729 = vadd.f32 %v4665, 0.0001
      %v4730 = vadd.f32 %v4666, 0.0001
      %v4731 = vadd.f32 %v4667, 0.0001
      %v4732 = vadd.f32 %v4668, 0.0001
      %v4733 = vadd.f32 %v4669, 0.0001
      %v4734 = vadd.f32 %v4670, 0.0001
      %v4735 = vadd.f32 %v4671, 0.0001
      %v4736 = vadd.f32 %v4672, 0.0001
      %v4737 = vadd.f32 %v4673, 0.0001
      %v4738 = vadd.f32 %v4674, 0.0001
      %v4739 = vadd.f32 %v4675, 0.0001
      %v4740 = vadd.f32 %v4676, 0.0001
      %v4741 = vadd.f32 %v4677, 0.0001
      %v4742 = vadd.f32 %v4678, 0.0001
      %v4743 = vadd.f32 %v4679, 0.0001
      %v4744 = vadd.f32 %v4680, 0.0001
      %v4745 = vadd.f32 %v4681, 0.0001
      %v4746 = vadd.f32 %v4682, 0.0001
      %v4747 = vadd.f32 %v4683, 0.0001
      %v4748 = vadd.f32 %v4684, 0.0001
      %v4749 = vadd.f32 %v4685, 0.0001
      %v4750 = vadd.f32 %v4686, 0.0001
      %v4751 = vadd.f32 %v4687, 0.0001
      %v4752 = vadd.f32 %v4688, 0.0001
      %v4753 = vadd.f32 %v4689, 0.0001
      %v4754 = vadd.f32 %v4690, 0.0001
      %v4755 = vadd.f32 %v4691, 0.0001
      %v4756 = vadd.f32 %v4692, 0.0001
      %v4757 = vadd.f32 %v4693, 0.0001
      %v4758 = vadd.f32 %v4694, 0.0001
      %v4759 = vadd.f32 %v4695, 0.0001
      %v4760 = vadd.f32 %v4696, 0.0001
      %v4761 = vadd.f32 %v4697, 0.0001
      %v4762 = vadd.f32 %v4698, 0.0001
      %v4763 = vadd.f32 %v4699, 0.0001
      %v4764 = vadd.f32 %v4700, 0.0001
      %v4765 = vadd.f32 %v4701, 0.0001
      %v4766 = vadd.f32 %v4702, 0.0001
      %v4767 = vadd.f32 %v4703, 0.0001
      %v4768 = vadd.f32 %v4704, 0.0001
      %v4769 = vadd.f32 %v4705, 0.0001
      %v4770 = vadd.f32 %v4706, 0.0001
      %v4771 = vadd.f32 %v4707, 0.0001
      %v4772 = vadd.f32 %v4708, 0.0001
      %v4773 = vadd.f32 %v4709, 0.0001
      %v4774 = vadd.f32 %v4710, 0.0001
      %v4775 = vadd.f32 %v4711, 0.0001
      %v4776 = vadd.f32 %v4712, 0.0001
      %v4777 = vadd.f32 %v4713, 0.0001
      %v4778 = vadd.f32 %v4714, 0.0001
      %v4779 = vadd.f32 %v4715, 0.0001
      %v4780 = vadd.f32 %v4716, 0.0001
      %v4781 = vadd.f32 %v4717, 0.0001
      %v4782 = vadd.f32 %v4718, 0.0001
      %v4783 = vadd.f32 %v4719, 0.0001
      %v4784 = vadd.f32 %v4720, 0.0001
      %v4785 = vadd.f32 %v4721, 0.0001
      %v4786 = vadd.f32 %v4722, 0.0001
      %v4787 = vadd.f32 %v4723, 0.0001
      %v4788 = vadd.f32 %v4724, 0.0001
      %v4789 = vsel %vm3572, %v3252, %v4725
      %v4790 = vsel %vm3572, %v3257, %v4726
      %v4791 = vsel %vm3572, %v3262, %v4727
      %v4792 = vsel %vm3572, %v3267, %v4728
      %v4793 = vsel %vm3572, %v3272, %v4729
      %v4794 = vsel %vm3572, %v3277, %v4730
      %v4795 = vsel %vm3572, %v3282, %v4731
      %v4796 = vsel %vm3572, %v3287, %v4732
      %v4797 = vsel %vm3572, %v3292, %v4733
      %v4798 = vsel %vm3572, %v3297, %v4734
      %v4799 = vsel %vm3572, %v3302, %v4735
      %v4800 = vsel %vm3572, %v3307, %v4736
      %v4801 = vsel %vm3572, %v3312, %v4737
      %v4802 = vsel %vm3572, %v3317, %v4738
      %v4803 = vsel %vm3572, %v3322, %v4739
      %v4804 = vsel %vm3572, %v3327, %v4740
      %v4805 = vsel %vm3572, %v3332, %v4741
      %v4806 = vsel %vm3572, %v3337, %v4742
      %v4807 = vsel %vm3572, %v3342, %v4743
      %v4808 = vsel %vm3572, %v3347, %v4744
      %v4809 = vsel %vm3572, %v3352, %v4745
      %v4810 = vsel %vm3572, %v3357, %v4746
      %v4811 = vsel %vm3572, %v3362, %v4747
      %v4812 = vsel %vm3572, %v3367, %v4748
      %v4813 = vsel %vm3572, %v3372, %v4749
      %v4814 = vsel %vm3572, %v3377, %v4750
      %v4815 = vsel %vm3572, %v3382, %v4751
      %v4816 = vsel %vm3572, %v3387, %v4752
      %v4817 = vsel %vm3572, %v3392, %v4753
      %v4818 = vsel %vm3572, %v3397, %v4754
      %v4819 = vsel %vm3572, %v3402, %v4755
      %v4820 = vsel %vm3572, %v3407, %v4756
      %v4821 = vsel %vm3572, %v3412, %v4757
      %v4822 = vsel %vm3572, %v3417, %v4758
      %v4823 = vsel %vm3572, %v3422, %v4759
      %v4824 = vsel %vm3572, %v3427, %v4760
      %v4825 = vsel %vm3572, %v3432, %v4761
      %v4826 = vsel %vm3572, %v3437, %v4762
      %v4827 = vsel %vm3572, %v3442, %v4763
      %v4828 = vsel %vm3572, %v3447, %v4764
      %v4829 = vsel %vm3572, %v3452, %v4765
      %v4830 = vsel %vm3572, %v3457, %v4766
      %v4831 = vsel %vm3572, %v3462, %v4767
      %v4832 = vsel %vm3572, %v3467, %v4768
      %v4833 = vsel %vm3572, %v3472, %v4769
      %v4834 = vsel %vm3572, %v3477, %v4770
      %v4835 = vsel %vm3572, %v3482, %v4771
      %v4836 = vsel %vm3572, %v3487, %v4772
      %v4837 = vsel %vm3572, %v3492, %v4773
      %v4838 = vsel %vm3572, %v3497, %v4774
      %v4839 = vsel %vm3572, %v3502, %v4775
      %v4840 = vsel %vm3572, %v3507, %v4776
      %v4841 = vsel %vm3572, %v3512, %v4777
      %v4842 = vsel %vm3572, %v3517, %v4778
      %v4843 = vsel %vm3572, %v3522, %v4779
      %v4844 = vsel %vm3572, %v3527, %v4780
      %v4845 = vsel %vm3572, %v3532, %v4781
      %v4846 = vsel %vm3572, %v3537, %v4782
      %v4847 = vsel %vm3572, %v3542, %v4783
      %v4848 = vsel %vm3572, %v3547, %v4784
      %v4849 = vsel %vm3572, %v3552, %v4785
      %v4850 = vsel %vm3572, %v3557, %v4786
      %v4851 = vsel %vm3572, %v3562, %v4787
      %v4852 = vsel %vm3572, %v3567, %v4788
      %4853 = vst.msk [vmem:[%s172] sm:$0xff] %vm247, %v4789
      %4854 = vst.msk [vmem:[%s172 + $0x8] sm:$0xff] %vm247, %v4790
      %4855 = vst.msk [vmem:[%s172 + $0x10] sm:$0xff] %vm247, %v4791
      %4856 = vst.msk [vmem:[%s172 + $0x18] sm:$0xff] %vm247, %v4792
      %4857 = vst.msk [vmem:[%s172 + $0x20] sm:$0xff] %vm247, %v4793
      %4858 = vst.msk [vmem:[%s172 + $0x28] sm:$0xff] %vm247, %v4794
      %4859 = vst.msk [vmem:[%s172 + $0x30] sm:$0xff] %vm247, %v4795
      %4860 = vst.msk [vmem:[%s172 + $0x38] sm:$0xff] %vm247, %v4796
      %4861 = vst.msk [vmem:[%s172 + $0x40] sm:$0xff] %vm247, %v4797
      %4862 = vst.msk [vmem:[%s172 + $0x48] sm:$0xff] %vm247, %v4798
      %4863 = vst.msk [vmem:[%s172 + $0x50] sm:$0xff] %vm247, %v4799
      %4864 = vst.msk [vmem:[%s172 + $0x58] sm:$0xff] %vm247, %v4800
      %4865 = vst.msk [vmem:[%s172 + $0x60] sm:$0xff] %vm247, %v4801
      %4866 = vst.msk [vmem:[%s172 + $0x68] sm:$0xff] %vm247, %v4802
      %4867 = vst.msk [vmem:[%s172 + $0x70] sm:$0xff] %vm247, %v4803
      %4868 = vst.msk [vmem:[%s172 + $0x78] sm:$0xff] %vm247, %v4804
      %4869 = vst.msk [vmem:[%s172 + $0x80] sm:$0xff] %vm247, %v4805
      %4870 = vst.msk [vmem:[%s172 + $0x88] sm:$0xff] %vm247, %v4806
      %4871 = vst.msk [vmem:[%s172 + $0x90] sm:$0xff] %vm247, %v4807
      %4872 = vst.msk [vmem:[%s172 + $0x98] sm:$0xff] %vm247, %v4808
      %4873 = vst.msk [vmem:[%s172 + $0xa0] sm:$0xff] %vm247, %v4809
      %4874 = vst.msk [vmem:[%s172 + $0xa8] sm:$0xff] %vm247, %v4810
      %4875 = vst.msk [vmem:[%s172 + $0xb0] sm:$0xff] %vm247, %v4811
      %4876 = vst.msk [vmem:[%s172 + $0xb8] sm:$0xff] %vm247, %v4812
      %4877 = vst.msk [vmem:[%s172 + $0xc0] sm:$0xff] %vm247, %v4813
      %4878 = vst.msk [vmem:[%s172 + $0xc8] sm:$0xff] %vm247, %v4814
      %4879 = vst.msk [vmem:[%s172 + $0xd0] sm:$0xff] %vm247, %v4815
      %4880 = vst.msk [vmem:[%s172 + $0xd8] sm:$0xff] %vm247, %v4816
      %4881 = vst.msk [vmem:[%s172 + $0xe0] sm:$0xff] %vm247, %v4817
      %4882 = vst.msk [vmem:[%s172 + $0xe8] sm:$0xff] %vm247, %v4818
      %4883 = vst.msk [vmem:[%s172 + $0xf0] sm:$0xff] %vm247, %v4819
      %4884 = vst.msk [vmem:[%s172 + $0xf8] sm:$0xff] %vm247, %v4820
      %4885 = vst.msk [vmem:[%s172 + $0x100] sm:$0xff] %vm247, %v4821
      %4886 = vst.msk [vmem:[%s172 + $0x108] sm:$0xff] %vm247, %v4822
      %4887 = vst.msk [vmem:[%s172 + $0x110] sm:$0xff] %vm247, %v4823
      %4888 = vst.msk [vmem:[%s172 + $0x118] sm:$0xff] %vm247, %v4824
      %4889 = vst.msk [vmem:[%s172 + $0x120] sm:$0xff] %vm247, %v4825
      %4890 = vst.msk [vmem:[%s172 + $0x128] sm:$0xff] %vm247, %v4826
      %4891 = vst.msk [vmem:[%s172 + $0x130] sm:$0xff] %vm247, %v4827
      %4892 = vst.msk [vmem:[%s172 + $0x138] sm:$0xff] %vm247, %v4828
      %4893 = vst.msk [vmem:[%s172 + $0x140] sm:$0xff] %vm247, %v4829
      %4894 = vst.msk [vmem:[%s172 + $0x148] sm:$0xff] %vm247, %v4830
      %4895 = vst.msk [vmem:[%s172 + $0x150] sm:$0xff] %vm247, %v4831
      %4896 = vst.msk [vmem:[%s172 + $0x158] sm:$0xff] %vm247, %v4832
      %4897 = vst.msk [vmem:[%s172 + $0x160] sm:$0xff] %vm247, %v4833
      %4898 = vst.msk [vmem:[%s172 + $0x168] sm:$0xff] %vm247, %v4834
      %4899 = vst.msk [vmem:[%s172 + $0x170] sm:$0xff] %vm247, %v4835
      %4900 = vst.msk [vmem:[%s172 + $0x178] sm:$0xff] %vm247, %v4836
      %4901 = vst.msk [vmem:[%s172 + $0x180] sm:$0xff] %vm247, %v4837
      %4902 = vst.msk [vmem:[%s172 + $0x188] sm:$0xff] %vm247, %v4838
      %4903 = vst.msk [vmem:[%s172 + $0x190] sm:$0xff] %vm247, %v4839
      %4904 = vst.msk [vmem:[%s172 + $0x198] sm:$0xff] %vm247, %v4840
      %4905 = vst.msk [vmem:[%s172 + $0x1a0] sm:$0xff] %vm247, %v4841
      %4906 = vst.msk [vmem:[%s172 + $0x1a8] sm:$0xff] %vm247, %v4842
      %4907 = vst.msk [vmem:[%s172 + $0x1b0] sm:$0xff] %vm247, %v4843
      %4908 = vst.msk [vmem:[%s172 + $0x1b8] sm:$0xff] %vm247, %v4844
      %4909 = vst.msk [vmem:[%s172 + $0x1c0] sm:$0xff] %vm247, %v4845
      %4910 = vst.msk [vmem:[%s172 + $0x1c8] sm:$0xff] %vm247, %v4846
      %4911 = vst.msk [vmem:[%s172 + $0x1d0] sm:$0xff] %vm247, %v4847
      %4912 = vst.msk [vmem:[%s172 + $0x1d8] sm:$0xff] %vm247, %v4848
      %4913 = vst.msk [vmem:[%s172 + $0x1e0] sm:$0xff] %vm247, %v4849
      %4914 = vst.msk [vmem:[%s172 + $0x1e8] sm:$0xff] %vm247, %v4850
      %4915 = vst.msk [vmem:[%s172 + $0x1f0] sm:$0xff] %vm247, %v4851
      %4916 = vst.msk [vmem:[%s172 + $0x1f8] sm:$0xff] %vm247, %v4852
      %s4917 = smul.u32 64, %s14
      %p4918 = scmp.lt.s32.totalorder %s4917, 255
      %s4919 = scalar_select %p4918, %s4917, 255
      %s4920 = smul.addr %s4919, 8
      %s4921 = scalar_lea.vmem %s3, %s4920
      // Predicated region
      $region33: #{tpu_custom_call.1} parent=31 // pred_check
        %p4922 = pneg %p100
      $region34: #{tpu_custom_call.1} parent=31 // pred_check_branch
        %4924 = sbr.rel (%p4922) target = $region36
      $region35: #{tpu_custom_call.1} parent=31 // pred_region
        %s4925 = smul.u32 64, %s14
      $region36: #{tpu_custom_call.1} parent=31 // pred_fallthru
        _
    $region32: #{tpu_custom_call.1} parent=5 // pred_fallthru
      _
    %p4926 = scmp.le.s32.totalorder 2, %s9
    // Predicated region
    $region37: #{tpu_custom_call.1} parent=5 // pred_check
      %p4927 = pneg %p4926
    $region38: #{tpu_custom_call.1} parent=5 // pred_check_branch
      %4929 = sbr.rel (%p4927) target = $region40
    $region39: #{tpu_custom_call.1} parent=5 // pred_region
      %s4930 = ssub.s32 %s9, 2
      // Predicated region
      $region41: #{tpu_custom_call.1} parent=39 // pred_check
        %p4931 = pneg %p106
      $region42: #{tpu_custom_call.1} parent=39 // pred_check_branch
        %4933 = sbr.rel (%p4931) target = $region44
      $region43: #{tpu_custom_call.1} parent=39 // pred_region
        %s4934 = smul.u32 64, %s15
        %p4935 = scmp.lt.s32.totalorder %s4934, 255
        %s4936 = scalar_select %p4935, %s4934, 255
        %s4937 = smul.addr %s4936, 8
        %s4938 = scalar_lea.vmem %s3, %s4937
      $region44: #{tpu_custom_call.1} parent=39 // pred_fallthru
        _
    $region40: #{tpu_custom_call.1} parent=5 // pred_fallthru
      _
  $region6: #{tpu_custom_call.1} parent=0 // loop_footer
    %s13 = sadd.s32 1, %s9
  $region7: #{tpu_custom_call.1} parent=0 // loop_footer_branch
    %8 = sbr.rel target = $region3
  $region8: #{tpu_custom_call.1} parent=0 // loop_exit
    _

</llo_original>
